<compile_context>
chip_gen: v7x
topology: tpu7x:2x2x1
jax: 0.10.0
libtpu: 0.0.40
codegen_flags: <defaults>
</compile_context>

<pallas_src>
import math
import jax
import jax.numpy as jnp
from jax.experimental import pallas as pl
from jax.experimental.pallas import tpu as pltpu  # noqa: F401  (TPU backend)

# ----------------------------- model config ---------------------------------
D_MODEL = 32
NUM_HEADS = 4
D_K = D_MODEL // NUM_HEADS
DIM_FF = 64
BATCH = 2
SEQ = 8          # decoder (target) sequence length
SEQ_ENC = 8      # encoder (source) sequence length
EPS = 1e-5       # nn.LayerNorm default
NEG_INF = -1e9   # matches PyTorch masked_fill(mask == 0, -1e9)

# packed "vecs" row layout (width = max(D_MODEL, DIM_FF), D-wide rows zero-padded)
ROW_SA_BQ, ROW_SA_BK, ROW_SA_BV, ROW_SA_BO = 0, 1, 2, 3
ROW_CA_BQ, ROW_CA_BK, ROW_CA_BV, ROW_CA_BO = 4, 5, 6, 7
ROW_LN1_G, ROW_LN1_B = 8, 9
ROW_LN2_G, ROW_LN2_B = 10, 11
ROW_LN3_G, ROW_LN3_B = 12, 13
ROW_B2, ROW_B1 = 14, 15
NUM_VEC_ROWS = 16
VEC_W = max(D_MODEL, DIM_FF)


# ------------------------------ fused kernel --------------------------------
def _decoder_layer_kernel(xe_ref, m_ref, wqkv_ref, wdd_ref, wkv1_ref, w2_ref,
                          vecs_ref, o_ref):
    f32 = jnp.float32
    B, S, S_enc = BATCH, SEQ, SEQ_ENC
    D, H, DK = D_MODEL, NUM_HEADS, D_K
    N, N_enc = B * S, B * S_enc

    xv = xe_ref[0:N, :]              # (B*S, D)      decoder input
    encv = xe_ref[N:N + N_enc, :]    # (B*S_enc, D)  encoder output

    def vrow(r):                     # (1, D) packed parameter row
        return vecs_ref[r:r + 1, 0:D]

    def add_layernorm(a, b, g_row, b_row):
        z = a + b
        mu = jnp.mean(z, axis=-1, keepdims=True)
        var = jnp.mean((z - mu) * (z - mu), axis=-1, keepdims=True)
        zn = (z - mu) * jax.lax.rsqrt(var + EPS)
        return zn * vrow(g_row) + vrow(b_row)

    def split_heads(t, sx):
        # (B*sx, H*DK) -> (H*B, sx, DK), head-major batch
        parts = [t[:, h * DK:(h + 1) * DK] for h in range(H)]
        return jnp.stack(parts, axis=0).reshape(H * B, sx, DK)

    def attend(q, k, v, mask, wo, bo, sq, sk):
        qh, kh, vh = split_heads(q, sq), split_heads(k, sk), split_heads(v, sk)
        # single batched score einsum over all heads/batches (scale pre-folded)
        s = jnp.einsum("nqd,nkd->nqk", qh, kh, preferred_element_type=f32)
        s = s.reshape(H, B, sq, sk)
        s = jnp.where(mask[None] == 0.0, NEG_INF, s)      # masked_fill semantics
        s = s.reshape(H * B, sq, sk)
        s = s - jnp.max(s, axis=-1, keepdims=True)
        p = jnp.exp(s)
        p = p / jnp.sum(p, axis=-1, keepdims=True)        # exact softmax
        o = jnp.einsum("nqk,nkd->nqd", p, vh, preferred_element_type=f32)
        o = o.reshape(H, B * sq, DK)
        o_cat = jnp.concatenate([o[h] for h in range(H)], axis=-1)  # (B*sq, D)
        return jnp.dot(o_cat, wo, preferred_element_type=f32) + bo  # ONE Wo dot

    # ---- self-attention block (dropout == identity in eval) ----
    qkv = jnp.dot(xv, wqkv_ref[...], preferred_element_type=f32)    # fused QKV
    q = qkv[:, 0:D] + vrow(ROW_SA_BQ)
    k = qkv[:, D:2 * D] + vrow(ROW_SA_BK)
    v = qkv[:, 2 * D:3 * D] + vrow(ROW_SA_BV)
    sa = attend(q, k, v, m_ref[0], wdd_ref[0], vrow(ROW_SA_BO), S, S)
    x1 = add_layernorm(xv, sa, ROW_LN1_G, ROW_LN1_B)

    # ---- cross-attention block ----
    qc = jnp.dot(x1, wdd_ref[1], preferred_element_type=f32) + vrow(ROW_CA_BQ)
    kv = jnp.dot(encv, wkv1_ref[0], preferred_element_type=f32)     # fused KV
    kc = kv[:, 0:D] + vrow(ROW_CA_BK)
    vc = kv[:, D:2 * D] + vrow(ROW_CA_BV)
    ca = attend(qc, kc, vc, m_ref[1], wdd_ref[2], vrow(ROW_CA_BO), S, S_enc)
    x2 = add_layernorm(x1, ca, ROW_LN2_G, ROW_LN2_B)

    # ---- feed-forward block ----
    hid = (jnp.dot(x2, wkv1_ref[1], preferred_element_type=f32)
           + vecs_ref[ROW_B1:ROW_B1 + 1, 0:DIM_FF])
    hid = jnp.maximum(hid, 0.01 * hid)                    # LeakyReLU(0.01)
    ff = jnp.dot(hid, w2_ref[...], preferred_element_type=f32) + vrow(ROW_B2)
    x3 = add_layernorm(x2, ff, ROW_LN3_G, ROW_LN3_B)

    o_ref[...] = x3.astype(o_ref.dtype)


# --------------------------- wrapper / param prep ---------------------------
def decoder_layer(params, x, enc_output, src_mask, tgt_mask):
    """x: (B, S, D); enc_output: (B, S_enc, D); masks: (B, 1, Sq, Sk) of {0,1}."""
    B, S, D = x.shape
    S_enc = enc_output.shape[1]
    assert (B, S, D, S_enc) == (BATCH, SEQ, D_MODEL, SEQ_ENC)
    assert S == S_enc            # packed-mask layout assumes equal kv lengths
    assert DIM_FF == 2 * D_MODEL  # packed (cross-KV | W1) stack assumes this
    N, N_enc = B * S, B * S_enc
    scale = 1.0 / math.sqrt(D_K)

    sa, ca, ff = params["self_attn"], params["cross_attn"], params["ff"]

    # fused self-attn QKV weight, 1/sqrt(d_k) folded into Wq (and bq below)
    w_self_qkv = jnp.concatenate([sa["wq"] * scale, sa["wk"], sa["wv"]], axis=1)
    # stacked (D, D) weights: [self Wo, cross Wq (scaled), cross Wo]
    w_dd = jnp.stack([sa["wo"], ca["wq"] * scale, ca["wo"]])
    # stacked (D, 2D) weights: [cross fused KV, FFN W1]
    w_kv1 = jnp.stack([jnp.concatenate([ca["wk"], ca["wv"]], axis=1), ff["w1"]])
    w2 = ff["w2"]

    def pad_row(v):
        return jnp.pad(v, (0, VEC_W - v.shape[0]))
    vecs = jnp.stack([
        pad_row(sa["bq"] * scale), pad_row(sa["bk"]), pad_row(sa["bv"]), pad_row(sa["bo"]),
        pad_row(ca["bq"] * scale), pad_row(ca["bk"]), pad_row(ca["bv"]), pad_row(ca["bo"]),
        pad_row(params["ln1_g"]), pad_row(params["ln1_b"]),
        pad_row(params["ln2_g"]), pad_row(params["ln2_b"]),
        pad_row(params["ln3_g"]), pad_row(params["ln3_b"]),
        pad_row(ff["b2"]), pad_row(ff["b1"]),
    ])                                                     # (16, VEC_W)

    # both {0,1} masks packed into one tensor: [0] = tgt, [1] = src
    masks = jnp.stack([tgt_mask.reshape(B, S, S).astype(jnp.float32),
                       src_mask.reshape(B, S, S_enc).astype(jnp.float32)])
    # decoder input and encoder output packed into one activation slab
    xe = jnp.concatenate([x.reshape(N, D), enc_output.reshape(N_enc, D)], axis=0)

    out = pl.pallas_call(
        _decoder_layer_kernel,
        out_shape=jax.ShapeDtypeStruct((N, D), x.dtype),
        in_specs=[
            pl.BlockSpec((N + N_enc, D), lambda: (0, 0)),        # x | enc
            pl.BlockSpec((2, B, S, S), lambda: (0, 0, 0, 0)),    # packed masks
            pl.BlockSpec((D, 3 * D), lambda: (0, 0)),            # self QKV weight
            pl.BlockSpec((3, D, D), lambda: (0, 0, 0)),          # stacked (D,D) weights
            pl.BlockSpec((2, D, DIM_FF), lambda: (0, 0, 0)),     # cross KV | FFN W1
            pl.BlockSpec((DIM_FF, D), lambda: (0, 0)),           # FFN W2
            pl.BlockSpec((NUM_VEC_ROWS, VEC_W), lambda: (0, 0)),  # packed biases/LN
        ],
        out_specs=pl.BlockSpec((N, D), lambda: (0, 0)),
    )(xe, masks, w_self_qkv, w_dd, w_kv1, w2, vecs)

    # TODO(synk): nn.Dropout is identity here (eval/inference mode); no RNG dropout.
    return out.reshape(B, S, D)


# ------------------------------ param init ----------------------------------
def init_params(key):
    keys = iter(jax.random.split(key, 32))

    def lin(din, dout):
        w = jax.random.normal(next(keys), (din, dout), jnp.float32) * 0.02
        b = jax.random.normal(next(keys), (dout,), jnp.float32) * 0.02
        return w, b

    def mha():
        wq, bq = lin(D_MODEL, D_MODEL)
        wk, bk = lin(D_MODEL, D_MODEL)
        wv, bv = lin(D_MODEL, D_MODEL)
        wo, bo = lin(D_MODEL, D_MODEL)
        return dict(wq=wq, bq=bq, wk=wk, bk=bk, wv=wv, bv=bv, wo=wo, bo=bo)

    w1, b1 = lin(D_MODEL, DIM_FF)
    w2, b2 = lin(DIM_FF, D_MODEL)
    return {
        "self_attn": mha(),
        "cross_attn": mha(),
        "ff": dict(w1=w1, b1=b1, w2=w2, b2=b2),
        "ln1_g": jnp.ones((D_MODEL,), jnp.float32),
        "ln1_b": jnp.zeros((D_MODEL,), jnp.float32),
        "ln2_g": jnp.ones((D_MODEL,), jnp.float32),
        "ln2_b": jnp.zeros((D_MODEL,), jnp.float32),
        "ln3_g": jnp.ones((D_MODEL,), jnp.float32),
        "ln3_b": jnp.zeros((D_MODEL,), jnp.float32),
    }


# --------------------------------- main --------------------------------------
if __name__ == "__main__":
    key = jax.random.PRNGKey(0)
    k_param, k_x, k_enc = jax.random.split(key, 3)

    params = init_params(k_param)
    x = jax.random.normal(k_x, (BATCH, SEQ, D_MODEL), jnp.float32)
    enc_output = jax.random.normal(k_enc, (BATCH, SEQ_ENC, D_MODEL), jnp.float32)

    # tgt_mask: causal; src_mask: all ones (both {0,1}, shape (B, 1, Sq, Sk))
    causal = jnp.tril(jnp.ones((SEQ, SEQ), jnp.float32))
    tgt_mask = jnp.broadcast_to(causal, (BATCH, 1, SEQ, SEQ))
    src_mask = jnp.ones((BATCH, 1, SEQ, SEQ_ENC), jnp.float32)

    out = jax.jit(decoder_layer)(params, x, enc_output, src_mask, tgt_mask)
    jax.block_until_ready(out)
    assert out.shape == (BATCH, SEQ, D_MODEL)
    print("KERNEL_OK")
</pallas_src>

<mosaic_0001>
module attributes {stable_mosaic.version = 11 : i64} {
  func.func @_decoder_layer_kernel(%arg0: memref<32x32xf32, #tpu.memory_space<vmem>>, %arg1: memref<2x2x8x8xf32, #tpu.memory_space<vmem>>, %arg2: memref<32x96xf32, #tpu.memory_space<vmem>>, %arg3: memref<3x32x32xf32, #tpu.memory_space<vmem>>, %arg4: memref<2x32x64xf32, #tpu.memory_space<vmem>>, %arg5: memref<64x32xf32, #tpu.memory_space<vmem>>, %arg6: memref<16x64xf32, #tpu.memory_space<vmem>>, %arg7: memref<16x32xf32, #tpu.memory_space<vmem>>) attributes {dimension_semantics = [], scalar_prefetch = 0 : i64, scratch_operands = 0 : i64, tpu.core_type = #tpu.core_type<tc>} {
    %c0 = arith.constant 0 : index
    %c0_0 = arith.constant 0 : index
    %0 = vector.load %arg0[%c0, %c0_0] : memref<32x32xf32, #tpu.memory_space<vmem>>, vector<16x32xf32>
    %c16 = arith.constant 16 : index
    %c0_1 = arith.constant 0 : index
    %1 = vector.load %arg0[%c16, %c0_1] : memref<32x32xf32, #tpu.memory_space<vmem>>, vector<16x32xf32>
    %c0_2 = arith.constant 0 : index
    %c0_3 = arith.constant 0 : index
    %2 = vector.load %arg2[%c0_2, %c0_3] : memref<32x96xf32, #tpu.memory_space<vmem>>, vector<32x96xf32>
    %cst = arith.constant dense<0.000000e+00> : vector<16x96xf32>
    %3 = tpu.matmul %0, %2, %cst {dimension_numbers = #tpu.dot_dimension_numbers<[1], [0], [0], [1], [0, 0, 1, 1], [], []>} : vector<16x32xf32>, vector<32x96xf32>, vector<16x96xf32> -> vector<16x96xf32>
    %4 = vector.extract_strided_slice %3 {offsets = [0, 0], sizes = [16, 32], strides = [1, 1]} : vector<16x96xf32> to vector<16x32xf32>
    %c0_4 = arith.constant 0 : index
    %c0_5 = arith.constant 0 : index
    %5 = vector.load %arg6[%c0_4, %c0_5] : memref<16x64xf32, #tpu.memory_space<vmem>>, vector<1x32xf32>
    %6 = vector.broadcast %5 : vector<1x32xf32> to vector<16x32xf32>
    %7 = arith.addf %4, %6 : vector<16x32xf32>
    %8 = vector.extract_strided_slice %3 {offsets = [0, 32], sizes = [16, 32], strides = [1, 1]} : vector<16x96xf32> to vector<16x32xf32>
    %c1 = arith.constant 1 : index
    %c0_6 = arith.constant 0 : index
    %9 = vector.load %arg6[%c1, %c0_6] : memref<16x64xf32, #tpu.memory_space<vmem>>, vector<1x32xf32>
    %10 = vector.broadcast %9 : vector<1x32xf32> to vector<16x32xf32>
    %11 = arith.addf %8, %10 : vector<16x32xf32>
    %12 = vector.extract_strided_slice %3 {offsets = [0, 64], sizes = [16, 32], strides = [1, 1]} : vector<16x96xf32> to vector<16x32xf32>
    %c2 = arith.constant 2 : index
    %c0_7 = arith.constant 0 : index
    %13 = vector.load %arg6[%c2, %c0_7] : memref<16x64xf32, #tpu.memory_space<vmem>>, vector<1x32xf32>
    %14 = vector.broadcast %13 : vector<1x32xf32> to vector<16x32xf32>
    %15 = arith.addf %12, %14 : vector<16x32xf32>
    %c0_8 = arith.constant 0 : index
    %c0_9 = arith.constant 0 : index
    %c0_10 = arith.constant 0 : index
    %c0_11 = arith.constant 0 : index
    %16 = vector.load %arg1[%c0_8, %c0_9, %c0_10, %c0_11] : memref<2x2x8x8xf32, #tpu.memory_space<vmem>>, vector<1x2x8x8xf32>
    %17 = vector.shape_cast %16 : vector<1x2x8x8xf32> to vector<2x8x8xf32>
    %c0_12 = arith.constant 0 : index
    %c0_13 = arith.constant 0 : index
    %c0_14 = arith.constant 0 : index
    %18 = vector.load %arg3[%c0_12, %c0_13, %c0_14] : memref<3x32x32xf32, #tpu.memory_space<vmem>>, vector<1x32x32xf32>
    %19 = vector.shape_cast %18 : vector<1x32x32xf32> to vector<32x32xf32>
    %c3 = arith.constant 3 : index
    %c0_15 = arith.constant 0 : index
    %20 = vector.load %arg6[%c3, %c0_15] : memref<16x64xf32, #tpu.memory_space<vmem>>, vector<1x32xf32>
    %21 = vector.extract_strided_slice %7 {offsets = [0, 0], sizes = [16, 8], strides = [1, 1]} : vector<16x32xf32> to vector<16x8xf32>
    %22 = vector.extract_strided_slice %7 {offsets = [0, 8], sizes = [16, 8], strides = [1, 1]} : vector<16x32xf32> to vector<16x8xf32>
    %23 = vector.extract_strided_slice %7 {offsets = [0, 16], sizes = [16, 8], strides = [1, 1]} : vector<16x32xf32> to vector<16x8xf32>
    %24 = vector.extract_strided_slice %7 {offsets = [0, 24], sizes = [16, 8], strides = [1, 1]} : vector<16x32xf32> to vector<16x8xf32>
    %25 = vector.shape_cast %21 : vector<16x8xf32> to vector<1x16x8xf32>
    %26 = vector.shape_cast %22 : vector<16x8xf32> to vector<1x16x8xf32>
    %27 = vector.shape_cast %23 : vector<16x8xf32> to vector<1x16x8xf32>
    %28 = vector.shape_cast %24 : vector<16x8xf32> to vector<1x16x8xf32>
    %29 = tpu.concatenate %25, %26, %27, %28 in 0 : vector<1x16x8xf32>, vector<1x16x8xf32>, vector<1x16x8xf32>, vector<1x16x8xf32> -> vector<4x16x8xf32>
    %30 = vector.shape_cast %29 : vector<4x16x8xf32> to vector<8x8x8xf32>
    %31 = vector.extract_strided_slice %11 {offsets = [0, 0], sizes = [16, 8], strides = [1, 1]} : vector<16x32xf32> to vector<16x8xf32>
    %32 = vector.extract_strided_slice %11 {offsets = [0, 8], sizes = [16, 8], strides = [1, 1]} : vector<16x32xf32> to vector<16x8xf32>
    %33 = vector.extract_strided_slice %11 {offsets = [0, 16], sizes = [16, 8], strides = [1, 1]} : vector<16x32xf32> to vector<16x8xf32>
    %34 = vector.extract_strided_slice %11 {offsets = [0, 24], sizes = [16, 8], strides = [1, 1]} : vector<16x32xf32> to vector<16x8xf32>
    %35 = vector.shape_cast %31 : vector<16x8xf32> to vector<1x16x8xf32>
    %36 = vector.shape_cast %32 : vector<16x8xf32> to vector<1x16x8xf32>
    %37 = vector.shape_cast %33 : vector<16x8xf32> to vector<1x16x8xf32>
    %38 = vector.shape_cast %34 : vector<16x8xf32> to vector<1x16x8xf32>
    %39 = tpu.concatenate %35, %36, %37, %38 in 0 : vector<1x16x8xf32>, vector<1x16x8xf32>, vector<1x16x8xf32>, vector<1x16x8xf32> -> vector<4x16x8xf32>
    %40 = vector.shape_cast %39 : vector<4x16x8xf32> to vector<8x8x8xf32>
    %41 = vector.extract_strided_slice %15 {offsets = [0, 0], sizes = [16, 8], strides = [1, 1]} : vector<16x32xf32> to vector<16x8xf32>
    %42 = vector.extract_strided_slice %15 {offsets = [0, 8], sizes = [16, 8], strides = [1, 1]} : vector<16x32xf32> to vector<16x8xf32>
    %43 = vector.extract_strided_slice %15 {offsets = [0, 16], sizes = [16, 8], strides = [1, 1]} : vector<16x32xf32> to vector<16x8xf32>
    %44 = vector.extract_strided_slice %15 {offsets = [0, 24], sizes = [16, 8], strides = [1, 1]} : vector<16x32xf32> to vector<16x8xf32>
    %45 = vector.shape_cast %41 : vector<16x8xf32> to vector<1x16x8xf32>
    %46 = vector.shape_cast %42 : vector<16x8xf32> to vector<1x16x8xf32>
    %47 = vector.shape_cast %43 : vector<16x8xf32> to vector<1x16x8xf32>
    %48 = vector.shape_cast %44 : vector<16x8xf32> to vector<1x16x8xf32>
    %49 = tpu.concatenate %45, %46, %47, %48 in 0 : vector<1x16x8xf32>, vector<1x16x8xf32>, vector<1x16x8xf32>, vector<1x16x8xf32> -> vector<4x16x8xf32>
    %50 = vector.shape_cast %49 : vector<4x16x8xf32> to vector<8x8x8xf32>
    "tpu.trace_start"() <{level = 10 : i32, message = "nqd,nkd->nqk"}> : () -> ()
    %cst_16 = arith.constant dense<0.000000e+00> : vector<8x8x8xf32>
    %51 = tpu.matmul %30, %40, %cst_16 {dimension_numbers = #tpu.dot_dimension_numbers<[2], [2], [1], [1], [0, 0, 0, 1, 1, 1], [0], [0]>} : vector<8x8x8xf32>, vector<8x8x8xf32>, vector<8x8x8xf32> -> vector<8x8x8xf32>
    "tpu.trace_stop"() : () -> ()
    %52 = vector.shape_cast %51 : vector<8x8x8xf32> to vector<4x2x8x8xf32>
    %53 = vector.shape_cast %17 : vector<2x8x8xf32> to vector<1x2x8x8xf32>
    %cst_17 = arith.constant 0.000000e+00 : f32
    %54 = vector.broadcast %cst_17 : f32 to vector<1x2x8x8xf32>
    %55 = arith.cmpf oeq, %53, %54 : vector<1x2x8x8xf32>
    %cst_18 = arith.constant -1.000000e+09 : f32
    %56 = vector.shape_cast %55 : vector<1x2x8x8xi1> to vector<1x2x8x8xi1>
    %57 = vector.broadcast %56 : vector<1x2x8x8xi1> to vector<4x2x8x8xi1>
    %58 = vector.broadcast %cst_18 : f32 to vector<4x2x8x8xf32>
    %59 = arith.select %57, %58, %52 : vector<4x2x8x8xi1>, vector<4x2x8x8xf32>
    %60 = vector.shape_cast %59 : vector<4x2x8x8xf32> to vector<8x8x8xf32>
    %cst_19 = arith.constant dense<0xFF800000> : vector<8x8xf32>
    %61 = vector.multi_reduction <maximumf>, %60, %cst_19 [2] : vector<8x8x8xf32> to vector<8x8xf32>
    %62 = vector.shape_cast %61 : vector<8x8xf32> to vector<8x8x1xf32>
    %63 = vector.broadcast %62 : vector<8x8x1xf32> to vector<8x8x8xf32>
    %64 = arith.subf %60, %63 : vector<8x8x8xf32>
    %65 = math.exp %64 : vector<8x8x8xf32>
    %cst_20 = arith.constant dense<0.000000e+00> : vector<8x8xf32>
    %66 = vector.multi_reduction <add>, %65, %cst_20 [2] : vector<8x8x8xf32> to vector<8x8xf32>
    %67 = vector.shape_cast %66 : vector<8x8xf32> to vector<8x8x1xf32>
    %68 = vector.broadcast %67 : vector<8x8x1xf32> to vector<8x8x8xf32>
    %69 = arith.divf %65, %68 : vector<8x8x8xf32>
    "tpu.trace_start"() <{level = 10 : i32, message = "nqk,nkd->nqd"}> : () -> ()
    %cst_21 = arith.constant dense<0.000000e+00> : vector<8x8x8xf32>
    %70 = tpu.matmul %69, %50, %cst_21 {dimension_numbers = #tpu.dot_dimension_numbers<[2], [1], [1], [2], [0, 0, 0, 1, 1, 2], [0], [0]>} : vector<8x8x8xf32>, vector<8x8x8xf32>, vector<8x8x8xf32> -> vector<8x8x8xf32>
    "tpu.trace_stop"() : () -> ()
    %71 = vector.shape_cast %70 : vector<8x8x8xf32> to vector<4x16x8xf32>
    %72 = vector.extract_strided_slice %71 {offsets = [0, 0, 0], sizes = [1, 16, 8], strides = [1, 1, 1]} : vector<4x16x8xf32> to vector<1x16x8xf32>
    %73 = vector.shape_cast %72 : vector<1x16x8xf32> to vector<16x8xf32>
    %74 = vector.extract_strided_slice %71 {offsets = [1, 0, 0], sizes = [1, 16, 8], strides = [1, 1, 1]} : vector<4x16x8xf32> to vector<1x16x8xf32>
    %75 = vector.shape_cast %74 : vector<1x16x8xf32> to vector<16x8xf32>
    %76 = vector.extract_strided_slice %71 {offsets = [2, 0, 0], sizes = [1, 16, 8], strides = [1, 1, 1]} : vector<4x16x8xf32> to vector<1x16x8xf32>
    %77 = vector.shape_cast %76 : vector<1x16x8xf32> to vector<16x8xf32>
    %78 = vector.extract_strided_slice %71 {offsets = [3, 0, 0], sizes = [1, 16, 8], strides = [1, 1, 1]} : vector<4x16x8xf32> to vector<1x16x8xf32>
    %79 = vector.shape_cast %78 : vector<1x16x8xf32> to vector<16x8xf32>
    %80 = tpu.concatenate %73, %75, %77, %79 in 1 : vector<16x8xf32>, vector<16x8xf32>, vector<16x8xf32>, vector<16x8xf32> -> vector<16x32xf32>
    %cst_22 = arith.constant dense<0.000000e+00> : vector<16x32xf32>
    %81 = tpu.matmul %80, %19, %cst_22 {dimension_numbers = #tpu.dot_dimension_numbers<[1], [0], [0], [1], [0, 0, 1, 1], [], []>} : vector<16x32xf32>, vector<32x32xf32>, vector<16x32xf32> -> vector<16x32xf32>
    %82 = vector.broadcast %20 : vector<1x32xf32> to vector<16x32xf32>
    %83 = arith.addf %81, %82 : vector<16x32xf32>
    %84 = arith.addf %0, %83 : vector<16x32xf32>
    %cst_23 = arith.constant dense<0.000000e+00> : vector<16xf32>
    %85 = vector.multi_reduction <add>, %84, %cst_23 [1] : vector<16x32xf32> to vector<16xf32>
    %86 = vector.shape_cast %85 : vector<16xf32> to vector<16x1xf32>
    %cst_24 = arith.constant 3.200000e+01 : f32
    %87 = vector.broadcast %cst_24 : f32 to vector<16x1xf32>
    %88 = arith.divf %86, %87 : vector<16x1xf32>
    %89 = vector.broadcast %88 : vector<16x1xf32> to vector<16x32xf32>
    %90 = arith.subf %84, %89 : vector<16x32xf32>
    %91 = vector.broadcast %88 : vector<16x1xf32> to vector<16x32xf32>
    %92 = arith.subf %84, %91 : vector<16x32xf32>
    %93 = arith.mulf %90, %92 : vector<16x32xf32>
    %cst_25 = arith.constant dense<0.000000e+00> : vector<16xf32>
    %94 = vector.multi_reduction <add>, %93, %cst_25 [1] : vector<16x32xf32> to vector<16xf32>
    %95 = vector.shape_cast %94 : vector<16xf32> to vector<16x1xf32>
    %cst_26 = arith.constant 3.200000e+01 : f32
    %96 = vector.broadcast %cst_26 : f32 to vector<16x1xf32>
    %97 = arith.divf %95, %96 : vector<16x1xf32>
    %98 = vector.broadcast %88 : vector<16x1xf32> to vector<16x32xf32>
    %99 = arith.subf %84, %98 : vector<16x32xf32>
    %cst_27 = arith.constant 9.99999974E-6 : f32
    %100 = vector.broadcast %cst_27 : f32 to vector<16x1xf32>
    %101 = arith.addf %97, %100 : vector<16x1xf32>
    %102 = math.rsqrt %101 : vector<16x1xf32>
    %103 = vector.broadcast %102 : vector<16x1xf32> to vector<16x32xf32>
    %104 = arith.mulf %99, %103 : vector<16x32xf32>
    %c8 = arith.constant 8 : index
    %c0_28 = arith.constant 0 : index
    %105 = vector.load %arg6[%c8, %c0_28] : memref<16x64xf32, #tpu.memory_space<vmem>>, vector<1x32xf32>
    %106 = vector.broadcast %105 : vector<1x32xf32> to vector<16x32xf32>
    %107 = arith.mulf %104, %106 : vector<16x32xf32>
    %c9 = arith.constant 9 : index
    %c0_29 = arith.constant 0 : index
    %108 = vector.load %arg6[%c9, %c0_29] : memref<16x64xf32, #tpu.memory_space<vmem>>, vector<1x32xf32>
    %109 = vector.broadcast %108 : vector<1x32xf32> to vector<16x32xf32>
    %110 = arith.addf %107, %109 : vector<16x32xf32>
    %c1_30 = arith.constant 1 : index
    %c0_31 = arith.constant 0 : index
    %c0_32 = arith.constant 0 : index
    %111 = vector.load %arg3[%c1_30, %c0_31, %c0_32] : memref<3x32x32xf32, #tpu.memory_space<vmem>>, vector<1x32x32xf32>
    %112 = vector.shape_cast %111 : vector<1x32x32xf32> to vector<32x32xf32>
    %cst_33 = arith.constant dense<0.000000e+00> : vector<16x32xf32>
    %113 = tpu.matmul %110, %112, %cst_33 {dimension_numbers = #tpu.dot_dimension_numbers<[1], [0], [0], [1], [0, 0, 1, 1], [], []>} : vector<16x32xf32>, vector<32x32xf32>, vector<16x32xf32> -> vector<16x32xf32>
    %c4 = arith.constant 4 : index
    %c0_34 = arith.constant 0 : index
    %114 = vector.load %arg6[%c4, %c0_34] : memref<16x64xf32, #tpu.memory_space<vmem>>, vector<1x32xf32>
    %115 = vector.broadcast %114 : vector<1x32xf32> to vector<16x32xf32>
    %116 = arith.addf %113, %115 : vector<16x32xf32>
    %c0_35 = arith.constant 0 : index
    %c0_36 = arith.constant 0 : index
    %c0_37 = arith.constant 0 : index
    %117 = vector.load %arg4[%c0_35, %c0_36, %c0_37] : memref<2x32x64xf32, #tpu.memory_space<vmem>>, vector<1x32x64xf32>
    %118 = vector.shape_cast %117 : vector<1x32x64xf32> to vector<32x64xf32>
    %cst_38 = arith.constant dense<0.000000e+00> : vector<16x64xf32>
    %119 = tpu.matmul %1, %118, %cst_38 {dimension_numbers = #tpu.dot_dimension_numbers<[1], [0], [0], [1], [0, 0, 1, 1], [], []>} : vector<16x32xf32>, vector<32x64xf32>, vector<16x64xf32> -> vector<16x64xf32>
    %120 = vector.extract_strided_slice %119 {offsets = [0, 0], sizes = [16, 32], strides = [1, 1]} : vector<16x64xf32> to vector<16x32xf32>
    %c5 = arith.constant 5 : index
    %c0_39 = arith.constant 0 : index
    %121 = vector.load %arg6[%c5, %c0_39] : memref<16x64xf32, #tpu.memory_space<vmem>>, vector<1x32xf32>
    %122 = vector.broadcast %121 : vector<1x32xf32> to vector<16x32xf32>
    %123 = arith.addf %120, %122 : vector<16x32xf32>
    %124 = vector.extract_strided_slice %119 {offsets = [0, 32], sizes = [16, 32], strides = [1, 1]} : vector<16x64xf32> to vector<16x32xf32>
    %c6 = arith.constant 6 : index
    %c0_40 = arith.constant 0 : index
    %125 = vector.load %arg6[%c6, %c0_40] : memref<16x64xf32, #tpu.memory_space<vmem>>, vector<1x32xf32>
    %126 = vector.broadcast %125 : vector<1x32xf32> to vector<16x32xf32>
    %127 = arith.addf %124, %126 : vector<16x32xf32>
    %c1_41 = arith.constant 1 : index
    %c0_42 = arith.constant 0 : index
    %c0_43 = arith.constant 0 : index
    %c0_44 = arith.constant 0 : index
    %128 = vector.load %arg1[%c1_41, %c0_42, %c0_43, %c0_44] : memref<2x2x8x8xf32, #tpu.memory_space<vmem>>, vector<1x2x8x8xf32>
    %129 = vector.shape_cast %128 : vector<1x2x8x8xf32> to vector<2x8x8xf32>
    %c2_45 = arith.constant 2 : index
    %c0_46 = arith.constant 0 : index
    %c0_47 = arith.constant 0 : index
    %130 = vector.load %arg3[%c2_45, %c0_46, %c0_47] : memref<3x32x32xf32, #tpu.memory_space<vmem>>, vector<1x32x32xf32>
    %131 = vector.shape_cast %130 : vector<1x32x32xf32> to vector<32x32xf32>
    %c7 = arith.constant 7 : index
    %c0_48 = arith.constant 0 : index
    %132 = vector.load %arg6[%c7, %c0_48] : memref<16x64xf32, #tpu.memory_space<vmem>>, vector<1x32xf32>
    %133 = vector.extract_strided_slice %116 {offsets = [0, 0], sizes = [16, 8], strides = [1, 1]} : vector<16x32xf32> to vector<16x8xf32>
    %134 = vector.extract_strided_slice %116 {offsets = [0, 8], sizes = [16, 8], strides = [1, 1]} : vector<16x32xf32> to vector<16x8xf32>
    %135 = vector.extract_strided_slice %116 {offsets = [0, 16], sizes = [16, 8], strides = [1, 1]} : vector<16x32xf32> to vector<16x8xf32>
    %136 = vector.extract_strided_slice %116 {offsets = [0, 24], sizes = [16, 8], strides = [1, 1]} : vector<16x32xf32> to vector<16x8xf32>
    %137 = vector.shape_cast %133 : vector<16x8xf32> to vector<1x16x8xf32>
    %138 = vector.shape_cast %134 : vector<16x8xf32> to vector<1x16x8xf32>
    %139 = vector.shape_cast %135 : vector<16x8xf32> to vector<1x16x8xf32>
    %140 = vector.shape_cast %136 : vector<16x8xf32> to vector<1x16x8xf32>
    %141 = tpu.concatenate %137, %138, %139, %140 in 0 : vector<1x16x8xf32>, vector<1x16x8xf32>, vector<1x16x8xf32>, vector<1x16x8xf32> -> vector<4x16x8xf32>
    %142 = vector.shape_cast %141 : vector<4x16x8xf32> to vector<8x8x8xf32>
    %143 = vector.extract_strided_slice %123 {offsets = [0, 0], sizes = [16, 8], strides = [1, 1]} : vector<16x32xf32> to vector<16x8xf32>
    %144 = vector.extract_strided_slice %123 {offsets = [0, 8], sizes = [16, 8], strides = [1, 1]} : vector<16x32xf32> to vector<16x8xf32>
    %145 = vector.extract_strided_slice %123 {offsets = [0, 16], sizes = [16, 8], strides = [1, 1]} : vector<16x32xf32> to vector<16x8xf32>
    %146 = vector.extract_strided_slice %123 {offsets = [0, 24], sizes = [16, 8], strides = [1, 1]} : vector<16x32xf32> to vector<16x8xf32>
    %147 = vector.shape_cast %143 : vector<16x8xf32> to vector<1x16x8xf32>
    %148 = vector.shape_cast %144 : vector<16x8xf32> to vector<1x16x8xf32>
    %149 = vector.shape_cast %145 : vector<16x8xf32> to vector<1x16x8xf32>
    %150 = vector.shape_cast %146 : vector<16x8xf32> to vector<1x16x8xf32>
    %151 = tpu.concatenate %147, %148, %149, %150 in 0 : vector<1x16x8xf32>, vector<1x16x8xf32>, vector<1x16x8xf32>, vector<1x16x8xf32> -> vector<4x16x8xf32>
    %152 = vector.shape_cast %151 : vector<4x16x8xf32> to vector<8x8x8xf32>
    %153 = vector.extract_strided_slice %127 {offsets = [0, 0], sizes = [16, 8], strides = [1, 1]} : vector<16x32xf32> to vector<16x8xf32>
    %154 = vector.extract_strided_slice %127 {offsets = [0, 8], sizes = [16, 8], strides = [1, 1]} : vector<16x32xf32> to vector<16x8xf32>
    %155 = vector.extract_strided_slice %127 {offsets = [0, 16], sizes = [16, 8], strides = [1, 1]} : vector<16x32xf32> to vector<16x8xf32>
    %156 = vector.extract_strided_slice %127 {offsets = [0, 24], sizes = [16, 8], strides = [1, 1]} : vector<16x32xf32> to vector<16x8xf32>
    %157 = vector.shape_cast %153 : vector<16x8xf32> to vector<1x16x8xf32>
    %158 = vector.shape_cast %154 : vector<16x8xf32> to vector<1x16x8xf32>
    %159 = vector.shape_cast %155 : vector<16x8xf32> to vector<1x16x8xf32>
    %160 = vector.shape_cast %156 : vector<16x8xf32> to vector<1x16x8xf32>
    %161 = tpu.concatenate %157, %158, %159, %160 in 0 : vector<1x16x8xf32>, vector<1x16x8xf32>, vector<1x16x8xf32>, vector<1x16x8xf32> -> vector<4x16x8xf32>
    %162 = vector.shape_cast %161 : vector<4x16x8xf32> to vector<8x8x8xf32>
    "tpu.trace_start"() <{level = 10 : i32, message = "nqd,nkd->nqk"}> : () -> ()
    %cst_49 = arith.constant dense<0.000000e+00> : vector<8x8x8xf32>
    %163 = tpu.matmul %142, %152, %cst_49 {dimension_numbers = #tpu.dot_dimension_numbers<[2], [2], [1], [1], [0, 0, 0, 1, 1, 1], [0], [0]>} : vector<8x8x8xf32>, vector<8x8x8xf32>, vector<8x8x8xf32> -> vector<8x8x8xf32>
    "tpu.trace_stop"() : () -> ()
    %164 = vector.shape_cast %163 : vector<8x8x8xf32> to vector<4x2x8x8xf32>
    %165 = vector.shape_cast %129 : vector<2x8x8xf32> to vector<1x2x8x8xf32>
    %cst_50 = arith.constant 0.000000e+00 : f32
    %166 = vector.broadcast %cst_50 : f32 to vector<1x2x8x8xf32>
    %167 = arith.cmpf oeq, %165, %166 : vector<1x2x8x8xf32>
    %cst_51 = arith.constant -1.000000e+09 : f32
    %168 = vector.shape_cast %167 : vector<1x2x8x8xi1> to vector<1x2x8x8xi1>
    %169 = vector.broadcast %168 : vector<1x2x8x8xi1> to vector<4x2x8x8xi1>
    %170 = vector.broadcast %cst_51 : f32 to vector<4x2x8x8xf32>
    %171 = arith.select %169, %170, %164 : vector<4x2x8x8xi1>, vector<4x2x8x8xf32>
    %172 = vector.shape_cast %171 : vector<4x2x8x8xf32> to vector<8x8x8xf32>
    %cst_52 = arith.constant dense<0xFF800000> : vector<8x8xf32>
    %173 = vector.multi_reduction <maximumf>, %172, %cst_52 [2] : vector<8x8x8xf32> to vector<8x8xf32>
    %174 = vector.shape_cast %173 : vector<8x8xf32> to vector<8x8x1xf32>
    %175 = vector.broadcast %174 : vector<8x8x1xf32> to vector<8x8x8xf32>
    %176 = arith.subf %172, %175 : vector<8x8x8xf32>
    %177 = math.exp %176 : vector<8x8x8xf32>
    %cst_53 = arith.constant dense<0.000000e+00> : vector<8x8xf32>
    %178 = vector.multi_reduction <add>, %177, %cst_53 [2] : vector<8x8x8xf32> to vector<8x8xf32>
    %179 = vector.shape_cast %178 : vector<8x8xf32> to vector<8x8x1xf32>
    %180 = vector.broadcast %179 : vector<8x8x1xf32> to vector<8x8x8xf32>
    %181 = arith.divf %177, %180 : vector<8x8x8xf32>
    "tpu.trace_start"() <{level = 10 : i32, message = "nqk,nkd->nqd"}> : () -> ()
    %cst_54 = arith.constant dense<0.000000e+00> : vector<8x8x8xf32>
    %182 = tpu.matmul %181, %162, %cst_54 {dimension_numbers = #tpu.dot_dimension_numbers<[2], [1], [1], [2], [0, 0, 0, 1, 1, 2], [0], [0]>} : vector<8x8x8xf32>, vector<8x8x8xf32>, vector<8x8x8xf32> -> vector<8x8x8xf32>
    "tpu.trace_stop"() : () -> ()
    %183 = vector.shape_cast %182 : vector<8x8x8xf32> to vector<4x16x8xf32>
    %184 = vector.extract_strided_slice %183 {offsets = [0, 0, 0], sizes = [1, 16, 8], strides = [1, 1, 1]} : vector<4x16x8xf32> to vector<1x16x8xf32>
    %185 = vector.shape_cast %184 : vector<1x16x8xf32> to vector<16x8xf32>
    %186 = vector.extract_strided_slice %183 {offsets = [1, 0, 0], sizes = [1, 16, 8], strides = [1, 1, 1]} : vector<4x16x8xf32> to vector<1x16x8xf32>
    %187 = vector.shape_cast %186 : vector<1x16x8xf32> to vector<16x8xf32>
    %188 = vector.extract_strided_slice %183 {offsets = [2, 0, 0], sizes = [1, 16, 8], strides = [1, 1, 1]} : vector<4x16x8xf32> to vector<1x16x8xf32>
    %189 = vector.shape_cast %188 : vector<1x16x8xf32> to vector<16x8xf32>
    %190 = vector.extract_strided_slice %183 {offsets = [3, 0, 0], sizes = [1, 16, 8], strides = [1, 1, 1]} : vector<4x16x8xf32> to vector<1x16x8xf32>
    %191 = vector.shape_cast %190 : vector<1x16x8xf32> to vector<16x8xf32>
    %192 = tpu.concatenate %185, %187, %189, %191 in 1 : vector<16x8xf32>, vector<16x8xf32>, vector<16x8xf32>, vector<16x8xf32> -> vector<16x32xf32>
    %cst_55 = arith.constant dense<0.000000e+00> : vector<16x32xf32>
    %193 = tpu.matmul %192, %131, %cst_55 {dimension_numbers = #tpu.dot_dimension_numbers<[1], [0], [0], [1], [0, 0, 1, 1], [], []>} : vector<16x32xf32>, vector<32x32xf32>, vector<16x32xf32> -> vector<16x32xf32>
    %194 = vector.broadcast %132 : vector<1x32xf32> to vector<16x32xf32>
    %195 = arith.addf %193, %194 : vector<16x32xf32>
    %196 = arith.addf %110, %195 : vector<16x32xf32>
    %cst_56 = arith.constant dense<0.000000e+00> : vector<16xf32>
    %197 = vector.multi_reduction <add>, %196, %cst_56 [1] : vector<16x32xf32> to vector<16xf32>
    %198 = vector.shape_cast %197 : vector<16xf32> to vector<16x1xf32>
    %cst_57 = arith.constant 3.200000e+01 : f32
    %199 = vector.broadcast %cst_57 : f32 to vector<16x1xf32>
    %200 = arith.divf %198, %199 : vector<16x1xf32>
    %201 = vector.broadcast %200 : vector<16x1xf32> to vector<16x32xf32>
    %202 = arith.subf %196, %201 : vector<16x32xf32>
    %203 = vector.broadcast %200 : vector<16x1xf32> to vector<16x32xf32>
    %204 = arith.subf %196, %203 : vector<16x32xf32>
    %205 = arith.mulf %202, %204 : vector<16x32xf32>
    %cst_58 = arith.constant dense<0.000000e+00> : vector<16xf32>
    %206 = vector.multi_reduction <add>, %205, %cst_58 [1] : vector<16x32xf32> to vector<16xf32>
    %207 = vector.shape_cast %206 : vector<16xf32> to vector<16x1xf32>
    %cst_59 = arith.constant 3.200000e+01 : f32
    %208 = vector.broadcast %cst_59 : f32 to vector<16x1xf32>
    %209 = arith.divf %207, %208 : vector<16x1xf32>
    %210 = vector.broadcast %200 : vector<16x1xf32> to vector<16x32xf32>
    %211 = arith.subf %196, %210 : vector<16x32xf32>
    %cst_60 = arith.constant 9.99999974E-6 : f32
    %212 = vector.broadcast %cst_60 : f32 to vector<16x1xf32>
    %213 = arith.addf %209, %212 : vector<16x1xf32>
    %214 = math.rsqrt %213 : vector<16x1xf32>
    %215 = vector.broadcast %214 : vector<16x1xf32> to vector<16x32xf32>
    %216 = arith.mulf %211, %215 : vector<16x32xf32>
    %c10 = arith.constant 10 : index
    %c0_61 = arith.constant 0 : index
    %217 = vector.load %arg6[%c10, %c0_61] : memref<16x64xf32, #tpu.memory_space<vmem>>, vector<1x32xf32>
    %218 = vector.broadcast %217 : vector<1x32xf32> to vector<16x32xf32>
    %219 = arith.mulf %216, %218 : vector<16x32xf32>
    %c11 = arith.constant 11 : index
    %c0_62 = arith.constant 0 : index
    %220 = vector.load %arg6[%c11, %c0_62] : memref<16x64xf32, #tpu.memory_space<vmem>>, vector<1x32xf32>
    %221 = vector.broadcast %220 : vector<1x32xf32> to vector<16x32xf32>
    %222 = arith.addf %219, %221 : vector<16x32xf32>
    %c1_63 = arith.constant 1 : index
    %c0_64 = arith.constant 0 : index
    %c0_65 = arith.constant 0 : index
    %223 = vector.load %arg4[%c1_63, %c0_64, %c0_65] : memref<2x32x64xf32, #tpu.memory_space<vmem>>, vector<1x32x64xf32>
    %224 = vector.shape_cast %223 : vector<1x32x64xf32> to vector<32x64xf32>
    %cst_66 = arith.constant dense<0.000000e+00> : vector<16x64xf32>
    %225 = tpu.matmul %222, %224, %cst_66 {dimension_numbers = #tpu.dot_dimension_numbers<[1], [0], [0], [1], [0, 0, 1, 1], [], []>} : vector<16x32xf32>, vector<32x64xf32>, vector<16x64xf32> -> vector<16x64xf32>
    %c15 = arith.constant 15 : index
    %c0_67 = arith.constant 0 : index
    %226 = vector.load %arg6[%c15, %c0_67] : memref<16x64xf32, #tpu.memory_space<vmem>>, vector<1x64xf32>
    %227 = vector.broadcast %226 : vector<1x64xf32> to vector<16x64xf32>
    %228 = arith.addf %225, %227 : vector<16x64xf32>
    %cst_68 = arith.constant 0.00999999977 : f32
    %229 = vector.broadcast %cst_68 : f32 to vector<16x64xf32>
    %230 = arith.mulf %229, %228 : vector<16x64xf32>
    %231 = arith.maximumf %228, %230 : vector<16x64xf32>
    %c0_69 = arith.constant 0 : index
    %c0_70 = arith.constant 0 : index
    %232 = vector.load %arg5[%c0_69, %c0_70] : memref<64x32xf32, #tpu.memory_space<vmem>>, vector<64x32xf32>
    %cst_71 = arith.constant dense<0.000000e+00> : vector<16x32xf32>
    %233 = tpu.matmul %231, %232, %cst_71 {dimension_numbers = #tpu.dot_dimension_numbers<[1], [0], [0], [1], [0, 0, 1, 1], [], []>} : vector<16x64xf32>, vector<64x32xf32>, vector<16x32xf32> -> vector<16x32xf32>
    %c14 = arith.constant 14 : index
    %c0_72 = arith.constant 0 : index
    %234 = vector.load %arg6[%c14, %c0_72] : memref<16x64xf32, #tpu.memory_space<vmem>>, vector<1x32xf32>
    %235 = vector.broadcast %234 : vector<1x32xf32> to vector<16x32xf32>
    %236 = arith.addf %233, %235 : vector<16x32xf32>
    %237 = arith.addf %222, %236 : vector<16x32xf32>
    %cst_73 = arith.constant dense<0.000000e+00> : vector<16xf32>
    %238 = vector.multi_reduction <add>, %237, %cst_73 [1] : vector<16x32xf32> to vector<16xf32>
    %239 = vector.shape_cast %238 : vector<16xf32> to vector<16x1xf32>
    %cst_74 = arith.constant 3.200000e+01 : f32
    %240 = vector.broadcast %cst_74 : f32 to vector<16x1xf32>
    %241 = arith.divf %239, %240 : vector<16x1xf32>
    %242 = vector.broadcast %241 : vector<16x1xf32> to vector<16x32xf32>
    %243 = arith.subf %237, %242 : vector<16x32xf32>
    %244 = vector.broadcast %241 : vector<16x1xf32> to vector<16x32xf32>
    %245 = arith.subf %237, %244 : vector<16x32xf32>
    %246 = arith.mulf %243, %245 : vector<16x32xf32>
    %cst_75 = arith.constant dense<0.000000e+00> : vector<16xf32>
    %247 = vector.multi_reduction <add>, %246, %cst_75 [1] : vector<16x32xf32> to vector<16xf32>
    %248 = vector.shape_cast %247 : vector<16xf32> to vector<16x1xf32>
    %cst_76 = arith.constant 3.200000e+01 : f32
    %249 = vector.broadcast %cst_76 : f32 to vector<16x1xf32>
    %250 = arith.divf %248, %249 : vector<16x1xf32>
    %251 = vector.broadcast %241 : vector<16x1xf32> to vector<16x32xf32>
    %252 = arith.subf %237, %251 : vector<16x32xf32>
    %cst_77 = arith.constant 9.99999974E-6 : f32
    %253 = vector.broadcast %cst_77 : f32 to vector<16x1xf32>
    %254 = arith.addf %250, %253 : vector<16x1xf32>
    %255 = math.rsqrt %254 : vector<16x1xf32>
    %256 = vector.broadcast %255 : vector<16x1xf32> to vector<16x32xf32>
    %257 = arith.mulf %252, %256 : vector<16x32xf32>
    %c12 = arith.constant 12 : index
    %c0_78 = arith.constant 0 : index
    %258 = vector.load %arg6[%c12, %c0_78] : memref<16x64xf32, #tpu.memory_space<vmem>>, vector<1x32xf32>
    %259 = vector.broadcast %258 : vector<1x32xf32> to vector<16x32xf32>
    %260 = arith.mulf %257, %259 : vector<16x32xf32>
    %c13 = arith.constant 13 : index
    %c0_79 = arith.constant 0 : index
    %261 = vector.load %arg6[%c13, %c0_79] : memref<16x64xf32, #tpu.memory_space<vmem>>, vector<1x32xf32>
    %262 = vector.broadcast %261 : vector<1x32xf32> to vector<16x32xf32>
    %263 = arith.addf %260, %262 : vector<16x32xf32>
    %c0_80 = arith.constant 0 : index
    %c0_81 = arith.constant 0 : index
    %264 = vector.load %arg7[%c0_80, %c0_81] : memref<16x32xf32, #tpu.memory_space<vmem>>, vector<16x32xf32>
    tpu.vector_store %arg7[%c0_80, %c0_81], %263 {strides = array<i32>} : memref<16x32xf32, #tpu.memory_space<vmem>>, vector<16x32xf32>,
    return
  }
}

</mosaic_0001>

<llo_original>
// kernel: decoder_layer.1
$region0: #{decoder_layer.1}
  #allocation0 [shape = 'u32[]', space=smem, size = 0x4, offset = 0x4, fixed_abs, tag = 'smem constant byte address 0x4 - core index']
  #allocation1 [shape = 'u32[144,128]{1,0:T(1,128)}', space=vmem, size = 0x12000, scoped, tag = 'internal scratch']
  %s0 = inlined_call_operand.vmem [shape: f32[32,32], index: 0, kind: input, shape index: {}]
  %s1 = inlined_call_operand.vmem [shape: f32[2,2,8,8], index: 1, kind: input, shape index: {}]
  %s2 = inlined_call_operand.vmem [shape: f32[32,96], index: 2, kind: input, shape index: {}]
  %s3 = inlined_call_operand.vmem [shape: f32[3,32,32], index: 3, kind: input, shape index: {}]
  %s4 = inlined_call_operand.vmem [shape: f32[2,32,64], index: 4, kind: input, shape index: {}]
  %s5 = inlined_call_operand.vmem [shape: f32[64,32], index: 5, kind: input, shape index: {}]
  %s6 = inlined_call_operand.vmem [shape: f32[16,64], index: 6, kind: input, shape index: {}]
  %s7 = inlined_call_operand.hbm [shape: f32[16,32], index: 7, kind: output, shape index: {}]
  %s8 = sld [smem:[#allocation0]]
  $region38: #{decoder_layer.1} parent=0
    _
  %s10 = ssub.s32 1, %s8
  %s11 = scalar_select 0, %s10, %s8
  $region1: #{decoder_layer.1} parent=0
    #allocation2 [shape = 'u8[8192]{0}', space=vmem, size = 0x2000, scoped, tag = 'output window, operand 0, single buffered']
    #allocation3 [shape = 's32[1]{0}', space=sflag, size = 0x4, scoped, tag = 'scoped memory for decoder_layer.1']
    %12 = vsyncpa [#allocation3], 0
    // Predicated region
    $region2: #{decoder_layer.1} parent=1 // pred_check
      _
    $region3: #{decoder_layer.1} parent=1 // pred_check_branch
      %14 = sbr.rel (0) target = $region5
    $region4: #{decoder_layer.1} parent=1 // pred_region
      _
    $region5: #{decoder_layer.1} parent=1 // pred_fallthru
      _
    // Predicated region
    $region6: #{decoder_layer.1} parent=1 // pred_check
      _
    $region7: #{decoder_layer.1} parent=1 // pred_check_branch
      %16 = sbr.rel (0) target = $region9
    $region8: #{decoder_layer.1} parent=1 // pred_region
      _
    $region9: #{decoder_layer.1} parent=1 // pred_fallthru
      _
    // Predicated region
    $region10: #{decoder_layer.1} parent=1 // pred_check
      _
    $region11: #{decoder_layer.1} parent=1 // pred_check_branch
      %18 = sbr.rel (0) target = $region13
    $region12: #{decoder_layer.1} parent=1 // pred_region
      _
    $region13: #{decoder_layer.1} parent=1 // pred_fallthru
      _
    // Predicated region
    $region14: #{decoder_layer.1} parent=1 // pred_check
      _
    $region15: #{decoder_layer.1} parent=1 // pred_check_branch
      %20 = sbr.rel (0) target = $region17
    $region16: #{decoder_layer.1} parent=1 // pred_region
      _
    $region17: #{decoder_layer.1} parent=1 // pred_fallthru
      _
    // Predicated region
    $region18: #{decoder_layer.1} parent=1 // pred_check
      _
    $region19: #{decoder_layer.1} parent=1 // pred_check_branch
      %22 = sbr.rel (0) target = $region21
    $region20: #{decoder_layer.1} parent=1 // pred_region
      _
    $region21: #{decoder_layer.1} parent=1 // pred_fallthru
      _
    // Predicated region
    $region22: #{decoder_layer.1} parent=1 // pred_check
      _
    $region23: #{decoder_layer.1} parent=1 // pred_check_branch
      %24 = sbr.rel (0) target = $region25
    $region24: #{decoder_layer.1} parent=1 // pred_region
      _
    $region25: #{decoder_layer.1} parent=1 // pred_fallthru
      _
    // Predicated region
    $region26: #{decoder_layer.1} parent=1 // pred_check
      _
    $region27: #{decoder_layer.1} parent=1 // pred_check_branch
      %26 = sbr.rel (0) target = $region29
    $region28: #{decoder_layer.1} parent=1 // pred_region
      _
    $region29: #{decoder_layer.1} parent=1 // pred_fallthru
      _
    %v27 = vld [vmem:[%s0] sm:$0xff]
    %v28 = vld [vmem:[%s0 + $0x8] sm:$0xff]
    %v29 = vld [vmem:[%s0 + $0x10] sm:$0xff]
    %v30 = vld [vmem:[%s0 + $0x18] sm:$0xff]
    %v31 = vld [vmem:[%s2] sm:$0xff]
    %v32 = vld [vmem:[%s2 + $0x8] sm:$0xff]
    %v33 = vld [vmem:[%s2 + $0x10] sm:$0xff]
    %v34 = vld [vmem:[%s2 + $0x18] sm:$0xff]
    %vm35 = vcmask 261120
    %v37 = vsel %vm35, %v27, 0
    %v40 = vsel %vm35, %v28, 0
    %42 = vmatprep.subr.mxu0 0.0
    %43 = vmatpush1.msra.mxu0 %v31
    %44 = vmatprep.subr.mxu0 0.0
    %45 = vmatpush1.msra.mxu0 %v32
    %46 = vmatprep.subr.mxu0 0.0
    %47 = vmatpush1.msra.mxu0 %v33
    %48 = vmatprep.subr.mxu0 0.0
    %49 = vmatpush1.msra.mxu0 %v34
    %50 = vmatprep.subr.mxu0 0.0
    %51 = vmatpush1.msra.mxu0 0.0
    %52 = vmatprep.subr.mxu0 0.0
    %53 = vmatpush1.msra.mxu0 0.0
    %54 = vmatprep.subr.mxu0 0.0
    %55 = vmatpush1.msra.mxu0 0.0
    %56 = vmatprep.subr.mxu0 0.0
    %57 = vmatpush1.msra.mxu0 0.0
    %58 = vmatprep.subr.mxu0 0.0
    %59 = vmatpush1.msra.mxu0 0.0
    %60 = vmatprep.subr.mxu0 0.0
    %61 = vmatpush1.msra.mxu0 0.0
    %62 = vmatprep.subr.mxu0 0.0
    %63 = vmatpush1.msra.mxu0 0.0
    %64 = vmatprep.subr.mxu0 0.0
    %65 = vmatpush1.msra.mxu0 0.0
    %66 = vmatprep.subr.mxu0 0.0
    %67 = vmatpush1.msra.mxu0 0.0
    %68 = vmatprep.subr.mxu0 0.0
    %69 = vmatpush1.msra.mxu0 0.0
    %70 = vmatprep.subr.mxu0 0.0
    %71 = vmatpush1.msra.mxu0 0.0
    %72 = vmatprep.subr.mxu0 0.0
    %73 = vmatpush1.msra.mxu0 0.0
    %74 = vmatprep.subr.mxu0 0.0
    %75 = vmatpush1.msra.mxu0 0.0
    %76 = vmatprep.subr.mxu0 0.0
    %77 = vmatpush1.msra.mxu0 0.0
    %78 = vmatprep.subr.mxu0 0.0
    %79 = vmatpush1.msra.mxu0 0.0
    %80 = vmatprep.subr.mxu0 0.0
    %81 = vmatpush1.msra.mxu0 0.0
    %82 = vmatprep.subr.mxu0 0.0
    %83 = vmatpush1.msra.mxu0 0.0
    %84 = vmatprep.subr.mxu0 0.0
    %85 = vmatpush1.msra.mxu0 0.0
    %86 = vmatprep.subr.mxu0 0.0
    %87 = vmatpush1.msra.mxu0 0.0
    %88 = vmatprep.subr.mxu0 0.0
    %89 = vmatpush1.msra.mxu0 0.0
    %90 = vmatprep.subr.mxu0 0.0
    %91 = vmatpush1.msra.mxu0 0.0
    %92 = vmatprep.subr.mxu0 0.0
    %93 = vmatpush1.msra.mxu0 0.0
    %94 = vmatprep.subr.mxu0 0.0
    %95 = vmatpush1.msra.mxu0 0.0
    %96 = vmatprep.subr.mxu0 0.0
    %97 = vmatpush1.msra.mxu0 0.0
    %98 = vmatprep.subr.mxu0 0.0
    %99 = vmatpush1.msra.mxu0 0.0
    %100 = vmatprep.subr.mxu0 0.0
    %101 = vmatpush1.msra.mxu0 0.0
    %102 = vmatprep.subr.mxu0 0.0
    %103 = vmatpush1.msra.mxu0 0.0
    %104 = vmatprep.subr.mxu0 0.0
    %105 = vmatpush1.msra.mxu0 0.0
    %106 = vmatprep.mubr.f32.mxu0 0.0
    %107 = vmatmul.mubr.f32.gmra.mrb[0].mxu0 %v37
    %v108 = vpop.f32.mrb[0].mxu0
    %v109 = vadd.f32 0.0, %v108
    %v110 = vpop.f32.mrb[0].mxu0
    %111 = vmatprep.mubr.f32.mxu0 0.0
    %112 = vmatmul.mubr.f32.gmra.mrb[0].mxu0 %v40
    %v113 = vpop.f32.mrb[0].mxu0
    %v114 = vadd.f32 0.0, %v113
    %v115 = vpop.f32.mrb[0].mxu0
    %116 = vdwg.mxu0
    %v117 = vld [vmem:[%s6] sm:$0x1]
    %v118 = vlaneseq
    %v119 = vshrl.u32 %v118, 7
    %v120 = vsub.s32 0, %v119
    %v121 = vrot.slane %v117, %v120
    %v122 = vadd.f32 %v109, %v121
    %v123 = vadd.f32 %v114, %v121
    %v124 = vld [vmem:[%s6 + $0x1] sm:$0x1]
    %v125 = vlaneseq
    %v126 = vshrl.u32 %v125, 7
    %v127 = vsub.s32 0, %v126
    %v128 = vrot.slane %v124, %v127
    %130 = vrot.lane.b32.xlu0 %v128, 32
    %v131 = vpop.permute.xlu0 %130
    %v133 = vadd.f32 %v109, %v131
    %v134 = vadd.f32 %v114, %v131
    %v135 = vld [vmem:[%s6 + $0x2] sm:$0x1]
    %v136 = vlaneseq
    %v137 = vshrl.u32 %v136, 7
    %v138 = vsub.s32 0, %v137
    %v139 = vrot.slane %v135, %v138
    %141 = vrot.lane.b32.xlu0 %v139, 64
    %v142 = vpop.permute.xlu0 %141
    %v144 = vadd.f32 %v109, %v142
    %v145 = vadd.f32 %v114, %v142
    %v146 = vld [vmem:[%s1] sm:$0xff]
    %v147 = vld [vmem:[%s1 + $0x8] sm:$0xff]
    %v148 = vld [vmem:[%s3] sm:$0xff]
    %v149 = vld [vmem:[%s3 + $0x8] sm:$0xff]
    %v150 = vld [vmem:[%s3 + $0x10] sm:$0xff]
    %v151 = vld [vmem:[%s3 + $0x18] sm:$0xff]
    %v152 = vld [vmem:[%s6 + $0x3] sm:$0x1]
    %155 = vrot.lane.b32.xlu0 %v122, 120
    %v156 = vpop.permute.xlu0 %155
    %157 = vrot.lane.b32.xlu0 %v123, 120
    %v158 = vpop.permute.xlu0 %157
    %159 = vrot.lane.b32.xlu0 %v122, 112
    %v160 = vpop.permute.xlu0 %159
    %161 = vrot.lane.b32.xlu0 %v123, 112
    %v162 = vpop.permute.xlu0 %161
    %163 = vrot.lane.b32.xlu0 %v122, 104
    %v164 = vpop.permute.xlu0 %163
    %165 = vrot.lane.b32.xlu0 %v123, 104
    %v166 = vpop.permute.xlu0 %165
    %169 = vrot.lane.b32.xlu0 %v133, 120
    %v170 = vpop.permute.xlu0 %169
    %171 = vrot.lane.b32.xlu0 %v134, 120
    %v172 = vpop.permute.xlu0 %171
    %173 = vrot.lane.b32.xlu0 %v133, 112
    %v174 = vpop.permute.xlu0 %173
    %175 = vrot.lane.b32.xlu0 %v134, 112
    %v176 = vpop.permute.xlu0 %175
    %177 = vrot.lane.b32.xlu0 %v133, 104
    %v178 = vpop.permute.xlu0 %177
    %179 = vrot.lane.b32.xlu0 %v134, 104
    %v180 = vpop.permute.xlu0 %179
    %183 = vrot.lane.b32.xlu0 %v144, 120
    %v184 = vpop.permute.xlu0 %183
    %185 = vrot.lane.b32.xlu0 %v145, 120
    %v186 = vpop.permute.xlu0 %185
    %187 = vrot.lane.b32.xlu0 %v144, 112
    %v188 = vpop.permute.xlu0 %187
    %189 = vrot.lane.b32.xlu0 %v145, 112
    %v190 = vpop.permute.xlu0 %189
    %191 = vrot.lane.b32.xlu0 %v144, 104
    %v192 = vpop.permute.xlu0 %191
    %193 = vrot.lane.b32.xlu0 %v145, 104
    %v194 = vpop.permute.xlu0 %193
    %195 = vrot.lane.b32.xlu0 %v133, 96
    %v196 = vpop.permute.xlu0 %195
    %vm197 = vcmask 64512
    %v198 = vsel %vm197, %v122, 0
    %v200 = vsel %vm197, %v196, 0
    %202 = vmatprep.subr.mxu0 0.0
    %203 = vmatpush1.xpose.msra.mxu0 %v200
    %204 = vmatprep.subr.mxu0 0.0
    %205 = vmatpush1.xpose.msra.mxu0 0.0
    %206 = vmatprep.subr.mxu0 0.0
    %207 = vmatpush1.xpose.msra.mxu0 0.0
    %208 = vmatprep.subr.mxu0 0.0
    %209 = vmatpush1.xpose.msra.mxu0 0.0
    %210 = vmatprep.subr.mxu0 0.0
    %211 = vmatpush1.xpose.msra.mxu0 0.0
    %212 = vmatprep.subr.mxu0 0.0
    %213 = vmatpush1.xpose.msra.mxu0 0.0
    %214 = vmatprep.subr.mxu0 0.0
    %215 = vmatpush1.xpose.msra.mxu0 0.0
    %216 = vmatprep.subr.mxu0 0.0
    %217 = vmatpush1.xpose.msra.mxu0 0.0
    %218 = vmatprep.subr.mxu0 0.0
    %219 = vmatpush1.xpose.msra.mxu0 0.0
    %220 = vmatprep.subr.mxu0 0.0
    %221 = vmatpush1.xpose.msra.mxu0 0.0
    %222 = vmatprep.subr.mxu0 0.0
    %223 = vmatpush1.xpose.msra.mxu0 0.0
    %224 = vmatprep.subr.mxu0 0.0
    %225 = vmatpush1.xpose.msra.mxu0 0.0
    %226 = vmatprep.subr.mxu0 0.0
    %227 = vmatpush1.xpose.msra.mxu0 0.0
    %228 = vmatprep.subr.mxu0 0.0
    %229 = vmatpush1.xpose.msra.mxu0 0.0
    %230 = vmatprep.subr.mxu0 0.0
    %231 = vmatpush1.xpose.msra.mxu0 0.0
    %232 = vmatprep.subr.mxu0 0.0
    %233 = vmatpush1.xpose.msra.mxu0 0.0
    %234 = vmatprep.subr.mxu0 0.0
    %235 = vmatpush1.xpose.msra.mxu0 0.0
    %236 = vmatprep.subr.mxu0 0.0
    %237 = vmatpush1.xpose.msra.mxu0 0.0
    %238 = vmatprep.subr.mxu0 0.0
    %239 = vmatpush1.xpose.msra.mxu0 0.0
    %240 = vmatprep.subr.mxu0 0.0
    %241 = vmatpush1.xpose.msra.mxu0 0.0
    %242 = vmatprep.subr.mxu0 0.0
    %243 = vmatpush1.xpose.msra.mxu0 0.0
    %244 = vmatprep.subr.mxu0 0.0
    %245 = vmatpush1.xpose.msra.mxu0 0.0
    %246 = vmatprep.subr.mxu0 0.0
    %247 = vmatpush1.xpose.msra.mxu0 0.0
    %248 = vmatprep.subr.mxu0 0.0
    %249 = vmatpush1.xpose.msra.mxu0 0.0
    %250 = vmatprep.subr.mxu0 0.0
    %251 = vmatpush1.xpose.msra.mxu0 0.0
    %252 = vmatprep.subr.mxu0 0.0
    %253 = vmatpush1.xpose.msra.mxu0 0.0
    %254 = vmatprep.subr.mxu0 0.0
    %255 = vmatpush1.xpose.msra.mxu0 0.0
    %256 = vmatprep.subr.mxu0 0.0
    %257 = vmatpush1.xpose.msra.mxu0 0.0
    %258 = vmatprep.subr.mxu0 0.0
    %259 = vmatpush1.xpose.msra.mxu0 0.0
    %260 = vmatprep.subr.mxu0 0.0
    %261 = vmatpush1.xpose.msra.mxu0 0.0
    %262 = vmatprep.subr.mxu0 0.0
    %263 = vmatpush1.xpose.msra.mxu0 0.0
    %264 = vmatprep.subr.mxu0 0.0
    %265 = vmatpush1.xpose.msra.mxu0 0.0
    %266 = vmatprep.mubr.f32.mxu0 0.0
    %267 = vmatmul.mubr.f32.gmra.mrb[0].mxu0 %v198
    %v268 = vpop.f32.mrb[0].mxu0
    %v269 = vadd.f32 0.0, %v268
    %v270 = vpop.f32.mrb[0].mxu0
    %271 = vdwg.mxu0
    %272 = vrot.lane.b32.xlu0 %v134, 96
    %v273 = vpop.permute.xlu0 %272
    %v274 = vsel %vm197, %v123, 0
    %v276 = vsel %vm197, %v273, 0
    %278 = vmatprep.subr.mxu0 0.0
    %279 = vmatpush1.xpose.msra.mxu0 %v276
    %280 = vmatprep.subr.mxu0 0.0
    %281 = vmatpush1.xpose.msra.mxu0 0.0
    %282 = vmatprep.subr.mxu0 0.0
    %283 = vmatpush1.xpose.msra.mxu0 0.0
    %284 = vmatprep.subr.mxu0 0.0
    %285 = vmatpush1.xpose.msra.mxu0 0.0
    %286 = vmatprep.subr.mxu0 0.0
    %287 = vmatpush1.xpose.msra.mxu0 0.0
    %288 = vmatprep.subr.mxu0 0.0
    %289 = vmatpush1.xpose.msra.mxu0 0.0
    %290 = vmatprep.subr.mxu0 0.0
    %291 = vmatpush1.xpose.msra.mxu0 0.0
    %292 = vmatprep.subr.mxu0 0.0
    %293 = vmatpush1.xpose.msra.mxu0 0.0
    %294 = vmatprep.subr.mxu0 0.0
    %295 = vmatpush1.xpose.msra.mxu0 0.0
    %296 = vmatprep.subr.mxu0 0.0
    %297 = vmatpush1.xpose.msra.mxu0 0.0
    %298 = vmatprep.subr.mxu0 0.0
    %299 = vmatpush1.xpose.msra.mxu0 0.0
    %300 = vmatprep.subr.mxu0 0.0
    %301 = vmatpush1.xpose.msra.mxu0 0.0
    %302 = vmatprep.subr.mxu0 0.0
    %303 = vmatpush1.xpose.msra.mxu0 0.0
    %304 = vmatprep.subr.mxu0 0.0
    %305 = vmatpush1.xpose.msra.mxu0 0.0
    %306 = vmatprep.subr.mxu0 0.0
    %307 = vmatpush1.xpose.msra.mxu0 0.0
    %308 = vmatprep.subr.mxu0 0.0
    %309 = vmatpush1.xpose.msra.mxu0 0.0
    %310 = vmatprep.subr.mxu0 0.0
    %311 = vmatpush1.xpose.msra.mxu0 0.0
    %312 = vmatprep.subr.mxu0 0.0
    %313 = vmatpush1.xpose.msra.mxu0 0.0
    %314 = vmatprep.subr.mxu0 0.0
    %315 = vmatpush1.xpose.msra.mxu0 0.0
    %316 = vmatprep.subr.mxu0 0.0
    %317 = vmatpush1.xpose.msra.mxu0 0.0
    %318 = vmatprep.subr.mxu0 0.0
    %319 = vmatpush1.xpose.msra.mxu0 0.0
    %320 = vmatprep.subr.mxu0 0.0
    %321 = vmatpush1.xpose.msra.mxu0 0.0
    %322 = vmatprep.subr.mxu0 0.0
    %323 = vmatpush1.xpose.msra.mxu0 0.0
    %324 = vmatprep.subr.mxu0 0.0
    %325 = vmatpush1.xpose.msra.mxu0 0.0
    %326 = vmatprep.subr.mxu0 0.0
    %327 = vmatpush1.xpose.msra.mxu0 0.0
    %328 = vmatprep.subr.mxu0 0.0
    %329 = vmatpush1.xpose.msra.mxu0 0.0
    %330 = vmatprep.subr.mxu0 0.0
    %331 = vmatpush1.xpose.msra.mxu0 0.0
    %332 = vmatprep.subr.mxu0 0.0
    %333 = vmatpush1.xpose.msra.mxu0 0.0
    %334 = vmatprep.subr.mxu0 0.0
    %335 = vmatpush1.xpose.msra.mxu0 0.0
    %336 = vmatprep.subr.mxu0 0.0
    %337 = vmatpush1.xpose.msra.mxu0 0.0
    %338 = vmatprep.subr.mxu0 0.0
    %339 = vmatpush1.xpose.msra.mxu0 0.0
    %340 = vmatprep.subr.mxu0 0.0
    %341 = vmatpush1.xpose.msra.mxu0 0.0
    %342 = vmatprep.mubr.f32.mxu0 0.0
    %343 = vmatmul.mubr.f32.gmra.mrb[0].mxu0 %v274
    %v344 = vpop.f32.mrb[0].mxu0
    %v345 = vadd.f32 0.0, %v344
    %v346 = vpop.f32.mrb[0].mxu0
    %347 = vdwg.mxu0
    %348 = vrot.lane.b32.xlu0 %v170, 96
    %v349 = vpop.permute.xlu0 %348
    %v350 = vsel %vm197, %v156, 0
    %v352 = vsel %vm197, %v349, 0
    %354 = vmatprep.subr.mxu0 0.0
    %355 = vmatpush1.xpose.msra.mxu0 %v352
    %356 = vmatprep.subr.mxu0 0.0
    %357 = vmatpush1.xpose.msra.mxu0 0.0
    %358 = vmatprep.subr.mxu0 0.0
    %359 = vmatpush1.xpose.msra.mxu0 0.0
    %360 = vmatprep.subr.mxu0 0.0
    %361 = vmatpush1.xpose.msra.mxu0 0.0
    %362 = vmatprep.subr.mxu0 0.0
    %363 = vmatpush1.xpose.msra.mxu0 0.0
    %364 = vmatprep.subr.mxu0 0.0
    %365 = vmatpush1.xpose.msra.mxu0 0.0
    %366 = vmatprep.subr.mxu0 0.0
    %367 = vmatpush1.xpose.msra.mxu0 0.0
    %368 = vmatprep.subr.mxu0 0.0
    %369 = vmatpush1.xpose.msra.mxu0 0.0
    %370 = vmatprep.subr.mxu0 0.0
    %371 = vmatpush1.xpose.msra.mxu0 0.0
    %372 = vmatprep.subr.mxu0 0.0
    %373 = vmatpush1.xpose.msra.mxu0 0.0
    %374 = vmatprep.subr.mxu0 0.0
    %375 = vmatpush1.xpose.msra.mxu0 0.0
    %376 = vmatprep.subr.mxu0 0.0
    %377 = vmatpush1.xpose.msra.mxu0 0.0
    %378 = vmatprep.subr.mxu0 0.0
    %379 = vmatpush1.xpose.msra.mxu0 0.0
    %380 = vmatprep.subr.mxu0 0.0
    %381 = vmatpush1.xpose.msra.mxu0 0.0
    %382 = vmatprep.subr.mxu0 0.0
    %383 = vmatpush1.xpose.msra.mxu0 0.0
    %384 = vmatprep.subr.mxu0 0.0
    %385 = vmatpush1.xpose.msra.mxu0 0.0
    %386 = vmatprep.subr.mxu0 0.0
    %387 = vmatpush1.xpose.msra.mxu0 0.0
    %388 = vmatprep.subr.mxu0 0.0
    %389 = vmatpush1.xpose.msra.mxu0 0.0
    %390 = vmatprep.subr.mxu0 0.0
    %391 = vmatpush1.xpose.msra.mxu0 0.0
    %392 = vmatprep.subr.mxu0 0.0
    %393 = vmatpush1.xpose.msra.mxu0 0.0
    %394 = vmatprep.subr.mxu0 0.0
    %395 = vmatpush1.xpose.msra.mxu0 0.0
    %396 = vmatprep.subr.mxu0 0.0
    %397 = vmatpush1.xpose.msra.mxu0 0.0
    %398 = vmatprep.subr.mxu0 0.0
    %399 = vmatpush1.xpose.msra.mxu0 0.0
    %400 = vmatprep.subr.mxu0 0.0
    %401 = vmatpush1.xpose.msra.mxu0 0.0
    %402 = vmatprep.subr.mxu0 0.0
    %403 = vmatpush1.xpose.msra.mxu0 0.0
    %404 = vmatprep.subr.mxu0 0.0
    %405 = vmatpush1.xpose.msra.mxu0 0.0
    %406 = vmatprep.subr.mxu0 0.0
    %407 = vmatpush1.xpose.msra.mxu0 0.0
    %408 = vmatprep.subr.mxu0 0.0
    %409 = vmatpush1.xpose.msra.mxu0 0.0
    %410 = vmatprep.subr.mxu0 0.0
    %411 = vmatpush1.xpose.msra.mxu0 0.0
    %412 = vmatprep.subr.mxu0 0.0
    %413 = vmatpush1.xpose.msra.mxu0 0.0
    %414 = vmatprep.subr.mxu0 0.0
    %415 = vmatpush1.xpose.msra.mxu0 0.0
    %416 = vmatprep.subr.mxu0 0.0
    %417 = vmatpush1.xpose.msra.mxu0 0.0
    %418 = vmatprep.mubr.f32.mxu0 0.0
    %419 = vmatmul.mubr.f32.gmra.mrb[0].mxu0 %v350
    %v420 = vpop.f32.mrb[0].mxu0
    %v421 = vadd.f32 0.0, %v420
    %v422 = vpop.f32.mrb[0].mxu0
    %423 = vdwg.mxu0
    %424 = vrot.lane.b32.xlu0 %v172, 96
    %v425 = vpop.permute.xlu0 %424
    %v426 = vsel %vm197, %v158, 0
    %v428 = vsel %vm197, %v425, 0
    %430 = vmatprep.subr.mxu0 0.0
    %431 = vmatpush1.xpose.msra.mxu0 %v428
    %432 = vmatprep.subr.mxu0 0.0
    %433 = vmatpush1.xpose.msra.mxu0 0.0
    %434 = vmatprep.subr.mxu0 0.0
    %435 = vmatpush1.xpose.msra.mxu0 0.0
    %436 = vmatprep.subr.mxu0 0.0
    %437 = vmatpush1.xpose.msra.mxu0 0.0
    %438 = vmatprep.subr.mxu0 0.0
    %439 = vmatpush1.xpose.msra.mxu0 0.0
    %440 = vmatprep.subr.mxu0 0.0
    %441 = vmatpush1.xpose.msra.mxu0 0.0
    %442 = vmatprep.subr.mxu0 0.0
    %443 = vmatpush1.xpose.msra.mxu0 0.0
    %444 = vmatprep.subr.mxu0 0.0
    %445 = vmatpush1.xpose.msra.mxu0 0.0
    %446 = vmatprep.subr.mxu0 0.0
    %447 = vmatpush1.xpose.msra.mxu0 0.0
    %448 = vmatprep.subr.mxu0 0.0
    %449 = vmatpush1.xpose.msra.mxu0 0.0
    %450 = vmatprep.subr.mxu0 0.0
    %451 = vmatpush1.xpose.msra.mxu0 0.0
    %452 = vmatprep.subr.mxu0 0.0
    %453 = vmatpush1.xpose.msra.mxu0 0.0
    %454 = vmatprep.subr.mxu0 0.0
    %455 = vmatpush1.xpose.msra.mxu0 0.0
    %456 = vmatprep.subr.mxu0 0.0
    %457 = vmatpush1.xpose.msra.mxu0 0.0
    %458 = vmatprep.subr.mxu0 0.0
    %459 = vmatpush1.xpose.msra.mxu0 0.0
    %460 = vmatprep.subr.mxu0 0.0
    %461 = vmatpush1.xpose.msra.mxu0 0.0
    %462 = vmatprep.subr.mxu0 0.0
    %463 = vmatpush1.xpose.msra.mxu0 0.0
    %464 = vmatprep.subr.mxu0 0.0
    %465 = vmatpush1.xpose.msra.mxu0 0.0
    %466 = vmatprep.subr.mxu0 0.0
    %467 = vmatpush1.xpose.msra.mxu0 0.0
    %468 = vmatprep.subr.mxu0 0.0
    %469 = vmatpush1.xpose.msra.mxu0 0.0
    %470 = vmatprep.subr.mxu0 0.0
    %471 = vmatpush1.xpose.msra.mxu0 0.0
    %472 = vmatprep.subr.mxu0 0.0
    %473 = vmatpush1.xpose.msra.mxu0 0.0
    %474 = vmatprep.subr.mxu0 0.0
    %475 = vmatpush1.xpose.msra.mxu0 0.0
    %476 = vmatprep.subr.mxu0 0.0
    %477 = vmatpush1.xpose.msra.mxu0 0.0
    %478 = vmatprep.subr.mxu0 0.0
    %479 = vmatpush1.xpose.msra.mxu0 0.0
    %480 = vmatprep.subr.mxu0 0.0
    %481 = vmatpush1.xpose.msra.mxu0 0.0
    %482 = vmatprep.subr.mxu0 0.0
    %483 = vmatpush1.xpose.msra.mxu0 0.0
    %484 = vmatprep.subr.mxu0 0.0
    %485 = vmatpush1.xpose.msra.mxu0 0.0
    %486 = vmatprep.subr.mxu0 0.0
    %487 = vmatpush1.xpose.msra.mxu0 0.0
    %488 = vmatprep.subr.mxu0 0.0
    %489 = vmatpush1.xpose.msra.mxu0 0.0
    %490 = vmatprep.subr.mxu0 0.0
    %491 = vmatpush1.xpose.msra.mxu0 0.0
    %492 = vmatprep.subr.mxu0 0.0
    %493 = vmatpush1.xpose.msra.mxu0 0.0
    %494 = vmatprep.mubr.f32.mxu0 0.0
    %495 = vmatmul.mubr.f32.gmra.mrb[0].mxu0 %v426
    %v496 = vpop.f32.mrb[0].mxu0
    %v497 = vadd.f32 0.0, %v496
    %v498 = vpop.f32.mrb[0].mxu0
    %499 = vdwg.mxu0
    %500 = vrot.lane.b32.xlu0 %v174, 96
    %v501 = vpop.permute.xlu0 %500
    %v502 = vsel %vm197, %v160, 0
    %v504 = vsel %vm197, %v501, 0
    %506 = vmatprep.subr.mxu0 0.0
    %507 = vmatpush1.xpose.msra.mxu0 %v504
    %508 = vmatprep.subr.mxu0 0.0
    %509 = vmatpush1.xpose.msra.mxu0 0.0
    %510 = vmatprep.subr.mxu0 0.0
    %511 = vmatpush1.xpose.msra.mxu0 0.0
    %512 = vmatprep.subr.mxu0 0.0
    %513 = vmatpush1.xpose.msra.mxu0 0.0
    %514 = vmatprep.subr.mxu0 0.0
    %515 = vmatpush1.xpose.msra.mxu0 0.0
    %516 = vmatprep.subr.mxu0 0.0
    %517 = vmatpush1.xpose.msra.mxu0 0.0
    %518 = vmatprep.subr.mxu0 0.0
    %519 = vmatpush1.xpose.msra.mxu0 0.0
    %520 = vmatprep.subr.mxu0 0.0
    %521 = vmatpush1.xpose.msra.mxu0 0.0
    %522 = vmatprep.subr.mxu0 0.0
    %523 = vmatpush1.xpose.msra.mxu0 0.0
    %524 = vmatprep.subr.mxu0 0.0
    %525 = vmatpush1.xpose.msra.mxu0 0.0
    %526 = vmatprep.subr.mxu0 0.0
    %527 = vmatpush1.xpose.msra.mxu0 0.0
    %528 = vmatprep.subr.mxu0 0.0
    %529 = vmatpush1.xpose.msra.mxu0 0.0
    %530 = vmatprep.subr.mxu0 0.0
    %531 = vmatpush1.xpose.msra.mxu0 0.0
    %532 = vmatprep.subr.mxu0 0.0
    %533 = vmatpush1.xpose.msra.mxu0 0.0
    %534 = vmatprep.subr.mxu0 0.0
    %535 = vmatpush1.xpose.msra.mxu0 0.0
    %536 = vmatprep.subr.mxu0 0.0
    %537 = vmatpush1.xpose.msra.mxu0 0.0
    %538 = vmatprep.subr.mxu0 0.0
    %539 = vmatpush1.xpose.msra.mxu0 0.0
    %540 = vmatprep.subr.mxu0 0.0
    %541 = vmatpush1.xpose.msra.mxu0 0.0
    %542 = vmatprep.subr.mxu0 0.0
    %543 = vmatpush1.xpose.msra.mxu0 0.0
    %544 = vmatprep.subr.mxu0 0.0
    %545 = vmatpush1.xpose.msra.mxu0 0.0
    %546 = vmatprep.subr.mxu0 0.0
    %547 = vmatpush1.xpose.msra.mxu0 0.0
    %548 = vmatprep.subr.mxu0 0.0
    %549 = vmatpush1.xpose.msra.mxu0 0.0
    %550 = vmatprep.subr.mxu0 0.0
    %551 = vmatpush1.xpose.msra.mxu0 0.0
    %552 = vmatprep.subr.mxu0 0.0
    %553 = vmatpush1.xpose.msra.mxu0 0.0
    %554 = vmatprep.subr.mxu0 0.0
    %555 = vmatpush1.xpose.msra.mxu0 0.0
    %556 = vmatprep.subr.mxu0 0.0
    %557 = vmatpush1.xpose.msra.mxu0 0.0
    %558 = vmatprep.subr.mxu0 0.0
    %559 = vmatpush1.xpose.msra.mxu0 0.0
    %560 = vmatprep.subr.mxu0 0.0
    %561 = vmatpush1.xpose.msra.mxu0 0.0
    %562 = vmatprep.subr.mxu0 0.0
    %563 = vmatpush1.xpose.msra.mxu0 0.0
    %564 = vmatprep.subr.mxu0 0.0
    %565 = vmatpush1.xpose.msra.mxu0 0.0
    %566 = vmatprep.subr.mxu0 0.0
    %567 = vmatpush1.xpose.msra.mxu0 0.0
    %568 = vmatprep.subr.mxu0 0.0
    %569 = vmatpush1.xpose.msra.mxu0 0.0
    %570 = vmatprep.mubr.f32.mxu0 0.0
    %571 = vmatmul.mubr.f32.gmra.mrb[0].mxu0 %v502
    %v572 = vpop.f32.mrb[0].mxu0
    %v573 = vadd.f32 0.0, %v572
    %v574 = vpop.f32.mrb[0].mxu0
    %575 = vdwg.mxu0
    %576 = vrot.lane.b32.xlu0 %v176, 96
    %v577 = vpop.permute.xlu0 %576
    %v578 = vsel %vm197, %v162, 0
    %v580 = vsel %vm197, %v577, 0
    %582 = vmatprep.subr.mxu0 0.0
    %583 = vmatpush1.xpose.msra.mxu0 %v580
    %584 = vmatprep.subr.mxu0 0.0
    %585 = vmatpush1.xpose.msra.mxu0 0.0
    %586 = vmatprep.subr.mxu0 0.0
    %587 = vmatpush1.xpose.msra.mxu0 0.0
    %588 = vmatprep.subr.mxu0 0.0
    %589 = vmatpush1.xpose.msra.mxu0 0.0
    %590 = vmatprep.subr.mxu0 0.0
    %591 = vmatpush1.xpose.msra.mxu0 0.0
    %592 = vmatprep.subr.mxu0 0.0
    %593 = vmatpush1.xpose.msra.mxu0 0.0
    %594 = vmatprep.subr.mxu0 0.0
    %595 = vmatpush1.xpose.msra.mxu0 0.0
    %596 = vmatprep.subr.mxu0 0.0
    %597 = vmatpush1.xpose.msra.mxu0 0.0
    %598 = vmatprep.subr.mxu0 0.0
    %599 = vmatpush1.xpose.msra.mxu0 0.0
    %600 = vmatprep.subr.mxu0 0.0
    %601 = vmatpush1.xpose.msra.mxu0 0.0
    %602 = vmatprep.subr.mxu0 0.0
    %603 = vmatpush1.xpose.msra.mxu0 0.0
    %604 = vmatprep.subr.mxu0 0.0
    %605 = vmatpush1.xpose.msra.mxu0 0.0
    %606 = vmatprep.subr.mxu0 0.0
    %607 = vmatpush1.xpose.msra.mxu0 0.0
    %608 = vmatprep.subr.mxu0 0.0
    %609 = vmatpush1.xpose.msra.mxu0 0.0
    %610 = vmatprep.subr.mxu0 0.0
    %611 = vmatpush1.xpose.msra.mxu0 0.0
    %612 = vmatprep.subr.mxu0 0.0
    %613 = vmatpush1.xpose.msra.mxu0 0.0
    %614 = vmatprep.subr.mxu0 0.0
    %615 = vmatpush1.xpose.msra.mxu0 0.0
    %616 = vmatprep.subr.mxu0 0.0
    %617 = vmatpush1.xpose.msra.mxu0 0.0
    %618 = vmatprep.subr.mxu0 0.0
    %619 = vmatpush1.xpose.msra.mxu0 0.0
    %620 = vmatprep.subr.mxu0 0.0
    %621 = vmatpush1.xpose.msra.mxu0 0.0
    %622 = vmatprep.subr.mxu0 0.0
    %623 = vmatpush1.xpose.msra.mxu0 0.0
    %624 = vmatprep.subr.mxu0 0.0
    %625 = vmatpush1.xpose.msra.mxu0 0.0
    %626 = vmatprep.subr.mxu0 0.0
    %627 = vmatpush1.xpose.msra.mxu0 0.0
    %628 = vmatprep.subr.mxu0 0.0
    %629 = vmatpush1.xpose.msra.mxu0 0.0
    %630 = vmatprep.subr.mxu0 0.0
    %631 = vmatpush1.xpose.msra.mxu0 0.0
    %632 = vmatprep.subr.mxu0 0.0
    %633 = vmatpush1.xpose.msra.mxu0 0.0
    %634 = vmatprep.subr.mxu0 0.0
    %635 = vmatpush1.xpose.msra.mxu0 0.0
    %636 = vmatprep.subr.mxu0 0.0
    %637 = vmatpush1.xpose.msra.mxu0 0.0
    %638 = vmatprep.subr.mxu0 0.0
    %639 = vmatpush1.xpose.msra.mxu0 0.0
    %640 = vmatprep.subr.mxu0 0.0
    %641 = vmatpush1.xpose.msra.mxu0 0.0
    %642 = vmatprep.subr.mxu0 0.0
    %643 = vmatpush1.xpose.msra.mxu0 0.0
    %644 = vmatprep.subr.mxu0 0.0
    %645 = vmatpush1.xpose.msra.mxu0 0.0
    %646 = vmatprep.mubr.f32.mxu0 0.0
    %647 = vmatmul.mubr.f32.gmra.mrb[0].mxu0 %v578
    %v648 = vpop.f32.mrb[0].mxu0
    %v649 = vadd.f32 0.0, %v648
    %v650 = vpop.f32.mrb[0].mxu0
    %651 = vdwg.mxu0
    %652 = vrot.lane.b32.xlu0 %v178, 96
    %v653 = vpop.permute.xlu0 %652
    %v654 = vsel %vm197, %v164, 0
    %v656 = vsel %vm197, %v653, 0
    %658 = vmatprep.subr.mxu0 0.0
    %659 = vmatpush1.xpose.msra.mxu0 %v656
    %660 = vmatprep.subr.mxu0 0.0
    %661 = vmatpush1.xpose.msra.mxu0 0.0
    %662 = vmatprep.subr.mxu0 0.0
    %663 = vmatpush1.xpose.msra.mxu0 0.0
    %664 = vmatprep.subr.mxu0 0.0
    %665 = vmatpush1.xpose.msra.mxu0 0.0
    %666 = vmatprep.subr.mxu0 0.0
    %667 = vmatpush1.xpose.msra.mxu0 0.0
    %668 = vmatprep.subr.mxu0 0.0
    %669 = vmatpush1.xpose.msra.mxu0 0.0
    %670 = vmatprep.subr.mxu0 0.0
    %671 = vmatpush1.xpose.msra.mxu0 0.0
    %672 = vmatprep.subr.mxu0 0.0
    %673 = vmatpush1.xpose.msra.mxu0 0.0
    %674 = vmatprep.subr.mxu0 0.0
    %675 = vmatpush1.xpose.msra.mxu0 0.0
    %676 = vmatprep.subr.mxu0 0.0
    %677 = vmatpush1.xpose.msra.mxu0 0.0
    %678 = vmatprep.subr.mxu0 0.0
    %679 = vmatpush1.xpose.msra.mxu0 0.0
    %680 = vmatprep.subr.mxu0 0.0
    %681 = vmatpush1.xpose.msra.mxu0 0.0
    %682 = vmatprep.subr.mxu0 0.0
    %683 = vmatpush1.xpose.msra.mxu0 0.0
    %684 = vmatprep.subr.mxu0 0.0
    %685 = vmatpush1.xpose.msra.mxu0 0.0
    %686 = vmatprep.subr.mxu0 0.0
    %687 = vmatpush1.xpose.msra.mxu0 0.0
    %688 = vmatprep.subr.mxu0 0.0
    %689 = vmatpush1.xpose.msra.mxu0 0.0
    %690 = vmatprep.subr.mxu0 0.0
    %691 = vmatpush1.xpose.msra.mxu0 0.0
    %692 = vmatprep.subr.mxu0 0.0
    %693 = vmatpush1.xpose.msra.mxu0 0.0
    %694 = vmatprep.subr.mxu0 0.0
    %695 = vmatpush1.xpose.msra.mxu0 0.0
    %696 = vmatprep.subr.mxu0 0.0
    %697 = vmatpush1.xpose.msra.mxu0 0.0
    %698 = vmatprep.subr.mxu0 0.0
    %699 = vmatpush1.xpose.msra.mxu0 0.0
    %700 = vmatprep.subr.mxu0 0.0
    %701 = vmatpush1.xpose.msra.mxu0 0.0
    %702 = vmatprep.subr.mxu0 0.0
    %703 = vmatpush1.xpose.msra.mxu0 0.0
    %704 = vmatprep.subr.mxu0 0.0
    %705 = vmatpush1.xpose.msra.mxu0 0.0
    %706 = vmatprep.subr.mxu0 0.0
    %707 = vmatpush1.xpose.msra.mxu0 0.0
    %708 = vmatprep.subr.mxu0 0.0
    %709 = vmatpush1.xpose.msra.mxu0 0.0
    %710 = vmatprep.subr.mxu0 0.0
    %711 = vmatpush1.xpose.msra.mxu0 0.0
    %712 = vmatprep.subr.mxu0 0.0
    %713 = vmatpush1.xpose.msra.mxu0 0.0
    %714 = vmatprep.subr.mxu0 0.0
    %715 = vmatpush1.xpose.msra.mxu0 0.0
    %716 = vmatprep.subr.mxu0 0.0
    %717 = vmatpush1.xpose.msra.mxu0 0.0
    %718 = vmatprep.subr.mxu0 0.0
    %719 = vmatpush1.xpose.msra.mxu0 0.0
    %720 = vmatprep.subr.mxu0 0.0
    %721 = vmatpush1.xpose.msra.mxu0 0.0
    %722 = vmatprep.mubr.f32.mxu0 0.0
    %723 = vmatmul.mubr.f32.gmra.mrb[0].mxu0 %v654
    %v724 = vpop.f32.mrb[0].mxu0
    %v725 = vadd.f32 0.0, %v724
    %v726 = vpop.f32.mrb[0].mxu0
    %727 = vdwg.mxu0
    %728 = vrot.lane.b32.xlu0 %v180, 96
    %v729 = vpop.permute.xlu0 %728
    %v730 = vsel %vm197, %v166, 0
    %v732 = vsel %vm197, %v729, 0
    %734 = vmatprep.subr.mxu0 0.0
    %735 = vmatpush1.xpose.msra.mxu0 %v732
    %736 = vmatprep.subr.mxu0 0.0
    %737 = vmatpush1.xpose.msra.mxu0 0.0
    %738 = vmatprep.subr.mxu0 0.0
    %739 = vmatpush1.xpose.msra.mxu0 0.0
    %740 = vmatprep.subr.mxu0 0.0
    %741 = vmatpush1.xpose.msra.mxu0 0.0
    %742 = vmatprep.subr.mxu0 0.0
    %743 = vmatpush1.xpose.msra.mxu0 0.0
    %744 = vmatprep.subr.mxu0 0.0
    %745 = vmatpush1.xpose.msra.mxu0 0.0
    %746 = vmatprep.subr.mxu0 0.0
    %747 = vmatpush1.xpose.msra.mxu0 0.0
    %748 = vmatprep.subr.mxu0 0.0
    %749 = vmatpush1.xpose.msra.mxu0 0.0
    %750 = vmatprep.subr.mxu0 0.0
    %751 = vmatpush1.xpose.msra.mxu0 0.0
    %752 = vmatprep.subr.mxu0 0.0
    %753 = vmatpush1.xpose.msra.mxu0 0.0
    %754 = vmatprep.subr.mxu0 0.0
    %755 = vmatpush1.xpose.msra.mxu0 0.0
    %756 = vmatprep.subr.mxu0 0.0
    %757 = vmatpush1.xpose.msra.mxu0 0.0
    %758 = vmatprep.subr.mxu0 0.0
    %759 = vmatpush1.xpose.msra.mxu0 0.0
    %760 = vmatprep.subr.mxu0 0.0
    %761 = vmatpush1.xpose.msra.mxu0 0.0
    %762 = vmatprep.subr.mxu0 0.0
    %763 = vmatpush1.xpose.msra.mxu0 0.0
    %764 = vmatprep.subr.mxu0 0.0
    %765 = vmatpush1.xpose.msra.mxu0 0.0
    %766 = vmatprep.subr.mxu0 0.0
    %767 = vmatpush1.xpose.msra.mxu0 0.0
    %768 = vmatprep.subr.mxu0 0.0
    %769 = vmatpush1.xpose.msra.mxu0 0.0
    %770 = vmatprep.subr.mxu0 0.0
    %771 = vmatpush1.xpose.msra.mxu0 0.0
    %772 = vmatprep.subr.mxu0 0.0
    %773 = vmatpush1.xpose.msra.mxu0 0.0
    %774 = vmatprep.subr.mxu0 0.0
    %775 = vmatpush1.xpose.msra.mxu0 0.0
    %776 = vmatprep.subr.mxu0 0.0
    %777 = vmatpush1.xpose.msra.mxu0 0.0
    %778 = vmatprep.subr.mxu0 0.0
    %779 = vmatpush1.xpose.msra.mxu0 0.0
    %780 = vmatprep.subr.mxu0 0.0
    %781 = vmatpush1.xpose.msra.mxu0 0.0
    %782 = vmatprep.subr.mxu0 0.0
    %783 = vmatpush1.xpose.msra.mxu0 0.0
    %784 = vmatprep.subr.mxu0 0.0
    %785 = vmatpush1.xpose.msra.mxu0 0.0
    %786 = vmatprep.subr.mxu0 0.0
    %787 = vmatpush1.xpose.msra.mxu0 0.0
    %788 = vmatprep.subr.mxu0 0.0
    %789 = vmatpush1.xpose.msra.mxu0 0.0
    %790 = vmatprep.subr.mxu0 0.0
    %791 = vmatpush1.xpose.msra.mxu0 0.0
    %792 = vmatprep.subr.mxu0 0.0
    %793 = vmatpush1.xpose.msra.mxu0 0.0
    %794 = vmatprep.subr.mxu0 0.0
    %795 = vmatpush1.xpose.msra.mxu0 0.0
    %796 = vmatprep.subr.mxu0 0.0
    %797 = vmatpush1.xpose.msra.mxu0 0.0
    %798 = vmatprep.mubr.f32.mxu0 0.0
    %799 = vmatmul.mubr.f32.gmra.mrb[0].mxu0 %v730
    %v800 = vpop.f32.mrb[0].mxu0
    %v801 = vadd.f32 0.0, %v800
    %v802 = vpop.f32.mrb[0].mxu0
    %803 = vdwg.mxu0
    %vm804 = vcmp.eq.f32.partialorder %v146, 0.0
    %vm805 = vcmp.eq.f32.partialorder %v147, 0.0
    %v806 = vsel %vm804, 1, 0
    %v807 = vsel %vm805, 1, 0
    %vm808 = vcmp.eq.s32.totalorder %v806, 1
    %vm809 = vcmp.eq.s32.totalorder %v807, 1
    %v810 = vsel %vm808, -1e+09, %v269
    %v811 = vsel %vm809, -1e+09, %v345
    %v812 = vsel %vm808, -1e+09, %v421
    %v813 = vsel %vm809, -1e+09, %v497
    %v814 = vsel %vm808, -1e+09, %v573
    %v815 = vsel %vm809, -1e+09, %v649
    %v816 = vsel %vm808, -1e+09, %v725
    %v817 = vsel %vm809, -1e+09, %v801
    %v818 = vsel %vm197, %v810, -inf
    %819 = vmax.xlane.f32.xlu0 %v818
    %v820 = vpop.xlane.xlu0 %819
    %v821 = vsel %vm197, %v811, -inf
    %822 = vmax.xlane.f32.xlu0 %v821
    %v823 = vpop.xlane.xlu0 %822
    %v824 = vsel %vm197, %v812, -inf
    %825 = vmax.xlane.f32.xlu0 %v824
    %v826 = vpop.xlane.xlu0 %825
    %v827 = vsel %vm197, %v813, -inf
    %828 = vmax.xlane.f32.xlu0 %v827
    %v829 = vpop.xlane.xlu0 %828
    %v830 = vsel %vm197, %v814, -inf
    %831 = vmax.xlane.f32.xlu0 %v830
    %v832 = vpop.xlane.xlu0 %831
    %v833 = vsel %vm197, %v815, -inf
    %834 = vmax.xlane.f32.xlu0 %v833
    %v835 = vpop.xlane.xlu0 %834
    %v836 = vsel %vm197, %v816, -inf
    %837 = vmax.xlane.f32.xlu0 %v836
    %v838 = vpop.xlane.xlu0 %837
    %v839 = vsel %vm197, %v817, -inf
    %840 = vmax.xlane.f32.xlu0 %v839
    %v841 = vpop.xlane.xlu0 %840
    %v842 = vsub.f32 %v810, %v820
    %v843 = vsub.f32 %v811, %v823
    %v844 = vsub.f32 %v812, %v826
    %v845 = vsub.f32 %v813, %v829
    %v846 = vsub.f32 %v814, %v832
    %v847 = vsub.f32 %v815, %v835
    %v848 = vsub.f32 %v816, %v838
    %v849 = vsub.f32 %v817, %v841
    %v850 = vmul.f32 %v842, 1.442695
    %v851 = vpow.pop %v850
    %v852 = vmul.f32 %v843, 1.442695
    %v853 = vpow.pop %v852
    %v854 = vmul.f32 %v844, 1.442695
    %v855 = vpow.pop %v854
    %v856 = vmul.f32 %v845, 1.442695
    %v857 = vpow.pop %v856
    %v858 = vmul.f32 %v846, 1.442695
    %v859 = vpow.pop %v858
    %v860 = vmul.f32 %v847, 1.442695
    %v861 = vpow.pop %v860
    %v862 = vmul.f32 %v848, 1.442695
    %v863 = vpow.pop %v862
    %v864 = vmul.f32 %v849, 1.442695
    %v865 = vpow.pop %v864
    %v866 = vsel %vm197, %v851, 0.0
    %867 = vadd.xlane.f32.xlu0 %v866
    %v868 = vpop.xlane.xlu0 %867
    %v869 = vsel %vm197, %v853, 0.0
    %870 = vadd.xlane.f32.xlu0 %v869
    %v871 = vpop.xlane.xlu0 %870
    %v872 = vsel %vm197, %v855, 0.0
    %873 = vadd.xlane.f32.xlu0 %v872
    %v874 = vpop.xlane.xlu0 %873
    %v875 = vsel %vm197, %v857, 0.0
    %876 = vadd.xlane.f32.xlu0 %v875
    %v877 = vpop.xlane.xlu0 %876
    %v878 = vsel %vm197, %v859, 0.0
    %879 = vadd.xlane.f32.xlu0 %v878
    %v880 = vpop.xlane.xlu0 %879
    %v881 = vsel %vm197, %v861, 0.0
    %882 = vadd.xlane.f32.xlu0 %v881
    %v883 = vpop.xlane.xlu0 %882
    %v884 = vsel %vm197, %v863, 0.0
    %885 = vadd.xlane.f32.xlu0 %v884
    %v886 = vpop.xlane.xlu0 %885
    %v887 = vsel %vm197, %v865, 0.0
    %888 = vadd.xlane.f32.xlu0 %v887
    %v889 = vpop.xlane.xlu0 %888
    %v890 = vrcp.pop %v868
    %v891 = vmul.f32 %v851, %v890
    %v892 = vrcp.pop %v871
    %v893 = vmul.f32 %v853, %v892
    %v894 = vrcp.pop %v874
    %v895 = vmul.f32 %v855, %v894
    %v896 = vrcp.pop %v877
    %v897 = vmul.f32 %v857, %v896
    %v898 = vrcp.pop %v880
    %v899 = vmul.f32 %v859, %v898
    %v900 = vrcp.pop %v883
    %v901 = vmul.f32 %v861, %v900
    %v902 = vrcp.pop %v886
    %v903 = vmul.f32 %v863, %v902
    %v904 = vrcp.pop %v889
    %v905 = vmul.f32 %v865, %v904
    %906 = vrot.lane.b32.xlu0 %v144, 64
    %v907 = vpop.permute.xlu0 %906
    %v910 = vsel %vm197, %v891, 0
    %912 = vmatprep.subr.mxu0 0.0
    %913 = vmatpush1.msra.mxu0 %v907
    %914 = vmatprep.subr.mxu0 0.0
    %915 = vmatpush1.msra.mxu0 0.0
    %916 = vmatprep.subr.mxu0 0.0
    %917 = vmatpush1.msra.mxu0 0.0
    %918 = vmatprep.subr.mxu0 0.0
    %919 = vmatpush1.msra.mxu0 0.0
    %920 = vmatprep.subr.mxu0 0.0
    %921 = vmatpush1.msra.mxu0 0.0
    %922 = vmatprep.subr.mxu0 0.0
    %923 = vmatpush1.msra.mxu0 0.0
    %924 = vmatprep.subr.mxu0 0.0
    %925 = vmatpush1.msra.mxu0 0.0
    %926 = vmatprep.subr.mxu0 0.0
    %927 = vmatpush1.msra.mxu0 0.0
    %928 = vmatprep.subr.mxu0 0.0
    %929 = vmatpush1.msra.mxu0 0.0
    %930 = vmatprep.subr.mxu0 0.0
    %931 = vmatpush1.msra.mxu0 0.0
    %932 = vmatprep.subr.mxu0 0.0
    %933 = vmatpush1.msra.mxu0 0.0
    %934 = vmatprep.subr.mxu0 0.0
    %935 = vmatpush1.msra.mxu0 0.0
    %936 = vmatprep.subr.mxu0 0.0
    %937 = vmatpush1.msra.mxu0 0.0
    %938 = vmatprep.subr.mxu0 0.0
    %939 = vmatpush1.msra.mxu0 0.0
    %940 = vmatprep.subr.mxu0 0.0
    %941 = vmatpush1.msra.mxu0 0.0
    %942 = vmatprep.subr.mxu0 0.0
    %943 = vmatpush1.msra.mxu0 0.0
    %944 = vmatprep.subr.mxu0 0.0
    %945 = vmatpush1.msra.mxu0 0.0
    %946 = vmatprep.subr.mxu0 0.0
    %947 = vmatpush1.msra.mxu0 0.0
    %948 = vmatprep.subr.mxu0 0.0
    %949 = vmatpush1.msra.mxu0 0.0
    %950 = vmatprep.subr.mxu0 0.0
    %951 = vmatpush1.msra.mxu0 0.0
    %952 = vmatprep.subr.mxu0 0.0
    %953 = vmatpush1.msra.mxu0 0.0
    %954 = vmatprep.subr.mxu0 0.0
    %955 = vmatpush1.msra.mxu0 0.0
    %956 = vmatprep.subr.mxu0 0.0
    %957 = vmatpush1.msra.mxu0 0.0
    %958 = vmatprep.subr.mxu0 0.0
    %959 = vmatpush1.msra.mxu0 0.0
    %960 = vmatprep.subr.mxu0 0.0
    %961 = vmatpush1.msra.mxu0 0.0
    %962 = vmatprep.subr.mxu0 0.0
    %963 = vmatpush1.msra.mxu0 0.0
    %964 = vmatprep.subr.mxu0 0.0
    %965 = vmatpush1.msra.mxu0 0.0
    %966 = vmatprep.subr.mxu0 0.0
    %967 = vmatpush1.msra.mxu0 0.0
    %968 = vmatprep.subr.mxu0 0.0
    %969 = vmatpush1.msra.mxu0 0.0
    %970 = vmatprep.subr.mxu0 0.0
    %971 = vmatpush1.msra.mxu0 0.0
    %972 = vmatprep.subr.mxu0 0.0
    %973 = vmatpush1.msra.mxu0 0.0
    %974 = vmatprep.subr.mxu0 0.0
    %975 = vmatpush1.msra.mxu0 0.0
    %976 = vmatprep.mubr.f32.mxu0 0.0
    %977 = vmatmul.mubr.f32.gmra.mrb[0].mxu0 %v910
    %v978 = vpop.f32.mrb[0].mxu0
    %v979 = vadd.f32 0.0, %v978
    %v980 = vpop.f32.mrb[0].mxu0
    %981 = vdwg.mxu0
    %982 = vrot.lane.b32.xlu0 %v145, 64
    %v983 = vpop.permute.xlu0 %982
    %v986 = vsel %vm197, %v893, 0
    %988 = vmatprep.subr.mxu0 0.0
    %989 = vmatpush1.msra.mxu0 %v983
    %990 = vmatprep.subr.mxu0 0.0
    %991 = vmatpush1.msra.mxu0 0.0
    %992 = vmatprep.subr.mxu0 0.0
    %993 = vmatpush1.msra.mxu0 0.0
    %994 = vmatprep.subr.mxu0 0.0
    %995 = vmatpush1.msra.mxu0 0.0
    %996 = vmatprep.subr.mxu0 0.0
    %997 = vmatpush1.msra.mxu0 0.0
    %998 = vmatprep.subr.mxu0 0.0
    %999 = vmatpush1.msra.mxu0 0.0
    %1000 = vmatprep.subr.mxu0 0.0
    %1001 = vmatpush1.msra.mxu0 0.0
    %1002 = vmatprep.subr.mxu0 0.0
    %1003 = vmatpush1.msra.mxu0 0.0
    %1004 = vmatprep.subr.mxu0 0.0
    %1005 = vmatpush1.msra.mxu0 0.0
    %1006 = vmatprep.subr.mxu0 0.0
    %1007 = vmatpush1.msra.mxu0 0.0
    %1008 = vmatprep.subr.mxu0 0.0
    %1009 = vmatpush1.msra.mxu0 0.0
    %1010 = vmatprep.subr.mxu0 0.0
    %1011 = vmatpush1.msra.mxu0 0.0
    %1012 = vmatprep.subr.mxu0 0.0
    %1013 = vmatpush1.msra.mxu0 0.0
    %1014 = vmatprep.subr.mxu0 0.0
    %1015 = vmatpush1.msra.mxu0 0.0
    %1016 = vmatprep.subr.mxu0 0.0
    %1017 = vmatpush1.msra.mxu0 0.0
    %1018 = vmatprep.subr.mxu0 0.0
    %1019 = vmatpush1.msra.mxu0 0.0
    %1020 = vmatprep.subr.mxu0 0.0
    %1021 = vmatpush1.msra.mxu0 0.0
    %1022 = vmatprep.subr.mxu0 0.0
    %1023 = vmatpush1.msra.mxu0 0.0
    %1024 = vmatprep.subr.mxu0 0.0
    %1025 = vmatpush1.msra.mxu0 0.0
    %1026 = vmatprep.subr.mxu0 0.0
    %1027 = vmatpush1.msra.mxu0 0.0
    %1028 = vmatprep.subr.mxu0 0.0
    %1029 = vmatpush1.msra.mxu0 0.0
    %1030 = vmatprep.subr.mxu0 0.0
    %1031 = vmatpush1.msra.mxu0 0.0
    %1032 = vmatprep.subr.mxu0 0.0
    %1033 = vmatpush1.msra.mxu0 0.0
    %1034 = vmatprep.subr.mxu0 0.0
    %1035 = vmatpush1.msra.mxu0 0.0
    %1036 = vmatprep.subr.mxu0 0.0
    %1037 = vmatpush1.msra.mxu0 0.0
    %1038 = vmatprep.subr.mxu0 0.0
    %1039 = vmatpush1.msra.mxu0 0.0
    %1040 = vmatprep.subr.mxu0 0.0
    %1041 = vmatpush1.msra.mxu0 0.0
    %1042 = vmatprep.subr.mxu0 0.0
    %1043 = vmatpush1.msra.mxu0 0.0
    %1044 = vmatprep.subr.mxu0 0.0
    %1045 = vmatpush1.msra.mxu0 0.0
    %1046 = vmatprep.subr.mxu0 0.0
    %1047 = vmatpush1.msra.mxu0 0.0
    %1048 = vmatprep.subr.mxu0 0.0
    %1049 = vmatpush1.msra.mxu0 0.0
    %1050 = vmatprep.subr.mxu0 0.0
    %1051 = vmatpush1.msra.mxu0 0.0
    %1052 = vmatprep.mubr.f32.mxu0 0.0
    %1053 = vmatmul.mubr.f32.gmra.mrb[0].mxu0 %v986
    %v1054 = vpop.f32.mrb[0].mxu0
    %v1055 = vadd.f32 0.0, %v1054
    %v1056 = vpop.f32.mrb[0].mxu0
    %1057 = vdwg.mxu0
    %1058 = vrot.lane.b32.xlu0 %v184, 64
    %v1059 = vpop.permute.xlu0 %1058
    %v1062 = vsel %vm197, %v895, 0
    %1064 = vmatprep.subr.mxu0 0.0
    %1065 = vmatpush1.msra.mxu0 %v1059
    %1066 = vmatprep.subr.mxu0 0.0
    %1067 = vmatpush1.msra.mxu0 0.0
    %1068 = vmatprep.subr.mxu0 0.0
    %1069 = vmatpush1.msra.mxu0 0.0
    %1070 = vmatprep.subr.mxu0 0.0
    %1071 = vmatpush1.msra.mxu0 0.0
    %1072 = vmatprep.subr.mxu0 0.0
    %1073 = vmatpush1.msra.mxu0 0.0
    %1074 = vmatprep.subr.mxu0 0.0
    %1075 = vmatpush1.msra.mxu0 0.0
    %1076 = vmatprep.subr.mxu0 0.0
    %1077 = vmatpush1.msra.mxu0 0.0
    %1078 = vmatprep.subr.mxu0 0.0
    %1079 = vmatpush1.msra.mxu0 0.0
    %1080 = vmatprep.subr.mxu0 0.0
    %1081 = vmatpush1.msra.mxu0 0.0
    %1082 = vmatprep.subr.mxu0 0.0
    %1083 = vmatpush1.msra.mxu0 0.0
    %1084 = vmatprep.subr.mxu0 0.0
    %1085 = vmatpush1.msra.mxu0 0.0
    %1086 = vmatprep.subr.mxu0 0.0
    %1087 = vmatpush1.msra.mxu0 0.0
    %1088 = vmatprep.subr.mxu0 0.0
    %1089 = vmatpush1.msra.mxu0 0.0
    %1090 = vmatprep.subr.mxu0 0.0
    %1091 = vmatpush1.msra.mxu0 0.0
    %1092 = vmatprep.subr.mxu0 0.0
    %1093 = vmatpush1.msra.mxu0 0.0
    %1094 = vmatprep.subr.mxu0 0.0
    %1095 = vmatpush1.msra.mxu0 0.0
    %1096 = vmatprep.subr.mxu0 0.0
    %1097 = vmatpush1.msra.mxu0 0.0
    %1098 = vmatprep.subr.mxu0 0.0
    %1099 = vmatpush1.msra.mxu0 0.0
    %1100 = vmatprep.subr.mxu0 0.0
    %1101 = vmatpush1.msra.mxu0 0.0
    %1102 = vmatprep.subr.mxu0 0.0
    %1103 = vmatpush1.msra.mxu0 0.0
    %1104 = vmatprep.subr.mxu0 0.0
    %1105 = vmatpush1.msra.mxu0 0.0
    %1106 = vmatprep.subr.mxu0 0.0
    %1107 = vmatpush1.msra.mxu0 0.0
    %1108 = vmatprep.subr.mxu0 0.0
    %1109 = vmatpush1.msra.mxu0 0.0
    %1110 = vmatprep.subr.mxu0 0.0
    %1111 = vmatpush1.msra.mxu0 0.0
    %1112 = vmatprep.subr.mxu0 0.0
    %1113 = vmatpush1.msra.mxu0 0.0
    %1114 = vmatprep.subr.mxu0 0.0
    %1115 = vmatpush1.msra.mxu0 0.0
    %1116 = vmatprep.subr.mxu0 0.0
    %1117 = vmatpush1.msra.mxu0 0.0
    %1118 = vmatprep.subr.mxu0 0.0
    %1119 = vmatpush1.msra.mxu0 0.0
    %1120 = vmatprep.subr.mxu0 0.0
    %1121 = vmatpush1.msra.mxu0 0.0
    %1122 = vmatprep.subr.mxu0 0.0
    %1123 = vmatpush1.msra.mxu0 0.0
    %1124 = vmatprep.subr.mxu0 0.0
    %1125 = vmatpush1.msra.mxu0 0.0
    %1126 = vmatprep.subr.mxu0 0.0
    %1127 = vmatpush1.msra.mxu0 0.0
    %1128 = vmatprep.mubr.f32.mxu0 0.0
    %1129 = vmatmul.mubr.f32.gmra.mrb[0].mxu0 %v1062
    %v1130 = vpop.f32.mrb[0].mxu0
    %v1131 = vadd.f32 0.0, %v1130
    %v1132 = vpop.f32.mrb[0].mxu0
    %1133 = vdwg.mxu0
    %1134 = vrot.lane.b32.xlu0 %v186, 64
    %v1135 = vpop.permute.xlu0 %1134
    %v1138 = vsel %vm197, %v897, 0
    %1140 = vmatprep.subr.mxu0 0.0
    %1141 = vmatpush1.msra.mxu0 %v1135
    %1142 = vmatprep.subr.mxu0 0.0
    %1143 = vmatpush1.msra.mxu0 0.0
    %1144 = vmatprep.subr.mxu0 0.0
    %1145 = vmatpush1.msra.mxu0 0.0
    %1146 = vmatprep.subr.mxu0 0.0
    %1147 = vmatpush1.msra.mxu0 0.0
    %1148 = vmatprep.subr.mxu0 0.0
    %1149 = vmatpush1.msra.mxu0 0.0
    %1150 = vmatprep.subr.mxu0 0.0
    %1151 = vmatpush1.msra.mxu0 0.0
    %1152 = vmatprep.subr.mxu0 0.0
    %1153 = vmatpush1.msra.mxu0 0.0
    %1154 = vmatprep.subr.mxu0 0.0
    %1155 = vmatpush1.msra.mxu0 0.0
    %1156 = vmatprep.subr.mxu0 0.0
    %1157 = vmatpush1.msra.mxu0 0.0
    %1158 = vmatprep.subr.mxu0 0.0
    %1159 = vmatpush1.msra.mxu0 0.0
    %1160 = vmatprep.subr.mxu0 0.0
    %1161 = vmatpush1.msra.mxu0 0.0
    %1162 = vmatprep.subr.mxu0 0.0
    %1163 = vmatpush1.msra.mxu0 0.0
    %1164 = vmatprep.subr.mxu0 0.0
    %1165 = vmatpush1.msra.mxu0 0.0
    %1166 = vmatprep.subr.mxu0 0.0
    %1167 = vmatpush1.msra.mxu0 0.0
    %1168 = vmatprep.subr.mxu0 0.0
    %1169 = vmatpush1.msra.mxu0 0.0
    %1170 = vmatprep.subr.mxu0 0.0
    %1171 = vmatpush1.msra.mxu0 0.0
    %1172 = vmatprep.subr.mxu0 0.0
    %1173 = vmatpush1.msra.mxu0 0.0
    %1174 = vmatprep.subr.mxu0 0.0
    %1175 = vmatpush1.msra.mxu0 0.0
    %1176 = vmatprep.subr.mxu0 0.0
    %1177 = vmatpush1.msra.mxu0 0.0
    %1178 = vmatprep.subr.mxu0 0.0
    %1179 = vmatpush1.msra.mxu0 0.0
    %1180 = vmatprep.subr.mxu0 0.0
    %1181 = vmatpush1.msra.mxu0 0.0
    %1182 = vmatprep.subr.mxu0 0.0
    %1183 = vmatpush1.msra.mxu0 0.0
    %1184 = vmatprep.subr.mxu0 0.0
    %1185 = vmatpush1.msra.mxu0 0.0
    %1186 = vmatprep.subr.mxu0 0.0
    %1187 = vmatpush1.msra.mxu0 0.0
    %1188 = vmatprep.subr.mxu0 0.0
    %1189 = vmatpush1.msra.mxu0 0.0
    %1190 = vmatprep.subr.mxu0 0.0
    %1191 = vmatpush1.msra.mxu0 0.0
    %1192 = vmatprep.subr.mxu0 0.0
    %1193 = vmatpush1.msra.mxu0 0.0
    %1194 = vmatprep.subr.mxu0 0.0
    %1195 = vmatpush1.msra.mxu0 0.0
    %1196 = vmatprep.subr.mxu0 0.0
    %1197 = vmatpush1.msra.mxu0 0.0
    %1198 = vmatprep.subr.mxu0 0.0
    %1199 = vmatpush1.msra.mxu0 0.0
    %1200 = vmatprep.subr.mxu0 0.0
    %1201 = vmatpush1.msra.mxu0 0.0
    %1202 = vmatprep.subr.mxu0 0.0
    %1203 = vmatpush1.msra.mxu0 0.0
    %1204 = vmatprep.mubr.f32.mxu0 0.0
    %1205 = vmatmul.mubr.f32.gmra.mrb[0].mxu0 %v1138
    %v1206 = vpop.f32.mrb[0].mxu0
    %v1207 = vadd.f32 0.0, %v1206
    %v1208 = vpop.f32.mrb[0].mxu0
    %1209 = vdwg.mxu0
    %1210 = vrot.lane.b32.xlu0 %v188, 64
    %v1211 = vpop.permute.xlu0 %1210
    %v1214 = vsel %vm197, %v899, 0
    %1216 = vmatprep.subr.mxu0 0.0
    %1217 = vmatpush1.msra.mxu0 %v1211
    %1218 = vmatprep.subr.mxu0 0.0
    %1219 = vmatpush1.msra.mxu0 0.0
    %1220 = vmatprep.subr.mxu0 0.0
    %1221 = vmatpush1.msra.mxu0 0.0
    %1222 = vmatprep.subr.mxu0 0.0
    %1223 = vmatpush1.msra.mxu0 0.0
    %1224 = vmatprep.subr.mxu0 0.0
    %1225 = vmatpush1.msra.mxu0 0.0
    %1226 = vmatprep.subr.mxu0 0.0
    %1227 = vmatpush1.msra.mxu0 0.0
    %1228 = vmatprep.subr.mxu0 0.0
    %1229 = vmatpush1.msra.mxu0 0.0
    %1230 = vmatprep.subr.mxu0 0.0
    %1231 = vmatpush1.msra.mxu0 0.0
    %1232 = vmatprep.subr.mxu0 0.0
    %1233 = vmatpush1.msra.mxu0 0.0
    %1234 = vmatprep.subr.mxu0 0.0
    %1235 = vmatpush1.msra.mxu0 0.0
    %1236 = vmatprep.subr.mxu0 0.0
    %1237 = vmatpush1.msra.mxu0 0.0
    %1238 = vmatprep.subr.mxu0 0.0
    %1239 = vmatpush1.msra.mxu0 0.0
    %1240 = vmatprep.subr.mxu0 0.0
    %1241 = vmatpush1.msra.mxu0 0.0
    %1242 = vmatprep.subr.mxu0 0.0
    %1243 = vmatpush1.msra.mxu0 0.0
    %1244 = vmatprep.subr.mxu0 0.0
    %1245 = vmatpush1.msra.mxu0 0.0
    %1246 = vmatprep.subr.mxu0 0.0
    %1247 = vmatpush1.msra.mxu0 0.0
    %1248 = vmatprep.subr.mxu0 0.0
    %1249 = vmatpush1.msra.mxu0 0.0
    %1250 = vmatprep.subr.mxu0 0.0
    %1251 = vmatpush1.msra.mxu0 0.0
    %1252 = vmatprep.subr.mxu0 0.0
    %1253 = vmatpush1.msra.mxu0 0.0
    %1254 = vmatprep.subr.mxu0 0.0
    %1255 = vmatpush1.msra.mxu0 0.0
    %1256 = vmatprep.subr.mxu0 0.0
    %1257 = vmatpush1.msra.mxu0 0.0
    %1258 = vmatprep.subr.mxu0 0.0
    %1259 = vmatpush1.msra.mxu0 0.0
    %1260 = vmatprep.subr.mxu0 0.0
    %1261 = vmatpush1.msra.mxu0 0.0
    %1262 = vmatprep.subr.mxu0 0.0
    %1263 = vmatpush1.msra.mxu0 0.0
    %1264 = vmatprep.subr.mxu0 0.0
    %1265 = vmatpush1.msra.mxu0 0.0
    %1266 = vmatprep.subr.mxu0 0.0
    %1267 = vmatpush1.msra.mxu0 0.0
    %1268 = vmatprep.subr.mxu0 0.0
    %1269 = vmatpush1.msra.mxu0 0.0
    %1270 = vmatprep.subr.mxu0 0.0
    %1271 = vmatpush1.msra.mxu0 0.0
    %1272 = vmatprep.subr.mxu0 0.0
    %1273 = vmatpush1.msra.mxu0 0.0
    %1274 = vmatprep.subr.mxu0 0.0
    %1275 = vmatpush1.msra.mxu0 0.0
    %1276 = vmatprep.subr.mxu0 0.0
    %1277 = vmatpush1.msra.mxu0 0.0
    %1278 = vmatprep.subr.mxu0 0.0
    %1279 = vmatpush1.msra.mxu0 0.0
    %1280 = vmatprep.mubr.f32.mxu0 0.0
    %1281 = vmatmul.mubr.f32.gmra.mrb[0].mxu0 %v1214
    %v1282 = vpop.f32.mrb[0].mxu0
    %v1283 = vadd.f32 0.0, %v1282
    %v1284 = vpop.f32.mrb[0].mxu0
    %1285 = vdwg.mxu0
    %1286 = vrot.lane.b32.xlu0 %v190, 64
    %v1287 = vpop.permute.xlu0 %1286
    %v1290 = vsel %vm197, %v901, 0
    %1292 = vmatprep.subr.mxu0 0.0
    %1293 = vmatpush1.msra.mxu0 %v1287
    %1294 = vmatprep.subr.mxu0 0.0
    %1295 = vmatpush1.msra.mxu0 0.0
    %1296 = vmatprep.subr.mxu0 0.0
    %1297 = vmatpush1.msra.mxu0 0.0
    %1298 = vmatprep.subr.mxu0 0.0
    %1299 = vmatpush1.msra.mxu0 0.0
    %1300 = vmatprep.subr.mxu0 0.0
    %1301 = vmatpush1.msra.mxu0 0.0
    %1302 = vmatprep.subr.mxu0 0.0
    %1303 = vmatpush1.msra.mxu0 0.0
    %1304 = vmatprep.subr.mxu0 0.0
    %1305 = vmatpush1.msra.mxu0 0.0
    %1306 = vmatprep.subr.mxu0 0.0
    %1307 = vmatpush1.msra.mxu0 0.0
    %1308 = vmatprep.subr.mxu0 0.0
    %1309 = vmatpush1.msra.mxu0 0.0
    %1310 = vmatprep.subr.mxu0 0.0
    %1311 = vmatpush1.msra.mxu0 0.0
    %1312 = vmatprep.subr.mxu0 0.0
    %1313 = vmatpush1.msra.mxu0 0.0
    %1314 = vmatprep.subr.mxu0 0.0
    %1315 = vmatpush1.msra.mxu0 0.0
    %1316 = vmatprep.subr.mxu0 0.0
    %1317 = vmatpush1.msra.mxu0 0.0
    %1318 = vmatprep.subr.mxu0 0.0
    %1319 = vmatpush1.msra.mxu0 0.0
    %1320 = vmatprep.subr.mxu0 0.0
    %1321 = vmatpush1.msra.mxu0 0.0
    %1322 = vmatprep.subr.mxu0 0.0
    %1323 = vmatpush1.msra.mxu0 0.0
    %1324 = vmatprep.subr.mxu0 0.0
    %1325 = vmatpush1.msra.mxu0 0.0
    %1326 = vmatprep.subr.mxu0 0.0
    %1327 = vmatpush1.msra.mxu0 0.0
    %1328 = vmatprep.subr.mxu0 0.0
    %1329 = vmatpush1.msra.mxu0 0.0
    %1330 = vmatprep.subr.mxu0 0.0
    %1331 = vmatpush1.msra.mxu0 0.0
    %1332 = vmatprep.subr.mxu0 0.0
    %1333 = vmatpush1.msra.mxu0 0.0
    %1334 = vmatprep.subr.mxu0 0.0
    %1335 = vmatpush1.msra.mxu0 0.0
    %1336 = vmatprep.subr.mxu0 0.0
    %1337 = vmatpush1.msra.mxu0 0.0
    %1338 = vmatprep.subr.mxu0 0.0
    %1339 = vmatpush1.msra.mxu0 0.0
    %1340 = vmatprep.subr.mxu0 0.0
    %1341 = vmatpush1.msra.mxu0 0.0
    %1342 = vmatprep.subr.mxu0 0.0
    %1343 = vmatpush1.msra.mxu0 0.0
    %1344 = vmatprep.subr.mxu0 0.0
    %1345 = vmatpush1.msra.mxu0 0.0
    %1346 = vmatprep.subr.mxu0 0.0
    %1347 = vmatpush1.msra.mxu0 0.0
    %1348 = vmatprep.subr.mxu0 0.0
    %1349 = vmatpush1.msra.mxu0 0.0
    %1350 = vmatprep.subr.mxu0 0.0
    %1351 = vmatpush1.msra.mxu0 0.0
    %1352 = vmatprep.subr.mxu0 0.0
    %1353 = vmatpush1.msra.mxu0 0.0
    %1354 = vmatprep.subr.mxu0 0.0
    %1355 = vmatpush1.msra.mxu0 0.0
    %1356 = vmatprep.mubr.f32.mxu0 0.0
    %1357 = vmatmul.mubr.f32.gmra.mrb[0].mxu0 %v1290
    %v1358 = vpop.f32.mrb[0].mxu0
    %v1359 = vadd.f32 0.0, %v1358
    %v1360 = vpop.f32.mrb[0].mxu0
    %1361 = vdwg.mxu0
    %1362 = vrot.lane.b32.xlu0 %v192, 64
    %v1363 = vpop.permute.xlu0 %1362
    %v1366 = vsel %vm197, %v903, 0
    %1368 = vmatprep.subr.mxu0 0.0
    %1369 = vmatpush1.msra.mxu0 %v1363
    %1370 = vmatprep.subr.mxu0 0.0
    %1371 = vmatpush1.msra.mxu0 0.0
    %1372 = vmatprep.subr.mxu0 0.0
    %1373 = vmatpush1.msra.mxu0 0.0
    %1374 = vmatprep.subr.mxu0 0.0
    %1375 = vmatpush1.msra.mxu0 0.0
    %1376 = vmatprep.subr.mxu0 0.0
    %1377 = vmatpush1.msra.mxu0 0.0
    %1378 = vmatprep.subr.mxu0 0.0
    %1379 = vmatpush1.msra.mxu0 0.0
    %1380 = vmatprep.subr.mxu0 0.0
    %1381 = vmatpush1.msra.mxu0 0.0
    %1382 = vmatprep.subr.mxu0 0.0
    %1383 = vmatpush1.msra.mxu0 0.0
    %1384 = vmatprep.subr.mxu0 0.0
    %1385 = vmatpush1.msra.mxu0 0.0
    %1386 = vmatprep.subr.mxu0 0.0
    %1387 = vmatpush1.msra.mxu0 0.0
    %1388 = vmatprep.subr.mxu0 0.0
    %1389 = vmatpush1.msra.mxu0 0.0
    %1390 = vmatprep.subr.mxu0 0.0
    %1391 = vmatpush1.msra.mxu0 0.0
    %1392 = vmatprep.subr.mxu0 0.0
    %1393 = vmatpush1.msra.mxu0 0.0
    %1394 = vmatprep.subr.mxu0 0.0
    %1395 = vmatpush1.msra.mxu0 0.0
    %1396 = vmatprep.subr.mxu0 0.0
    %1397 = vmatpush1.msra.mxu0 0.0
    %1398 = vmatprep.subr.mxu0 0.0
    %1399 = vmatpush1.msra.mxu0 0.0
    %1400 = vmatprep.subr.mxu0 0.0
    %1401 = vmatpush1.msra.mxu0 0.0
    %1402 = vmatprep.subr.mxu0 0.0
    %1403 = vmatpush1.msra.mxu0 0.0
    %1404 = vmatprep.subr.mxu0 0.0
    %1405 = vmatpush1.msra.mxu0 0.0
    %1406 = vmatprep.subr.mxu0 0.0
    %1407 = vmatpush1.msra.mxu0 0.0
    %1408 = vmatprep.subr.mxu0 0.0
    %1409 = vmatpush1.msra.mxu0 0.0
    %1410 = vmatprep.subr.mxu0 0.0
    %1411 = vmatpush1.msra.mxu0 0.0
    %1412 = vmatprep.subr.mxu0 0.0
    %1413 = vmatpush1.msra.mxu0 0.0
    %1414 = vmatprep.subr.mxu0 0.0
    %1415 = vmatpush1.msra.mxu0 0.0
    %1416 = vmatprep.subr.mxu0 0.0
    %1417 = vmatpush1.msra.mxu0 0.0
    %1418 = vmatprep.subr.mxu0 0.0
    %1419 = vmatpush1.msra.mxu0 0.0
    %1420 = vmatprep.subr.mxu0 0.0
    %1421 = vmatpush1.msra.mxu0 0.0
    %1422 = vmatprep.subr.mxu0 0.0
    %1423 = vmatpush1.msra.mxu0 0.0
    %1424 = vmatprep.subr.mxu0 0.0
    %1425 = vmatpush1.msra.mxu0 0.0
    %1426 = vmatprep.subr.mxu0 0.0
    %1427 = vmatpush1.msra.mxu0 0.0
    %1428 = vmatprep.subr.mxu0 0.0
    %1429 = vmatpush1.msra.mxu0 0.0
    %1430 = vmatprep.subr.mxu0 0.0
    %1431 = vmatpush1.msra.mxu0 0.0
    %1432 = vmatprep.mubr.f32.mxu0 0.0
    %1433 = vmatmul.mubr.f32.gmra.mrb[0].mxu0 %v1366
    %v1434 = vpop.f32.mrb[0].mxu0
    %v1435 = vadd.f32 0.0, %v1434
    %v1436 = vpop.f32.mrb[0].mxu0
    %1437 = vdwg.mxu0
    %1438 = vrot.lane.b32.xlu0 %v194, 64
    %v1439 = vpop.permute.xlu0 %1438
    %v1442 = vsel %vm197, %v905, 0
    %1444 = vmatprep.subr.mxu0 0.0
    %1445 = vmatpush1.msra.mxu0 %v1439
    %1446 = vmatprep.subr.mxu0 0.0
    %1447 = vmatpush1.msra.mxu0 0.0
    %1448 = vmatprep.subr.mxu0 0.0
    %1449 = vmatpush1.msra.mxu0 0.0
    %1450 = vmatprep.subr.mxu0 0.0
    %1451 = vmatpush1.msra.mxu0 0.0
    %1452 = vmatprep.subr.mxu0 0.0
    %1453 = vmatpush1.msra.mxu0 0.0
    %1454 = vmatprep.subr.mxu0 0.0
    %1455 = vmatpush1.msra.mxu0 0.0
    %1456 = vmatprep.subr.mxu0 0.0
    %1457 = vmatpush1.msra.mxu0 0.0
    %1458 = vmatprep.subr.mxu0 0.0
    %1459 = vmatpush1.msra.mxu0 0.0
    %1460 = vmatprep.subr.mxu0 0.0
    %1461 = vmatpush1.msra.mxu0 0.0
    %1462 = vmatprep.subr.mxu0 0.0
    %1463 = vmatpush1.msra.mxu0 0.0
    %1464 = vmatprep.subr.mxu0 0.0
    %1465 = vmatpush1.msra.mxu0 0.0
    %1466 = vmatprep.subr.mxu0 0.0
    %1467 = vmatpush1.msra.mxu0 0.0
    %1468 = vmatprep.subr.mxu0 0.0
    %1469 = vmatpush1.msra.mxu0 0.0
    %1470 = vmatprep.subr.mxu0 0.0
    %1471 = vmatpush1.msra.mxu0 0.0
    %1472 = vmatprep.subr.mxu0 0.0
    %1473 = vmatpush1.msra.mxu0 0.0
    %1474 = vmatprep.subr.mxu0 0.0
    %1475 = vmatpush1.msra.mxu0 0.0
    %1476 = vmatprep.subr.mxu0 0.0
    %1477 = vmatpush1.msra.mxu0 0.0
    %1478 = vmatprep.subr.mxu0 0.0
    %1479 = vmatpush1.msra.mxu0 0.0
    %1480 = vmatprep.subr.mxu0 0.0
    %1481 = vmatpush1.msra.mxu0 0.0
    %1482 = vmatprep.subr.mxu0 0.0
    %1483 = vmatpush1.msra.mxu0 0.0
    %1484 = vmatprep.subr.mxu0 0.0
    %1485 = vmatpush1.msra.mxu0 0.0
    %1486 = vmatprep.subr.mxu0 0.0
    %1487 = vmatpush1.msra.mxu0 0.0
    %1488 = vmatprep.subr.mxu0 0.0
    %1489 = vmatpush1.msra.mxu0 0.0
    %1490 = vmatprep.subr.mxu0 0.0
    %1491 = vmatpush1.msra.mxu0 0.0
    %1492 = vmatprep.subr.mxu0 0.0
    %1493 = vmatpush1.msra.mxu0 0.0
    %1494 = vmatprep.subr.mxu0 0.0
    %1495 = vmatpush1.msra.mxu0 0.0
    %1496 = vmatprep.subr.mxu0 0.0
    %1497 = vmatpush1.msra.mxu0 0.0
    %1498 = vmatprep.subr.mxu0 0.0
    %1499 = vmatpush1.msra.mxu0 0.0
    %1500 = vmatprep.subr.mxu0 0.0
    %1501 = vmatpush1.msra.mxu0 0.0
    %1502 = vmatprep.subr.mxu0 0.0
    %1503 = vmatpush1.msra.mxu0 0.0
    %1504 = vmatprep.subr.mxu0 0.0
    %1505 = vmatpush1.msra.mxu0 0.0
    %1506 = vmatprep.subr.mxu0 0.0
    %1507 = vmatpush1.msra.mxu0 0.0
    %1508 = vmatprep.mubr.f32.mxu0 0.0
    %1509 = vmatmul.mubr.f32.gmra.mrb[0].mxu0 %v1442
    %v1510 = vpop.f32.mrb[0].mxu0
    %v1511 = vadd.f32 0.0, %v1510
    %v1512 = vpop.f32.mrb[0].mxu0
    %1513 = vdwg.mxu0
    %1516 = vrot.lane.b32.xlu0 %v1131, 8
    %v1517 = vpop.permute.xlu0 %1516
    %1518 = vrot.lane.b32.xlu0 %v1207, 8
    %v1519 = vpop.permute.xlu0 %1518
    %1524 = vrot.lane.b32.xlu0 %v1283, 16
    %v1525 = vpop.permute.xlu0 %1524
    %1526 = vrot.lane.b32.xlu0 %v1359, 16
    %v1527 = vpop.permute.xlu0 %1526
    %1532 = vrot.lane.b32.xlu0 %v1435, 24
    %v1533 = vpop.permute.xlu0 %1532
    %1534 = vrot.lane.b32.xlu0 %v1511, 24
    %v1535 = vpop.permute.xlu0 %1534
    %v1538 = vsel %vm197, %v979, %v1517
    %v1539 = vsel %vm197, %v1055, %v1519
    %vm1540 = vcmask 130048
    %v1541 = vsel %vm1540, %v1538, %v1525
    %v1542 = vsel %vm1540, %v1539, %v1527
    %vm1543 = vcmask 195584
    %v1544 = vsel %vm1543, %v1541, %v1533
    %v1545 = vsel %vm1543, %v1542, %v1535
    %v1546 = vlaneseq
    %v1547 = vshrl.u32 %v1546, 7
    %v1548 = vsub.s32 0, %v1547
    %v1549 = vrot.slane %v152, %v1548
    %v1551 = vsel %vm35, %v1544, 0
    %v1554 = vsel %vm35, %v1545, 0
    %1556 = vmatprep.subr.mxu0 0.0
    %1557 = vmatpush1.msra.mxu0 %v148
    %1558 = vmatprep.subr.mxu0 0.0
    %1559 = vmatpush1.msra.mxu0 %v149
    %1560 = vmatprep.subr.mxu0 0.0
    %1561 = vmatpush1.msra.mxu0 %v150
    %1562 = vmatprep.subr.mxu0 0.0
    %1563 = vmatpush1.msra.mxu0 %v151
    %1564 = vmatprep.subr.mxu0 0.0
    %1565 = vmatpush1.msra.mxu0 0.0
    %1566 = vmatprep.subr.mxu0 0.0
    %1567 = vmatpush1.msra.mxu0 0.0
    %1568 = vmatprep.subr.mxu0 0.0
    %1569 = vmatpush1.msra.mxu0 0.0
    %1570 = vmatprep.subr.mxu0 0.0
    %1571 = vmatpush1.msra.mxu0 0.0
    %1572 = vmatprep.subr.mxu0 0.0
    %1573 = vmatpush1.msra.mxu0 0.0
    %1574 = vmatprep.subr.mxu0 0.0
    %1575 = vmatpush1.msra.mxu0 0.0
    %1576 = vmatprep.subr.mxu0 0.0
    %1577 = vmatpush1.msra.mxu0 0.0
    %1578 = vmatprep.subr.mxu0 0.0
    %1579 = vmatpush1.msra.mxu0 0.0
    %1580 = vmatprep.subr.mxu0 0.0
    %1581 = vmatpush1.msra.mxu0 0.0
    %1582 = vmatprep.subr.mxu0 0.0
    %1583 = vmatpush1.msra.mxu0 0.0
    %1584 = vmatprep.subr.mxu0 0.0
    %1585 = vmatpush1.msra.mxu0 0.0
    %1586 = vmatprep.subr.mxu0 0.0
    %1587 = vmatpush1.msra.mxu0 0.0
    %1588 = vmatprep.subr.mxu0 0.0
    %1589 = vmatpush1.msra.mxu0 0.0
    %1590 = vmatprep.subr.mxu0 0.0
    %1591 = vmatpush1.msra.mxu0 0.0
    %1592 = vmatprep.subr.mxu0 0.0
    %1593 = vmatpush1.msra.mxu0 0.0
    %1594 = vmatprep.subr.mxu0 0.0
    %1595 = vmatpush1.msra.mxu0 0.0
    %1596 = vmatprep.subr.mxu0 0.0
    %1597 = vmatpush1.msra.mxu0 0.0
    %1598 = vmatprep.subr.mxu0 0.0
    %1599 = vmatpush1.msra.mxu0 0.0
    %1600 = vmatprep.subr.mxu0 0.0
    %1601 = vmatpush1.msra.mxu0 0.0
    %1602 = vmatprep.subr.mxu0 0.0
    %1603 = vmatpush1.msra.mxu0 0.0
    %1604 = vmatprep.subr.mxu0 0.0
    %1605 = vmatpush1.msra.mxu0 0.0
    %1606 = vmatprep.subr.mxu0 0.0
    %1607 = vmatpush1.msra.mxu0 0.0
    %1608 = vmatprep.subr.mxu0 0.0
    %1609 = vmatpush1.msra.mxu0 0.0
    %1610 = vmatprep.subr.mxu0 0.0
    %1611 = vmatpush1.msra.mxu0 0.0
    %1612 = vmatprep.subr.mxu0 0.0
    %1613 = vmatpush1.msra.mxu0 0.0
    %1614 = vmatprep.subr.mxu0 0.0
    %1615 = vmatpush1.msra.mxu0 0.0
    %1616 = vmatprep.subr.mxu0 0.0
    %1617 = vmatpush1.msra.mxu0 0.0
    %1618 = vmatprep.subr.mxu0 0.0
    %1619 = vmatpush1.msra.mxu0 0.0
    %1620 = vmatprep.mubr.f32.mxu0 0.0
    %1621 = vmatmul.mubr.f32.gmra.mrb[0].mxu0 %v1551
    %v1622 = vpop.f32.mrb[0].mxu0
    %v1623 = vadd.f32 %v1549, %v1622
    %v1624 = vpop.f32.mrb[0].mxu0
    %1625 = vmatprep.mubr.f32.mxu0 0.0
    %1626 = vmatmul.mubr.f32.gmra.mrb[0].mxu0 %v1554
    %v1627 = vpop.f32.mrb[0].mxu0
    %v1628 = vadd.f32 %v1549, %v1627
    %v1629 = vpop.f32.mrb[0].mxu0
    %1630 = vdwg.mxu0
    %v1631 = vadd.f32 %v27, %v1623
    %v1632 = vadd.f32 %v28, %v1628
    %v1633 = vsel %vm35, %v1631, 0.0
    %1634 = vadd.xlane.f32.xlu0 %v1633
    %v1635 = vpop.xlane.xlu0 %1634
    %v1636 = vsel %vm35, %v1632, 0.0
    %1637 = vadd.xlane.f32.xlu0 %v1636
    %v1638 = vpop.xlane.xlu0 %1637
    %v1639 = vrcp.pop 32.0
    %v1640 = vmul.f32 %v1635, %v1639
    %v1641 = vmul.f32 %v1638, %v1639
    %v1642 = vsub.f32 %v1631, %v1640
    %v1643 = vsub.f32 %v1632, %v1641
    %v1644 = vmul.f32 %v1642, %v1642
    %v1645 = vmul.f32 %v1643, %v1643
    %v1646 = vsel %vm35, %v1644, 0.0
    %1647 = vadd.xlane.f32.xlu0 %v1646
    %v1648 = vpop.xlane.xlu0 %1647
    %v1649 = vsel %vm35, %v1645, 0.0
    %1650 = vadd.xlane.f32.xlu0 %v1649
    %v1651 = vpop.xlane.xlu0 %1650
    %v1652 = vmul.f32 %v1648, %v1639
    %v1653 = vmul.f32 %v1651, %v1639
    %v1654 = vadd.f32 %v1652, 1e-05
    %v1655 = vadd.f32 %v1653, 1e-05
    %v1656 = vrsqrt.pop %v1654
    %v1657 = vrsqrt.pop %v1655
    %v1658 = vmul.f32 %v1642, %v1656
    %v1659 = vmul.f32 %v1643, %v1657
    %v1660 = vld [vmem:[%s6 + $0x8] sm:$0x1]
    %v1661 = vlaneseq
    %v1662 = vshrl.u32 %v1661, 7
    %v1663 = vsub.s32 0, %v1662
    %v1664 = vrot.slane %v1660, %v1663
    %v1665 = vmul.f32 %v1658, %v1664
    %v1666 = vmul.f32 %v1659, %v1664
    %v1667 = vld [vmem:[%s6 + $0x9] sm:$0x1]
    %v1668 = vlaneseq
    %v1669 = vshrl.u32 %v1668, 7
    %v1670 = vsub.s32 0, %v1669
    %v1671 = vrot.slane %v1667, %v1670
    %v1672 = vadd.f32 %v1665, %v1671
    %v1673 = vadd.f32 %v1666, %v1671
    %s1674 = scalar_lea.vmem %s3, 32
    %v1675 = vld [vmem:[%s1674] sm:$0xff]
    %v1676 = vld [vmem:[%s1674 + $0x8] sm:$0xff]
    %v1677 = vld [vmem:[%s1674 + $0x10] sm:$0xff]
    %v1678 = vld [vmem:[%s1674 + $0x18] sm:$0xff]
    %v1679 = vld [vmem:[%s6 + $0x4] sm:$0x1]
    %v1680 = vlaneseq
    %v1681 = vshrl.u32 %v1680, 7
    %v1682 = vsub.s32 0, %v1681
    %v1683 = vrot.slane %v1679, %v1682
    %v1685 = vsel %vm35, %v1672, 0
    %v1688 = vsel %vm35, %v1673, 0
    %1690 = vmatprep.subr.mxu0 0.0
    %1691 = vmatpush1.msra.mxu0 %v1675
    %1692 = vmatprep.subr.mxu0 0.0
    %1693 = vmatpush1.msra.mxu0 %v1676
    %1694 = vmatprep.subr.mxu0 0.0
    %1695 = vmatpush1.msra.mxu0 %v1677
    %1696 = vmatprep.subr.mxu0 0.0
    %1697 = vmatpush1.msra.mxu0 %v1678
    %1698 = vmatprep.subr.mxu0 0.0
    %1699 = vmatpush1.msra.mxu0 0.0
    %1700 = vmatprep.subr.mxu0 0.0
    %1701 = vmatpush1.msra.mxu0 0.0
    %1702 = vmatprep.subr.mxu0 0.0
    %1703 = vmatpush1.msra.mxu0 0.0
    %1704 = vmatprep.subr.mxu0 0.0
    %1705 = vmatpush1.msra.mxu0 0.0
    %1706 = vmatprep.subr.mxu0 0.0
    %1707 = vmatpush1.msra.mxu0 0.0
    %1708 = vmatprep.subr.mxu0 0.0
    %1709 = vmatpush1.msra.mxu0 0.0
    %1710 = vmatprep.subr.mxu0 0.0
    %1711 = vmatpush1.msra.mxu0 0.0
    %1712 = vmatprep.subr.mxu0 0.0
    %1713 = vmatpush1.msra.mxu0 0.0
    %1714 = vmatprep.subr.mxu0 0.0
    %1715 = vmatpush1.msra.mxu0 0.0
    %1716 = vmatprep.subr.mxu0 0.0
    %1717 = vmatpush1.msra.mxu0 0.0
    %1718 = vmatprep.subr.mxu0 0.0
    %1719 = vmatpush1.msra.mxu0 0.0
    %1720 = vmatprep.subr.mxu0 0.0
    %1721 = vmatpush1.msra.mxu0 0.0
    %1722 = vmatprep.subr.mxu0 0.0
    %1723 = vmatpush1.msra.mxu0 0.0
    %1724 = vmatprep.subr.mxu0 0.0
    %1725 = vmatpush1.msra.mxu0 0.0
    %1726 = vmatprep.subr.mxu0 0.0
    %1727 = vmatpush1.msra.mxu0 0.0
    %1728 = vmatprep.subr.mxu0 0.0
    %1729 = vmatpush1.msra.mxu0 0.0
    %1730 = vmatprep.subr.mxu0 0.0
    %1731 = vmatpush1.msra.mxu0 0.0
    %1732 = vmatprep.subr.mxu0 0.0
    %1733 = vmatpush1.msra.mxu0 0.0
    %1734 = vmatprep.subr.mxu0 0.0
    %1735 = vmatpush1.msra.mxu0 0.0
    %1736 = vmatprep.subr.mxu0 0.0
    %1737 = vmatpush1.msra.mxu0 0.0
    %1738 = vmatprep.subr.mxu0 0.0
    %1739 = vmatpush1.msra.mxu0 0.0
    %1740 = vmatprep.subr.mxu0 0.0
    %1741 = vmatpush1.msra.mxu0 0.0
    %1742 = vmatprep.subr.mxu0 0.0
    %1743 = vmatpush1.msra.mxu0 0.0
    %1744 = vmatprep.subr.mxu0 0.0
    %1745 = vmatpush1.msra.mxu0 0.0
    %1746 = vmatprep.subr.mxu0 0.0
    %1747 = vmatpush1.msra.mxu0 0.0
    %1748 = vmatprep.subr.mxu0 0.0
    %1749 = vmatpush1.msra.mxu0 0.0
    %1750 = vmatprep.subr.mxu0 0.0
    %1751 = vmatpush1.msra.mxu0 0.0
    %1752 = vmatprep.subr.mxu0 0.0
    %1753 = vmatpush1.msra.mxu0 0.0
    %1754 = vmatprep.mubr.f32.mxu0 0.0
    %1755 = vmatmul.mubr.f32.gmra.mrb[0].mxu0 %v1685
    %v1756 = vpop.f32.mrb[0].mxu0
    %v1757 = vadd.f32 %v1683, %v1756
    %v1758 = vpop.f32.mrb[0].mxu0
    %1759 = vmatprep.mubr.f32.mxu0 0.0
    %1760 = vmatmul.mubr.f32.gmra.mrb[0].mxu0 %v1688
    %v1761 = vpop.f32.mrb[0].mxu0
    %v1762 = vadd.f32 %v1683, %v1761
    %v1763 = vpop.f32.mrb[0].mxu0
    %1764 = vdwg.mxu0
    %v1765 = vld [vmem:[%s4] sm:$0xff]
    %v1766 = vld [vmem:[%s4 + $0x8] sm:$0xff]
    %v1767 = vld [vmem:[%s4 + $0x10] sm:$0xff]
    %v1768 = vld [vmem:[%s4 + $0x18] sm:$0xff]
    %v1770 = vsel %vm35, %v29, 0
    %v1773 = vsel %vm35, %v30, 0
    %1775 = vmatprep.subr.mxu0 0.0
    %1776 = vmatpush1.msra.mxu0 %v1765
    %1777 = vmatprep.subr.mxu0 0.0
    %1778 = vmatpush1.msra.mxu0 %v1766
    %1779 = vmatprep.subr.mxu0 0.0
    %1780 = vmatpush1.msra.mxu0 %v1767
    %1781 = vmatprep.subr.mxu0 0.0
    %1782 = vmatpush1.msra.mxu0 %v1768
    %1783 = vmatprep.subr.mxu0 0.0
    %1784 = vmatpush1.msra.mxu0 0.0
    %1785 = vmatprep.subr.mxu0 0.0
    %1786 = vmatpush1.msra.mxu0 0.0
    %1787 = vmatprep.subr.mxu0 0.0
    %1788 = vmatpush1.msra.mxu0 0.0
    %1789 = vmatprep.subr.mxu0 0.0
    %1790 = vmatpush1.msra.mxu0 0.0
    %1791 = vmatprep.subr.mxu0 0.0
    %1792 = vmatpush1.msra.mxu0 0.0
    %1793 = vmatprep.subr.mxu0 0.0
    %1794 = vmatpush1.msra.mxu0 0.0
    %1795 = vmatprep.subr.mxu0 0.0
    %1796 = vmatpush1.msra.mxu0 0.0
    %1797 = vmatprep.subr.mxu0 0.0
    %1798 = vmatpush1.msra.mxu0 0.0
    %1799 = vmatprep.subr.mxu0 0.0
    %1800 = vmatpush1.msra.mxu0 0.0
    %1801 = vmatprep.subr.mxu0 0.0
    %1802 = vmatpush1.msra.mxu0 0.0
    %1803 = vmatprep.subr.mxu0 0.0
    %1804 = vmatpush1.msra.mxu0 0.0
    %1805 = vmatprep.subr.mxu0 0.0
    %1806 = vmatpush1.msra.mxu0 0.0
    %1807 = vmatprep.subr.mxu0 0.0
    %1808 = vmatpush1.msra.mxu0 0.0
    %1809 = vmatprep.subr.mxu0 0.0
    %1810 = vmatpush1.msra.mxu0 0.0
    %1811 = vmatprep.subr.mxu0 0.0
    %1812 = vmatpush1.msra.mxu0 0.0
    %1813 = vmatprep.subr.mxu0 0.0
    %1814 = vmatpush1.msra.mxu0 0.0
    %1815 = vmatprep.subr.mxu0 0.0
    %1816 = vmatpush1.msra.mxu0 0.0
    %1817 = vmatprep.subr.mxu0 0.0
    %1818 = vmatpush1.msra.mxu0 0.0
    %1819 = vmatprep.subr.mxu0 0.0
    %1820 = vmatpush1.msra.mxu0 0.0
    %1821 = vmatprep.subr.mxu0 0.0
    %1822 = vmatpush1.msra.mxu0 0.0
    %1823 = vmatprep.subr.mxu0 0.0
    %1824 = vmatpush1.msra.mxu0 0.0
    %1825 = vmatprep.subr.mxu0 0.0
    %1826 = vmatpush1.msra.mxu0 0.0
    %1827 = vmatprep.subr.mxu0 0.0
    %1828 = vmatpush1.msra.mxu0 0.0
    %1829 = vmatprep.subr.mxu0 0.0
    %1830 = vmatpush1.msra.mxu0 0.0
    %1831 = vmatprep.subr.mxu0 0.0
    %1832 = vmatpush1.msra.mxu0 0.0
    %1833 = vmatprep.subr.mxu0 0.0
    %1834 = vmatpush1.msra.mxu0 0.0
    %1835 = vmatprep.subr.mxu0 0.0
    %1836 = vmatpush1.msra.mxu0 0.0
    %1837 = vmatprep.subr.mxu0 0.0
    %1838 = vmatpush1.msra.mxu0 0.0
    %1839 = vmatprep.mubr.f32.mxu0 0.0
    %1840 = vmatmul.mubr.f32.gmra.mrb[0].mxu0 %v1770
    %v1841 = vpop.f32.mrb[0].mxu0
    %v1842 = vadd.f32 0.0, %v1841
    %v1843 = vpop.f32.mrb[0].mxu0
    %1844 = vmatprep.mubr.f32.mxu0 0.0
    %1845 = vmatmul.mubr.f32.gmra.mrb[0].mxu0 %v1773
    %v1846 = vpop.f32.mrb[0].mxu0
    %v1847 = vadd.f32 0.0, %v1846
    %v1848 = vpop.f32.mrb[0].mxu0
    %1849 = vdwg.mxu0
    %v1850 = vld [vmem:[%s6 + $0x5] sm:$0x1]
    %v1851 = vlaneseq
    %v1852 = vshrl.u32 %v1851, 7
    %v1853 = vsub.s32 0, %v1852
    %v1854 = vrot.slane %v1850, %v1853
    %v1855 = vadd.f32 %v1842, %v1854
    %v1856 = vadd.f32 %v1847, %v1854
    %v1857 = vld [vmem:[%s6 + $0x6] sm:$0x1]
    %v1858 = vlaneseq
    %v1859 = vshrl.u32 %v1858, 7
    %v1860 = vsub.s32 0, %v1859
    %v1861 = vrot.slane %v1857, %v1860
    %1863 = vrot.lane.b32.xlu0 %v1861, 32
    %v1864 = vpop.permute.xlu0 %1863
    %v1866 = vadd.f32 %v1842, %v1864
    %v1867 = vadd.f32 %v1847, %v1864
    %s1868 = scalar_lea.vmem %s1, 16
    %v1869 = vld [vmem:[%s1868] sm:$0xff]
    %v1870 = vld [vmem:[%s1868 + $0x8] sm:$0xff]
    %s1871 = scalar_lea.vmem %s3, 64
    %v1872 = vld [vmem:[%s1871] sm:$0xff]
    %v1873 = vld [vmem:[%s1871 + $0x8] sm:$0xff]
    %v1874 = vld [vmem:[%s1871 + $0x10] sm:$0xff]
    %v1875 = vld [vmem:[%s1871 + $0x18] sm:$0xff]
    %v1876 = vld [vmem:[%s6 + $0x7] sm:$0x1]
    %1879 = vrot.lane.b32.xlu0 %v1757, 120
    %v1880 = vpop.permute.xlu0 %1879
    %1881 = vrot.lane.b32.xlu0 %v1762, 120
    %v1882 = vpop.permute.xlu0 %1881
    %1883 = vrot.lane.b32.xlu0 %v1757, 112
    %v1884 = vpop.permute.xlu0 %1883
    %1885 = vrot.lane.b32.xlu0 %v1762, 112
    %v1886 = vpop.permute.xlu0 %1885
    %1887 = vrot.lane.b32.xlu0 %v1757, 104
    %v1888 = vpop.permute.xlu0 %1887
    %1889 = vrot.lane.b32.xlu0 %v1762, 104
    %v1890 = vpop.permute.xlu0 %1889
    %1893 = vrot.lane.b32.xlu0 %v1855, 120
    %v1894 = vpop.permute.xlu0 %1893
    %1895 = vrot.lane.b32.xlu0 %v1856, 120
    %v1896 = vpop.permute.xlu0 %1895
    %1897 = vrot.lane.b32.xlu0 %v1855, 112
    %v1898 = vpop.permute.xlu0 %1897
    %1899 = vrot.lane.b32.xlu0 %v1856, 112
    %v1900 = vpop.permute.xlu0 %1899
    %1901 = vrot.lane.b32.xlu0 %v1855, 104
    %v1902 = vpop.permute.xlu0 %1901
    %1903 = vrot.lane.b32.xlu0 %v1856, 104
    %v1904 = vpop.permute.xlu0 %1903
    %1907 = vrot.lane.b32.xlu0 %v1866, 120
    %v1908 = vpop.permute.xlu0 %1907
    %1909 = vrot.lane.b32.xlu0 %v1867, 120
    %v1910 = vpop.permute.xlu0 %1909
    %1911 = vrot.lane.b32.xlu0 %v1866, 112
    %v1912 = vpop.permute.xlu0 %1911
    %1913 = vrot.lane.b32.xlu0 %v1867, 112
    %v1914 = vpop.permute.xlu0 %1913
    %1915 = vrot.lane.b32.xlu0 %v1866, 104
    %v1916 = vpop.permute.xlu0 %1915
    %1917 = vrot.lane.b32.xlu0 %v1867, 104
    %v1918 = vpop.permute.xlu0 %1917
    %v1919 = vsel %vm197, %v1757, 0
    %v1921 = vsel %vm197, %v1855, 0
    %1923 = vmatprep.subr.mxu0 0.0
    %1924 = vmatpush1.xpose.msra.mxu0 %v1921
    %1925 = vmatprep.subr.mxu0 0.0
    %1926 = vmatpush1.xpose.msra.mxu0 0.0
    %1927 = vmatprep.subr.mxu0 0.0
    %1928 = vmatpush1.xpose.msra.mxu0 0.0
    %1929 = vmatprep.subr.mxu0 0.0
    %1930 = vmatpush1.xpose.msra.mxu0 0.0
    %1931 = vmatprep.subr.mxu0 0.0
    %1932 = vmatpush1.xpose.msra.mxu0 0.0
    %1933 = vmatprep.subr.mxu0 0.0
    %1934 = vmatpush1.xpose.msra.mxu0 0.0
    %1935 = vmatprep.subr.mxu0 0.0
    %1936 = vmatpush1.xpose.msra.mxu0 0.0
    %1937 = vmatprep.subr.mxu0 0.0
    %1938 = vmatpush1.xpose.msra.mxu0 0.0
    %1939 = vmatprep.subr.mxu0 0.0
    %1940 = vmatpush1.xpose.msra.mxu0 0.0
    %1941 = vmatprep.subr.mxu0 0.0
    %1942 = vmatpush1.xpose.msra.mxu0 0.0
    %1943 = vmatprep.subr.mxu0 0.0
    %1944 = vmatpush1.xpose.msra.mxu0 0.0
    %1945 = vmatprep.subr.mxu0 0.0
    %1946 = vmatpush1.xpose.msra.mxu0 0.0
    %1947 = vmatprep.subr.mxu0 0.0
    %1948 = vmatpush1.xpose.msra.mxu0 0.0
    %1949 = vmatprep.subr.mxu0 0.0
    %1950 = vmatpush1.xpose.msra.mxu0 0.0
    %1951 = vmatprep.subr.mxu0 0.0
    %1952 = vmatpush1.xpose.msra.mxu0 0.0
    %1953 = vmatprep.subr.mxu0 0.0
    %1954 = vmatpush1.xpose.msra.mxu0 0.0
    %1955 = vmatprep.subr.mxu0 0.0
    %1956 = vmatpush1.xpose.msra.mxu0 0.0
    %1957 = vmatprep.subr.mxu0 0.0
    %1958 = vmatpush1.xpose.msra.mxu0 0.0
    %1959 = vmatprep.subr.mxu0 0.0
    %1960 = vmatpush1.xpose.msra.mxu0 0.0
    %1961 = vmatprep.subr.mxu0 0.0
    %1962 = vmatpush1.xpose.msra.mxu0 0.0
    %1963 = vmatprep.subr.mxu0 0.0
    %1964 = vmatpush1.xpose.msra.mxu0 0.0
    %1965 = vmatprep.subr.mxu0 0.0
    %1966 = vmatpush1.xpose.msra.mxu0 0.0
    %1967 = vmatprep.subr.mxu0 0.0
    %1968 = vmatpush1.xpose.msra.mxu0 0.0
    %1969 = vmatprep.subr.mxu0 0.0
    %1970 = vmatpush1.xpose.msra.mxu0 0.0
    %1971 = vmatprep.subr.mxu0 0.0
    %1972 = vmatpush1.xpose.msra.mxu0 0.0
    %1973 = vmatprep.subr.mxu0 0.0
    %1974 = vmatpush1.xpose.msra.mxu0 0.0
    %1975 = vmatprep.subr.mxu0 0.0
    %1976 = vmatpush1.xpose.msra.mxu0 0.0
    %1977 = vmatprep.subr.mxu0 0.0
    %1978 = vmatpush1.xpose.msra.mxu0 0.0
    %1979 = vmatprep.subr.mxu0 0.0
    %1980 = vmatpush1.xpose.msra.mxu0 0.0
    %1981 = vmatprep.subr.mxu0 0.0
    %1982 = vmatpush1.xpose.msra.mxu0 0.0
    %1983 = vmatprep.subr.mxu0 0.0
    %1984 = vmatpush1.xpose.msra.mxu0 0.0
    %1985 = vmatprep.subr.mxu0 0.0
    %1986 = vmatpush1.xpose.msra.mxu0 0.0
    %1987 = vmatprep.mubr.f32.mxu0 0.0
    %1988 = vmatmul.mubr.f32.gmra.mrb[0].mxu0 %v1919
    %v1989 = vpop.f32.mrb[0].mxu0
    %v1990 = vadd.f32 0.0, %v1989
    %v1991 = vpop.f32.mrb[0].mxu0
    %1992 = vdwg.mxu0
    %v1993 = vsel %vm197, %v1762, 0
    %v1995 = vsel %vm197, %v1856, 0
    %1997 = vmatprep.subr.mxu0 0.0
    %1998 = vmatpush1.xpose.msra.mxu0 %v1995
    %1999 = vmatprep.subr.mxu0 0.0
    %2000 = vmatpush1.xpose.msra.mxu0 0.0
    %2001 = vmatprep.subr.mxu0 0.0
    %2002 = vmatpush1.xpose.msra.mxu0 0.0
    %2003 = vmatprep.subr.mxu0 0.0
    %2004 = vmatpush1.xpose.msra.mxu0 0.0
    %2005 = vmatprep.subr.mxu0 0.0
    %2006 = vmatpush1.xpose.msra.mxu0 0.0
    %2007 = vmatprep.subr.mxu0 0.0
    %2008 = vmatpush1.xpose.msra.mxu0 0.0
    %2009 = vmatprep.subr.mxu0 0.0
    %2010 = vmatpush1.xpose.msra.mxu0 0.0
    %2011 = vmatprep.subr.mxu0 0.0
    %2012 = vmatpush1.xpose.msra.mxu0 0.0
    %2013 = vmatprep.subr.mxu0 0.0
    %2014 = vmatpush1.xpose.msra.mxu0 0.0
    %2015 = vmatprep.subr.mxu0 0.0
    %2016 = vmatpush1.xpose.msra.mxu0 0.0
    %2017 = vmatprep.subr.mxu0 0.0
    %2018 = vmatpush1.xpose.msra.mxu0 0.0
    %2019 = vmatprep.subr.mxu0 0.0
    %2020 = vmatpush1.xpose.msra.mxu0 0.0
    %2021 = vmatprep.subr.mxu0 0.0
    %2022 = vmatpush1.xpose.msra.mxu0 0.0
    %2023 = vmatprep.subr.mxu0 0.0
    %2024 = vmatpush1.xpose.msra.mxu0 0.0
    %2025 = vmatprep.subr.mxu0 0.0
    %2026 = vmatpush1.xpose.msra.mxu0 0.0
    %2027 = vmatprep.subr.mxu0 0.0
    %2028 = vmatpush1.xpose.msra.mxu0 0.0
    %2029 = vmatprep.subr.mxu0 0.0
    %2030 = vmatpush1.xpose.msra.mxu0 0.0
    %2031 = vmatprep.subr.mxu0 0.0
    %2032 = vmatpush1.xpose.msra.mxu0 0.0
    %2033 = vmatprep.subr.mxu0 0.0
    %2034 = vmatpush1.xpose.msra.mxu0 0.0
    %2035 = vmatprep.subr.mxu0 0.0
    %2036 = vmatpush1.xpose.msra.mxu0 0.0
    %2037 = vmatprep.subr.mxu0 0.0
    %2038 = vmatpush1.xpose.msra.mxu0 0.0
    %2039 = vmatprep.subr.mxu0 0.0
    %2040 = vmatpush1.xpose.msra.mxu0 0.0
    %2041 = vmatprep.subr.mxu0 0.0
    %2042 = vmatpush1.xpose.msra.mxu0 0.0
    %2043 = vmatprep.subr.mxu0 0.0
    %2044 = vmatpush1.xpose.msra.mxu0 0.0
    %2045 = vmatprep.subr.mxu0 0.0
    %2046 = vmatpush1.xpose.msra.mxu0 0.0
    %2047 = vmatprep.subr.mxu0 0.0
    %2048 = vmatpush1.xpose.msra.mxu0 0.0
    %2049 = vmatprep.subr.mxu0 0.0
    %2050 = vmatpush1.xpose.msra.mxu0 0.0
    %2051 = vmatprep.subr.mxu0 0.0
    %2052 = vmatpush1.xpose.msra.mxu0 0.0
    %2053 = vmatprep.subr.mxu0 0.0
    %2054 = vmatpush1.xpose.msra.mxu0 0.0
    %2055 = vmatprep.subr.mxu0 0.0
    %2056 = vmatpush1.xpose.msra.mxu0 0.0
    %2057 = vmatprep.subr.mxu0 0.0
    %2058 = vmatpush1.xpose.msra.mxu0 0.0
    %2059 = vmatprep.subr.mxu0 0.0
    %2060 = vmatpush1.xpose.msra.mxu0 0.0
    %2061 = vmatprep.mubr.f32.mxu0 0.0
    %2062 = vmatmul.mubr.f32.gmra.mrb[0].mxu0 %v1993
    %v2063 = vpop.f32.mrb[0].mxu0
    %v2064 = vadd.f32 0.0, %v2063
    %v2065 = vpop.f32.mrb[0].mxu0
    %2066 = vdwg.mxu0
    %v2067 = vsel %vm197, %v1880, 0
    %v2069 = vsel %vm197, %v1894, 0
    %2071 = vmatprep.subr.mxu0 0.0
    %2072 = vmatpush1.xpose.msra.mxu0 %v2069
    %2073 = vmatprep.subr.mxu0 0.0
    %2074 = vmatpush1.xpose.msra.mxu0 0.0
    %2075 = vmatprep.subr.mxu0 0.0
    %2076 = vmatpush1.xpose.msra.mxu0 0.0
    %2077 = vmatprep.subr.mxu0 0.0
    %2078 = vmatpush1.xpose.msra.mxu0 0.0
    %2079 = vmatprep.subr.mxu0 0.0
    %2080 = vmatpush1.xpose.msra.mxu0 0.0
    %2081 = vmatprep.subr.mxu0 0.0
    %2082 = vmatpush1.xpose.msra.mxu0 0.0
    %2083 = vmatprep.subr.mxu0 0.0
    %2084 = vmatpush1.xpose.msra.mxu0 0.0
    %2085 = vmatprep.subr.mxu0 0.0
    %2086 = vmatpush1.xpose.msra.mxu0 0.0
    %2087 = vmatprep.subr.mxu0 0.0
    %2088 = vmatpush1.xpose.msra.mxu0 0.0
    %2089 = vmatprep.subr.mxu0 0.0
    %2090 = vmatpush1.xpose.msra.mxu0 0.0
    %2091 = vmatprep.subr.mxu0 0.0
    %2092 = vmatpush1.xpose.msra.mxu0 0.0
    %2093 = vmatprep.subr.mxu0 0.0
    %2094 = vmatpush1.xpose.msra.mxu0 0.0
    %2095 = vmatprep.subr.mxu0 0.0
    %2096 = vmatpush1.xpose.msra.mxu0 0.0
    %2097 = vmatprep.subr.mxu0 0.0
    %2098 = vmatpush1.xpose.msra.mxu0 0.0
    %2099 = vmatprep.subr.mxu0 0.0
    %2100 = vmatpush1.xpose.msra.mxu0 0.0
    %2101 = vmatprep.subr.mxu0 0.0
    %2102 = vmatpush1.xpose.msra.mxu0 0.0
    %2103 = vmatprep.subr.mxu0 0.0
    %2104 = vmatpush1.xpose.msra.mxu0 0.0
    %2105 = vmatprep.subr.mxu0 0.0
    %2106 = vmatpush1.xpose.msra.mxu0 0.0
    %2107 = vmatprep.subr.mxu0 0.0
    %2108 = vmatpush1.xpose.msra.mxu0 0.0
    %2109 = vmatprep.subr.mxu0 0.0
    %2110 = vmatpush1.xpose.msra.mxu0 0.0
    %2111 = vmatprep.subr.mxu0 0.0
    %2112 = vmatpush1.xpose.msra.mxu0 0.0
    %2113 = vmatprep.subr.mxu0 0.0
    %2114 = vmatpush1.xpose.msra.mxu0 0.0
    %2115 = vmatprep.subr.mxu0 0.0
    %2116 = vmatpush1.xpose.msra.mxu0 0.0
    %2117 = vmatprep.subr.mxu0 0.0
    %2118 = vmatpush1.xpose.msra.mxu0 0.0
    %2119 = vmatprep.subr.mxu0 0.0
    %2120 = vmatpush1.xpose.msra.mxu0 0.0
    %2121 = vmatprep.subr.mxu0 0.0
    %2122 = vmatpush1.xpose.msra.mxu0 0.0
    %2123 = vmatprep.subr.mxu0 0.0
    %2124 = vmatpush1.xpose.msra.mxu0 0.0
    %2125 = vmatprep.subr.mxu0 0.0
    %2126 = vmatpush1.xpose.msra.mxu0 0.0
    %2127 = vmatprep.subr.mxu0 0.0
    %2128 = vmatpush1.xpose.msra.mxu0 0.0
    %2129 = vmatprep.subr.mxu0 0.0
    %2130 = vmatpush1.xpose.msra.mxu0 0.0
    %2131 = vmatprep.subr.mxu0 0.0
    %2132 = vmatpush1.xpose.msra.mxu0 0.0
    %2133 = vmatprep.subr.mxu0 0.0
    %2134 = vmatpush1.xpose.msra.mxu0 0.0
    %2135 = vmatprep.mubr.f32.mxu0 0.0
    %2136 = vmatmul.mubr.f32.gmra.mrb[0].mxu0 %v2067
    %v2137 = vpop.f32.mrb[0].mxu0
    %v2138 = vadd.f32 0.0, %v2137
    %v2139 = vpop.f32.mrb[0].mxu0
    %2140 = vdwg.mxu0
    %v2141 = vsel %vm197, %v1882, 0
    %v2143 = vsel %vm197, %v1896, 0
    %2145 = vmatprep.subr.mxu0 0.0
    %2146 = vmatpush1.xpose.msra.mxu0 %v2143
    %2147 = vmatprep.subr.mxu0 0.0
    %2148 = vmatpush1.xpose.msra.mxu0 0.0
    %2149 = vmatprep.subr.mxu0 0.0
    %2150 = vmatpush1.xpose.msra.mxu0 0.0
    %2151 = vmatprep.subr.mxu0 0.0
    %2152 = vmatpush1.xpose.msra.mxu0 0.0
    %2153 = vmatprep.subr.mxu0 0.0
    %2154 = vmatpush1.xpose.msra.mxu0 0.0
    %2155 = vmatprep.subr.mxu0 0.0
    %2156 = vmatpush1.xpose.msra.mxu0 0.0
    %2157 = vmatprep.subr.mxu0 0.0
    %2158 = vmatpush1.xpose.msra.mxu0 0.0
    %2159 = vmatprep.subr.mxu0 0.0
    %2160 = vmatpush1.xpose.msra.mxu0 0.0
    %2161 = vmatprep.subr.mxu0 0.0
    %2162 = vmatpush1.xpose.msra.mxu0 0.0
    %2163 = vmatprep.subr.mxu0 0.0
    %2164 = vmatpush1.xpose.msra.mxu0 0.0
    %2165 = vmatprep.subr.mxu0 0.0
    %2166 = vmatpush1.xpose.msra.mxu0 0.0
    %2167 = vmatprep.subr.mxu0 0.0
    %2168 = vmatpush1.xpose.msra.mxu0 0.0
    %2169 = vmatprep.subr.mxu0 0.0
    %2170 = vmatpush1.xpose.msra.mxu0 0.0
    %2171 = vmatprep.subr.mxu0 0.0
    %2172 = vmatpush1.xpose.msra.mxu0 0.0
    %2173 = vmatprep.subr.mxu0 0.0
    %2174 = vmatpush1.xpose.msra.mxu0 0.0
    %2175 = vmatprep.subr.mxu0 0.0
    %2176 = vmatpush1.xpose.msra.mxu0 0.0
    %2177 = vmatprep.subr.mxu0 0.0
    %2178 = vmatpush1.xpose.msra.mxu0 0.0
    %2179 = vmatprep.subr.mxu0 0.0
    %2180 = vmatpush1.xpose.msra.mxu0 0.0
    %2181 = vmatprep.subr.mxu0 0.0
    %2182 = vmatpush1.xpose.msra.mxu0 0.0
    %2183 = vmatprep.subr.mxu0 0.0
    %2184 = vmatpush1.xpose.msra.mxu0 0.0
    %2185 = vmatprep.subr.mxu0 0.0
    %2186 = vmatpush1.xpose.msra.mxu0 0.0
    %2187 = vmatprep.subr.mxu0 0.0
    %2188 = vmatpush1.xpose.msra.mxu0 0.0
    %2189 = vmatprep.subr.mxu0 0.0
    %2190 = vmatpush1.xpose.msra.mxu0 0.0
    %2191 = vmatprep.subr.mxu0 0.0
    %2192 = vmatpush1.xpose.msra.mxu0 0.0
    %2193 = vmatprep.subr.mxu0 0.0
    %2194 = vmatpush1.xpose.msra.mxu0 0.0
    %2195 = vmatprep.subr.mxu0 0.0
    %2196 = vmatpush1.xpose.msra.mxu0 0.0
    %2197 = vmatprep.subr.mxu0 0.0
    %2198 = vmatpush1.xpose.msra.mxu0 0.0
    %2199 = vmatprep.subr.mxu0 0.0
    %2200 = vmatpush1.xpose.msra.mxu0 0.0
    %2201 = vmatprep.subr.mxu0 0.0
    %2202 = vmatpush1.xpose.msra.mxu0 0.0
    %2203 = vmatprep.subr.mxu0 0.0
    %2204 = vmatpush1.xpose.msra.mxu0 0.0
    %2205 = vmatprep.subr.mxu0 0.0
    %2206 = vmatpush1.xpose.msra.mxu0 0.0
    %2207 = vmatprep.subr.mxu0 0.0
    %2208 = vmatpush1.xpose.msra.mxu0 0.0
    %2209 = vmatprep.mubr.f32.mxu0 0.0
    %2210 = vmatmul.mubr.f32.gmra.mrb[0].mxu0 %v2141
    %v2211 = vpop.f32.mrb[0].mxu0
    %v2212 = vadd.f32 0.0, %v2211
    %v2213 = vpop.f32.mrb[0].mxu0
    %2214 = vdwg.mxu0
    %v2215 = vsel %vm197, %v1884, 0
    %v2217 = vsel %vm197, %v1898, 0
    %2219 = vmatprep.subr.mxu0 0.0
    %2220 = vmatpush1.xpose.msra.mxu0 %v2217
    %2221 = vmatprep.subr.mxu0 0.0
    %2222 = vmatpush1.xpose.msra.mxu0 0.0
    %2223 = vmatprep.subr.mxu0 0.0
    %2224 = vmatpush1.xpose.msra.mxu0 0.0
    %2225 = vmatprep.subr.mxu0 0.0
    %2226 = vmatpush1.xpose.msra.mxu0 0.0
    %2227 = vmatprep.subr.mxu0 0.0
    %2228 = vmatpush1.xpose.msra.mxu0 0.0
    %2229 = vmatprep.subr.mxu0 0.0
    %2230 = vmatpush1.xpose.msra.mxu0 0.0
    %2231 = vmatprep.subr.mxu0 0.0
    %2232 = vmatpush1.xpose.msra.mxu0 0.0
    %2233 = vmatprep.subr.mxu0 0.0
    %2234 = vmatpush1.xpose.msra.mxu0 0.0
    %2235 = vmatprep.subr.mxu0 0.0
    %2236 = vmatpush1.xpose.msra.mxu0 0.0
    %2237 = vmatprep.subr.mxu0 0.0
    %2238 = vmatpush1.xpose.msra.mxu0 0.0
    %2239 = vmatprep.subr.mxu0 0.0
    %2240 = vmatpush1.xpose.msra.mxu0 0.0
    %2241 = vmatprep.subr.mxu0 0.0
    %2242 = vmatpush1.xpose.msra.mxu0 0.0
    %2243 = vmatprep.subr.mxu0 0.0
    %2244 = vmatpush1.xpose.msra.mxu0 0.0
    %2245 = vmatprep.subr.mxu0 0.0
    %2246 = vmatpush1.xpose.msra.mxu0 0.0
    %2247 = vmatprep.subr.mxu0 0.0
    %2248 = vmatpush1.xpose.msra.mxu0 0.0
    %2249 = vmatprep.subr.mxu0 0.0
    %2250 = vmatpush1.xpose.msra.mxu0 0.0
    %2251 = vmatprep.subr.mxu0 0.0
    %2252 = vmatpush1.xpose.msra.mxu0 0.0
    %2253 = vmatprep.subr.mxu0 0.0
    %2254 = vmatpush1.xpose.msra.mxu0 0.0
    %2255 = vmatprep.subr.mxu0 0.0
    %2256 = vmatpush1.xpose.msra.mxu0 0.0
    %2257 = vmatprep.subr.mxu0 0.0
    %2258 = vmatpush1.xpose.msra.mxu0 0.0
    %2259 = vmatprep.subr.mxu0 0.0
    %2260 = vmatpush1.xpose.msra.mxu0 0.0
    %2261 = vmatprep.subr.mxu0 0.0
    %2262 = vmatpush1.xpose.msra.mxu0 0.0
    %2263 = vmatprep.subr.mxu0 0.0
    %2264 = vmatpush1.xpose.msra.mxu0 0.0
    %2265 = vmatprep.subr.mxu0 0.0
    %2266 = vmatpush1.xpose.msra.mxu0 0.0
    %2267 = vmatprep.subr.mxu0 0.0
    %2268 = vmatpush1.xpose.msra.mxu0 0.0
    %2269 = vmatprep.subr.mxu0 0.0
    %2270 = vmatpush1.xpose.msra.mxu0 0.0
    %2271 = vmatprep.subr.mxu0 0.0
    %2272 = vmatpush1.xpose.msra.mxu0 0.0
    %2273 = vmatprep.subr.mxu0 0.0
    %2274 = vmatpush1.xpose.msra.mxu0 0.0
    %2275 = vmatprep.subr.mxu0 0.0
    %2276 = vmatpush1.xpose.msra.mxu0 0.0
    %2277 = vmatprep.subr.mxu0 0.0
    %2278 = vmatpush1.xpose.msra.mxu0 0.0
    %2279 = vmatprep.subr.mxu0 0.0
    %2280 = vmatpush1.xpose.msra.mxu0 0.0
    %2281 = vmatprep.subr.mxu0 0.0
    %2282 = vmatpush1.xpose.msra.mxu0 0.0
    %2283 = vmatprep.mubr.f32.mxu0 0.0
    %2284 = vmatmul.mubr.f32.gmra.mrb[0].mxu0 %v2215
    %v2285 = vpop.f32.mrb[0].mxu0
    %v2286 = vadd.f32 0.0, %v2285
    %v2287 = vpop.f32.mrb[0].mxu0
    %2288 = vdwg.mxu0
    %v2289 = vsel %vm197, %v1886, 0
    %v2291 = vsel %vm197, %v1900, 0
    %2293 = vmatprep.subr.mxu0 0.0
    %2294 = vmatpush1.xpose.msra.mxu0 %v2291
    %2295 = vmatprep.subr.mxu0 0.0
    %2296 = vmatpush1.xpose.msra.mxu0 0.0
    %2297 = vmatprep.subr.mxu0 0.0
    %2298 = vmatpush1.xpose.msra.mxu0 0.0
    %2299 = vmatprep.subr.mxu0 0.0
    %2300 = vmatpush1.xpose.msra.mxu0 0.0
    %2301 = vmatprep.subr.mxu0 0.0
    %2302 = vmatpush1.xpose.msra.mxu0 0.0
    %2303 = vmatprep.subr.mxu0 0.0
    %2304 = vmatpush1.xpose.msra.mxu0 0.0
    %2305 = vmatprep.subr.mxu0 0.0
    %2306 = vmatpush1.xpose.msra.mxu0 0.0
    %2307 = vmatprep.subr.mxu0 0.0
    %2308 = vmatpush1.xpose.msra.mxu0 0.0
    %2309 = vmatprep.subr.mxu0 0.0
    %2310 = vmatpush1.xpose.msra.mxu0 0.0
    %2311 = vmatprep.subr.mxu0 0.0
    %2312 = vmatpush1.xpose.msra.mxu0 0.0
    %2313 = vmatprep.subr.mxu0 0.0
    %2314 = vmatpush1.xpose.msra.mxu0 0.0
    %2315 = vmatprep.subr.mxu0 0.0
    %2316 = vmatpush1.xpose.msra.mxu0 0.0
    %2317 = vmatprep.subr.mxu0 0.0
    %2318 = vmatpush1.xpose.msra.mxu0 0.0
    %2319 = vmatprep.subr.mxu0 0.0
    %2320 = vmatpush1.xpose.msra.mxu0 0.0
    %2321 = vmatprep.subr.mxu0 0.0
    %2322 = vmatpush1.xpose.msra.mxu0 0.0
    %2323 = vmatprep.subr.mxu0 0.0
    %2324 = vmatpush1.xpose.msra.mxu0 0.0
    %2325 = vmatprep.subr.mxu0 0.0
    %2326 = vmatpush1.xpose.msra.mxu0 0.0
    %2327 = vmatprep.subr.mxu0 0.0
    %2328 = vmatpush1.xpose.msra.mxu0 0.0
    %2329 = vmatprep.subr.mxu0 0.0
    %2330 = vmatpush1.xpose.msra.mxu0 0.0
    %2331 = vmatprep.subr.mxu0 0.0
    %2332 = vmatpush1.xpose.msra.mxu0 0.0
    %2333 = vmatprep.subr.mxu0 0.0
    %2334 = vmatpush1.xpose.msra.mxu0 0.0
    %2335 = vmatprep.subr.mxu0 0.0
    %2336 = vmatpush1.xpose.msra.mxu0 0.0
    %2337 = vmatprep.subr.mxu0 0.0
    %2338 = vmatpush1.xpose.msra.mxu0 0.0
    %2339 = vmatprep.subr.mxu0 0.0
    %2340 = vmatpush1.xpose.msra.mxu0 0.0
    %2341 = vmatprep.subr.mxu0 0.0
    %2342 = vmatpush1.xpose.msra.mxu0 0.0
    %2343 = vmatprep.subr.mxu0 0.0
    %2344 = vmatpush1.xpose.msra.mxu0 0.0
    %2345 = vmatprep.subr.mxu0 0.0
    %2346 = vmatpush1.xpose.msra.mxu0 0.0
    %2347 = vmatprep.subr.mxu0 0.0
    %2348 = vmatpush1.xpose.msra.mxu0 0.0
    %2349 = vmatprep.subr.mxu0 0.0
    %2350 = vmatpush1.xpose.msra.mxu0 0.0
    %2351 = vmatprep.subr.mxu0 0.0
    %2352 = vmatpush1.xpose.msra.mxu0 0.0
    %2353 = vmatprep.subr.mxu0 0.0
    %2354 = vmatpush1.xpose.msra.mxu0 0.0
    %2355 = vmatprep.subr.mxu0 0.0
    %2356 = vmatpush1.xpose.msra.mxu0 0.0
    %2357 = vmatprep.mubr.f32.mxu0 0.0
    %2358 = vmatmul.mubr.f32.gmra.mrb[0].mxu0 %v2289
    %v2359 = vpop.f32.mrb[0].mxu0
    %v2360 = vadd.f32 0.0, %v2359
    %v2361 = vpop.f32.mrb[0].mxu0
    %2362 = vdwg.mxu0
    %v2363 = vsel %vm197, %v1888, 0
    %v2365 = vsel %vm197, %v1902, 0
    %2367 = vmatprep.subr.mxu0 0.0
    %2368 = vmatpush1.xpose.msra.mxu0 %v2365
    %2369 = vmatprep.subr.mxu0 0.0
    %2370 = vmatpush1.xpose.msra.mxu0 0.0
    %2371 = vmatprep.subr.mxu0 0.0
    %2372 = vmatpush1.xpose.msra.mxu0 0.0
    %2373 = vmatprep.subr.mxu0 0.0
    %2374 = vmatpush1.xpose.msra.mxu0 0.0
    %2375 = vmatprep.subr.mxu0 0.0
    %2376 = vmatpush1.xpose.msra.mxu0 0.0
    %2377 = vmatprep.subr.mxu0 0.0
    %2378 = vmatpush1.xpose.msra.mxu0 0.0
    %2379 = vmatprep.subr.mxu0 0.0
    %2380 = vmatpush1.xpose.msra.mxu0 0.0
    %2381 = vmatprep.subr.mxu0 0.0
    %2382 = vmatpush1.xpose.msra.mxu0 0.0
    %2383 = vmatprep.subr.mxu0 0.0
    %2384 = vmatpush1.xpose.msra.mxu0 0.0
    %2385 = vmatprep.subr.mxu0 0.0
    %2386 = vmatpush1.xpose.msra.mxu0 0.0
    %2387 = vmatprep.subr.mxu0 0.0
    %2388 = vmatpush1.xpose.msra.mxu0 0.0
    %2389 = vmatprep.subr.mxu0 0.0
    %2390 = vmatpush1.xpose.msra.mxu0 0.0
    %2391 = vmatprep.subr.mxu0 0.0
    %2392 = vmatpush1.xpose.msra.mxu0 0.0
    %2393 = vmatprep.subr.mxu0 0.0
    %2394 = vmatpush1.xpose.msra.mxu0 0.0
    %2395 = vmatprep.subr.mxu0 0.0
    %2396 = vmatpush1.xpose.msra.mxu0 0.0
    %2397 = vmatprep.subr.mxu0 0.0
    %2398 = vmatpush1.xpose.msra.mxu0 0.0
    %2399 = vmatprep.subr.mxu0 0.0
    %2400 = vmatpush1.xpose.msra.mxu0 0.0
    %2401 = vmatprep.subr.mxu0 0.0
    %2402 = vmatpush1.xpose.msra.mxu0 0.0
    %2403 = vmatprep.subr.mxu0 0.0
    %2404 = vmatpush1.xpose.msra.mxu0 0.0
    %2405 = vmatprep.subr.mxu0 0.0
    %2406 = vmatpush1.xpose.msra.mxu0 0.0
    %2407 = vmatprep.subr.mxu0 0.0
    %2408 = vmatpush1.xpose.msra.mxu0 0.0
    %2409 = vmatprep.subr.mxu0 0.0
    %2410 = vmatpush1.xpose.msra.mxu0 0.0
    %2411 = vmatprep.subr.mxu0 0.0
    %2412 = vmatpush1.xpose.msra.mxu0 0.0
    %2413 = vmatprep.subr.mxu0 0.0
    %2414 = vmatpush1.xpose.msra.mxu0 0.0
    %2415 = vmatprep.subr.mxu0 0.0
    %2416 = vmatpush1.xpose.msra.mxu0 0.0
    %2417 = vmatprep.subr.mxu0 0.0
    %2418 = vmatpush1.xpose.msra.mxu0 0.0
    %2419 = vmatprep.subr.mxu0 0.0
    %2420 = vmatpush1.xpose.msra.mxu0 0.0
    %2421 = vmatprep.subr.mxu0 0.0
    %2422 = vmatpush1.xpose.msra.mxu0 0.0
    %2423 = vmatprep.subr.mxu0 0.0
    %2424 = vmatpush1.xpose.msra.mxu0 0.0
    %2425 = vmatprep.subr.mxu0 0.0
    %2426 = vmatpush1.xpose.msra.mxu0 0.0
    %2427 = vmatprep.subr.mxu0 0.0
    %2428 = vmatpush1.xpose.msra.mxu0 0.0
    %2429 = vmatprep.subr.mxu0 0.0
    %2430 = vmatpush1.xpose.msra.mxu0 0.0
    %2431 = vmatprep.mubr.f32.mxu0 0.0
    %2432 = vmatmul.mubr.f32.gmra.mrb[0].mxu0 %v2363
    %v2433 = vpop.f32.mrb[0].mxu0
    %v2434 = vadd.f32 0.0, %v2433
    %v2435 = vpop.f32.mrb[0].mxu0
    %2436 = vdwg.mxu0
    %v2437 = vsel %vm197, %v1890, 0
    %v2439 = vsel %vm197, %v1904, 0
    %2441 = vmatprep.subr.mxu0 0.0
    %2442 = vmatpush1.xpose.msra.mxu0 %v2439
    %2443 = vmatprep.subr.mxu0 0.0
    %2444 = vmatpush1.xpose.msra.mxu0 0.0
    %2445 = vmatprep.subr.mxu0 0.0
    %2446 = vmatpush1.xpose.msra.mxu0 0.0
    %2447 = vmatprep.subr.mxu0 0.0
    %2448 = vmatpush1.xpose.msra.mxu0 0.0
    %2449 = vmatprep.subr.mxu0 0.0
    %2450 = vmatpush1.xpose.msra.mxu0 0.0
    %2451 = vmatprep.subr.mxu0 0.0
    %2452 = vmatpush1.xpose.msra.mxu0 0.0
    %2453 = vmatprep.subr.mxu0 0.0
    %2454 = vmatpush1.xpose.msra.mxu0 0.0
    %2455 = vmatprep.subr.mxu0 0.0
    %2456 = vmatpush1.xpose.msra.mxu0 0.0
    %2457 = vmatprep.subr.mxu0 0.0
    %2458 = vmatpush1.xpose.msra.mxu0 0.0
    %2459 = vmatprep.subr.mxu0 0.0
    %2460 = vmatpush1.xpose.msra.mxu0 0.0
    %2461 = vmatprep.subr.mxu0 0.0
    %2462 = vmatpush1.xpose.msra.mxu0 0.0
    %2463 = vmatprep.subr.mxu0 0.0
    %2464 = vmatpush1.xpose.msra.mxu0 0.0
    %2465 = vmatprep.subr.mxu0 0.0
    %2466 = vmatpush1.xpose.msra.mxu0 0.0
    %2467 = vmatprep.subr.mxu0 0.0
    %2468 = vmatpush1.xpose.msra.mxu0 0.0
    %2469 = vmatprep.subr.mxu0 0.0
    %2470 = vmatpush1.xpose.msra.mxu0 0.0
    %2471 = vmatprep.subr.mxu0 0.0
    %2472 = vmatpush1.xpose.msra.mxu0 0.0
    %2473 = vmatprep.subr.mxu0 0.0
    %2474 = vmatpush1.xpose.msra.mxu0 0.0
    %2475 = vmatprep.subr.mxu0 0.0
    %2476 = vmatpush1.xpose.msra.mxu0 0.0
    %2477 = vmatprep.subr.mxu0 0.0
    %2478 = vmatpush1.xpose.msra.mxu0 0.0
    %2479 = vmatprep.subr.mxu0 0.0
    %2480 = vmatpush1.xpose.msra.mxu0 0.0
    %2481 = vmatprep.subr.mxu0 0.0
    %2482 = vmatpush1.xpose.msra.mxu0 0.0
    %2483 = vmatprep.subr.mxu0 0.0
    %2484 = vmatpush1.xpose.msra.mxu0 0.0
    %2485 = vmatprep.subr.mxu0 0.0
    %2486 = vmatpush1.xpose.msra.mxu0 0.0
    %2487 = vmatprep.subr.mxu0 0.0
    %2488 = vmatpush1.xpose.msra.mxu0 0.0
    %2489 = vmatprep.subr.mxu0 0.0
    %2490 = vmatpush1.xpose.msra.mxu0 0.0
    %2491 = vmatprep.subr.mxu0 0.0
    %2492 = vmatpush1.xpose.msra.mxu0 0.0
    %2493 = vmatprep.subr.mxu0 0.0
    %2494 = vmatpush1.xpose.msra.mxu0 0.0
    %2495 = vmatprep.subr.mxu0 0.0
    %2496 = vmatpush1.xpose.msra.mxu0 0.0
    %2497 = vmatprep.subr.mxu0 0.0
    %2498 = vmatpush1.xpose.msra.mxu0 0.0
    %2499 = vmatprep.subr.mxu0 0.0
    %2500 = vmatpush1.xpose.msra.mxu0 0.0
    %2501 = vmatprep.subr.mxu0 0.0
    %2502 = vmatpush1.xpose.msra.mxu0 0.0
    %2503 = vmatprep.subr.mxu0 0.0
    %2504 = vmatpush1.xpose.msra.mxu0 0.0
    %2505 = vmatprep.mubr.f32.mxu0 0.0
    %2506 = vmatmul.mubr.f32.gmra.mrb[0].mxu0 %v2437
    %v2507 = vpop.f32.mrb[0].mxu0
    %v2508 = vadd.f32 0.0, %v2507
    %v2509 = vpop.f32.mrb[0].mxu0
    %2510 = vdwg.mxu0
    %vm2511 = vcmp.eq.f32.partialorder %v1869, 0.0
    %vm2512 = vcmp.eq.f32.partialorder %v1870, 0.0
    %v2513 = vsel %vm2511, 1, 0
    %v2514 = vsel %vm2512, 1, 0
    %vm2515 = vcmp.eq.s32.totalorder %v2513, 1
    %vm2516 = vcmp.eq.s32.totalorder %v2514, 1
    %v2517 = vsel %vm2515, -1e+09, %v1990
    %v2518 = vsel %vm2516, -1e+09, %v2064
    %v2519 = vsel %vm2515, -1e+09, %v2138
    %v2520 = vsel %vm2516, -1e+09, %v2212
    %v2521 = vsel %vm2515, -1e+09, %v2286
    %v2522 = vsel %vm2516, -1e+09, %v2360
    %v2523 = vsel %vm2515, -1e+09, %v2434
    %v2524 = vsel %vm2516, -1e+09, %v2508
    %v2525 = vsel %vm197, %v2517, -inf
    %2526 = vmax.xlane.f32.xlu0 %v2525
    %v2527 = vpop.xlane.xlu0 %2526
    %v2528 = vsel %vm197, %v2518, -inf
    %2529 = vmax.xlane.f32.xlu0 %v2528
    %v2530 = vpop.xlane.xlu0 %2529
    %v2531 = vsel %vm197, %v2519, -inf
    %2532 = vmax.xlane.f32.xlu0 %v2531
    %v2533 = vpop.xlane.xlu0 %2532
    %v2534 = vsel %vm197, %v2520, -inf
    %2535 = vmax.xlane.f32.xlu0 %v2534
    %v2536 = vpop.xlane.xlu0 %2535
    %v2537 = vsel %vm197, %v2521, -inf
    %2538 = vmax.xlane.f32.xlu0 %v2537
    %v2539 = vpop.xlane.xlu0 %2538
    %v2540 = vsel %vm197, %v2522, -inf
    %2541 = vmax.xlane.f32.xlu0 %v2540
    %v2542 = vpop.xlane.xlu0 %2541
    %v2543 = vsel %vm197, %v2523, -inf
    %2544 = vmax.xlane.f32.xlu0 %v2543
    %v2545 = vpop.xlane.xlu0 %2544
    %v2546 = vsel %vm197, %v2524, -inf
    %2547 = vmax.xlane.f32.xlu0 %v2546
    %v2548 = vpop.xlane.xlu0 %2547
    %v2549 = vsub.f32 %v2517, %v2527
    %v2550 = vsub.f32 %v2518, %v2530
    %v2551 = vsub.f32 %v2519, %v2533
    %v2552 = vsub.f32 %v2520, %v2536
    %v2553 = vsub.f32 %v2521, %v2539
    %v2554 = vsub.f32 %v2522, %v2542
    %v2555 = vsub.f32 %v2523, %v2545
    %v2556 = vsub.f32 %v2524, %v2548
    %v2557 = vmul.f32 %v2549, 1.442695
    %v2558 = vpow.pop %v2557
    %v2559 = vmul.f32 %v2550, 1.442695
    %v2560 = vpow.pop %v2559
    %v2561 = vmul.f32 %v2551, 1.442695
    %v2562 = vpow.pop %v2561
    %v2563 = vmul.f32 %v2552, 1.442695
    %v2564 = vpow.pop %v2563
    %v2565 = vmul.f32 %v2553, 1.442695
    %v2566 = vpow.pop %v2565
    %v2567 = vmul.f32 %v2554, 1.442695
    %v2568 = vpow.pop %v2567
    %v2569 = vmul.f32 %v2555, 1.442695
    %v2570 = vpow.pop %v2569
    %v2571 = vmul.f32 %v2556, 1.442695
    %v2572 = vpow.pop %v2571
    %v2573 = vsel %vm197, %v2558, 0.0
    %2574 = vadd.xlane.f32.xlu0 %v2573
    %v2575 = vpop.xlane.xlu0 %2574
    %v2576 = vsel %vm197, %v2560, 0.0
    %2577 = vadd.xlane.f32.xlu0 %v2576
    %v2578 = vpop.xlane.xlu0 %2577
    %v2579 = vsel %vm197, %v2562, 0.0
    %2580 = vadd.xlane.f32.xlu0 %v2579
    %v2581 = vpop.xlane.xlu0 %2580
    %v2582 = vsel %vm197, %v2564, 0.0
    %2583 = vadd.xlane.f32.xlu0 %v2582
    %v2584 = vpop.xlane.xlu0 %2583
    %v2585 = vsel %vm197, %v2566, 0.0
    %2586 = vadd.xlane.f32.xlu0 %v2585
    %v2587 = vpop.xlane.xlu0 %2586
    %v2588 = vsel %vm197, %v2568, 0.0
    %2589 = vadd.xlane.f32.xlu0 %v2588
    %v2590 = vpop.xlane.xlu0 %2589
    %v2591 = vsel %vm197, %v2570, 0.0
    %2592 = vadd.xlane.f32.xlu0 %v2591
    %v2593 = vpop.xlane.xlu0 %2592
    %v2594 = vsel %vm197, %v2572, 0.0
    %2595 = vadd.xlane.f32.xlu0 %v2594
    %v2596 = vpop.xlane.xlu0 %2595
    %v2597 = vrcp.pop %v2575
    %v2598 = vmul.f32 %v2558, %v2597
    %v2599 = vrcp.pop %v2578
    %v2600 = vmul.f32 %v2560, %v2599
    %v2601 = vrcp.pop %v2581
    %v2602 = vmul.f32 %v2562, %v2601
    %v2603 = vrcp.pop %v2584
    %v2604 = vmul.f32 %v2564, %v2603
    %v2605 = vrcp.pop %v2587
    %v2606 = vmul.f32 %v2566, %v2605
    %v2607 = vrcp.pop %v2590
    %v2608 = vmul.f32 %v2568, %v2607
    %v2609 = vrcp.pop %v2593
    %v2610 = vmul.f32 %v2570, %v2609
    %v2611 = vrcp.pop %v2596
    %v2612 = vmul.f32 %v2572, %v2611
    %2613 = vrot.lane.b32.xlu0 %v1866, 96
    %v2614 = vpop.permute.xlu0 %2613
    %v2617 = vsel %vm197, %v2598, 0
    %2619 = vmatprep.subr.mxu0 0.0
    %2620 = vmatpush1.msra.mxu0 %v2614
    %2621 = vmatprep.subr.mxu0 0.0
    %2622 = vmatpush1.msra.mxu0 0.0
    %2623 = vmatprep.subr.mxu0 0.0
    %2624 = vmatpush1.msra.mxu0 0.0
    %2625 = vmatprep.subr.mxu0 0.0
    %2626 = vmatpush1.msra.mxu0 0.0
    %2627 = vmatprep.subr.mxu0 0.0
    %2628 = vmatpush1.msra.mxu0 0.0
    %2629 = vmatprep.subr.mxu0 0.0
    %2630 = vmatpush1.msra.mxu0 0.0
    %2631 = vmatprep.subr.mxu0 0.0
    %2632 = vmatpush1.msra.mxu0 0.0
    %2633 = vmatprep.subr.mxu0 0.0
    %2634 = vmatpush1.msra.mxu0 0.0
    %2635 = vmatprep.subr.mxu0 0.0
    %2636 = vmatpush1.msra.mxu0 0.0
    %2637 = vmatprep.subr.mxu0 0.0
    %2638 = vmatpush1.msra.mxu0 0.0
    %2639 = vmatprep.subr.mxu0 0.0
    %2640 = vmatpush1.msra.mxu0 0.0
    %2641 = vmatprep.subr.mxu0 0.0
    %2642 = vmatpush1.msra.mxu0 0.0
    %2643 = vmatprep.subr.mxu0 0.0
    %2644 = vmatpush1.msra.mxu0 0.0
    %2645 = vmatprep.subr.mxu0 0.0
    %2646 = vmatpush1.msra.mxu0 0.0
    %2647 = vmatprep.subr.mxu0 0.0
    %2648 = vmatpush1.msra.mxu0 0.0
    %2649 = vmatprep.subr.mxu0 0.0
    %2650 = vmatpush1.msra.mxu0 0.0
    %2651 = vmatprep.subr.mxu0 0.0
    %2652 = vmatpush1.msra.mxu0 0.0
    %2653 = vmatprep.subr.mxu0 0.0
    %2654 = vmatpush1.msra.mxu0 0.0
    %2655 = vmatprep.subr.mxu0 0.0
    %2656 = vmatpush1.msra.mxu0 0.0
    %2657 = vmatprep.subr.mxu0 0.0
    %2658 = vmatpush1.msra.mxu0 0.0
    %2659 = vmatprep.subr.mxu0 0.0
    %2660 = vmatpush1.msra.mxu0 0.0
    %2661 = vmatprep.subr.mxu0 0.0
    %2662 = vmatpush1.msra.mxu0 0.0
    %2663 = vmatprep.subr.mxu0 0.0
    %2664 = vmatpush1.msra.mxu0 0.0
    %2665 = vmatprep.subr.mxu0 0.0
    %2666 = vmatpush1.msra.mxu0 0.0
    %2667 = vmatprep.subr.mxu0 0.0
    %2668 = vmatpush1.msra.mxu0 0.0
    %2669 = vmatprep.subr.mxu0 0.0
    %2670 = vmatpush1.msra.mxu0 0.0
    %2671 = vmatprep.subr.mxu0 0.0
    %2672 = vmatpush1.msra.mxu0 0.0
    %2673 = vmatprep.subr.mxu0 0.0
    %2674 = vmatpush1.msra.mxu0 0.0
    %2675 = vmatprep.subr.mxu0 0.0
    %2676 = vmatpush1.msra.mxu0 0.0
    %2677 = vmatprep.subr.mxu0 0.0
    %2678 = vmatpush1.msra.mxu0 0.0
    %2679 = vmatprep.subr.mxu0 0.0
    %2680 = vmatpush1.msra.mxu0 0.0
    %2681 = vmatprep.subr.mxu0 0.0
    %2682 = vmatpush1.msra.mxu0 0.0
    %2683 = vmatprep.mubr.f32.mxu0 0.0
    %2684 = vmatmul.mubr.f32.gmra.mrb[0].mxu0 %v2617
    %v2685 = vpop.f32.mrb[0].mxu0
    %v2686 = vadd.f32 0.0, %v2685
    %v2687 = vpop.f32.mrb[0].mxu0
    %2688 = vdwg.mxu0
    %2689 = vrot.lane.b32.xlu0 %v1867, 96
    %v2690 = vpop.permute.xlu0 %2689
    %v2693 = vsel %vm197, %v2600, 0
    %2695 = vmatprep.subr.mxu0 0.0
    %2696 = vmatpush1.msra.mxu0 %v2690
    %2697 = vmatprep.subr.mxu0 0.0
    %2698 = vmatpush1.msra.mxu0 0.0
    %2699 = vmatprep.subr.mxu0 0.0
    %2700 = vmatpush1.msra.mxu0 0.0
    %2701 = vmatprep.subr.mxu0 0.0
    %2702 = vmatpush1.msra.mxu0 0.0
    %2703 = vmatprep.subr.mxu0 0.0
    %2704 = vmatpush1.msra.mxu0 0.0
    %2705 = vmatprep.subr.mxu0 0.0
    %2706 = vmatpush1.msra.mxu0 0.0
    %2707 = vmatprep.subr.mxu0 0.0
    %2708 = vmatpush1.msra.mxu0 0.0
    %2709 = vmatprep.subr.mxu0 0.0
    %2710 = vmatpush1.msra.mxu0 0.0
    %2711 = vmatprep.subr.mxu0 0.0
    %2712 = vmatpush1.msra.mxu0 0.0
    %2713 = vmatprep.subr.mxu0 0.0
    %2714 = vmatpush1.msra.mxu0 0.0
    %2715 = vmatprep.subr.mxu0 0.0
    %2716 = vmatpush1.msra.mxu0 0.0
    %2717 = vmatprep.subr.mxu0 0.0
    %2718 = vmatpush1.msra.mxu0 0.0
    %2719 = vmatprep.subr.mxu0 0.0
    %2720 = vmatpush1.msra.mxu0 0.0
    %2721 = vmatprep.subr.mxu0 0.0
    %2722 = vmatpush1.msra.mxu0 0.0
    %2723 = vmatprep.subr.mxu0 0.0
    %2724 = vmatpush1.msra.mxu0 0.0
    %2725 = vmatprep.subr.mxu0 0.0
    %2726 = vmatpush1.msra.mxu0 0.0
    %2727 = vmatprep.subr.mxu0 0.0
    %2728 = vmatpush1.msra.mxu0 0.0
    %2729 = vmatprep.subr.mxu0 0.0
    %2730 = vmatpush1.msra.mxu0 0.0
    %2731 = vmatprep.subr.mxu0 0.0
    %2732 = vmatpush1.msra.mxu0 0.0
    %2733 = vmatprep.subr.mxu0 0.0
    %2734 = vmatpush1.msra.mxu0 0.0
    %2735 = vmatprep.subr.mxu0 0.0
    %2736 = vmatpush1.msra.mxu0 0.0
    %2737 = vmatprep.subr.mxu0 0.0
    %2738 = vmatpush1.msra.mxu0 0.0
    %2739 = vmatprep.subr.mxu0 0.0
    %2740 = vmatpush1.msra.mxu0 0.0
    %2741 = vmatprep.subr.mxu0 0.0
    %2742 = vmatpush1.msra.mxu0 0.0
    %2743 = vmatprep.subr.mxu0 0.0
    %2744 = vmatpush1.msra.mxu0 0.0
    %2745 = vmatprep.subr.mxu0 0.0
    %2746 = vmatpush1.msra.mxu0 0.0
    %2747 = vmatprep.subr.mxu0 0.0
    %2748 = vmatpush1.msra.mxu0 0.0
    %2749 = vmatprep.subr.mxu0 0.0
    %2750 = vmatpush1.msra.mxu0 0.0
    %2751 = vmatprep.subr.mxu0 0.0
    %2752 = vmatpush1.msra.mxu0 0.0
    %2753 = vmatprep.subr.mxu0 0.0
    %2754 = vmatpush1.msra.mxu0 0.0
    %2755 = vmatprep.subr.mxu0 0.0
    %2756 = vmatpush1.msra.mxu0 0.0
    %2757 = vmatprep.subr.mxu0 0.0
    %2758 = vmatpush1.msra.mxu0 0.0
    %2759 = vmatprep.mubr.f32.mxu0 0.0
    %2760 = vmatmul.mubr.f32.gmra.mrb[0].mxu0 %v2693
    %v2761 = vpop.f32.mrb[0].mxu0
    %v2762 = vadd.f32 0.0, %v2761
    %v2763 = vpop.f32.mrb[0].mxu0
    %2764 = vdwg.mxu0
    %2765 = vrot.lane.b32.xlu0 %v1908, 96
    %v2766 = vpop.permute.xlu0 %2765
    %v2769 = vsel %vm197, %v2602, 0
    %2771 = vmatprep.subr.mxu0 0.0
    %2772 = vmatpush1.msra.mxu0 %v2766
    %2773 = vmatprep.subr.mxu0 0.0
    %2774 = vmatpush1.msra.mxu0 0.0
    %2775 = vmatprep.subr.mxu0 0.0
    %2776 = vmatpush1.msra.mxu0 0.0
    %2777 = vmatprep.subr.mxu0 0.0
    %2778 = vmatpush1.msra.mxu0 0.0
    %2779 = vmatprep.subr.mxu0 0.0
    %2780 = vmatpush1.msra.mxu0 0.0
    %2781 = vmatprep.subr.mxu0 0.0
    %2782 = vmatpush1.msra.mxu0 0.0
    %2783 = vmatprep.subr.mxu0 0.0
    %2784 = vmatpush1.msra.mxu0 0.0
    %2785 = vmatprep.subr.mxu0 0.0
    %2786 = vmatpush1.msra.mxu0 0.0
    %2787 = vmatprep.subr.mxu0 0.0
    %2788 = vmatpush1.msra.mxu0 0.0
    %2789 = vmatprep.subr.mxu0 0.0
    %2790 = vmatpush1.msra.mxu0 0.0
    %2791 = vmatprep.subr.mxu0 0.0
    %2792 = vmatpush1.msra.mxu0 0.0
    %2793 = vmatprep.subr.mxu0 0.0
    %2794 = vmatpush1.msra.mxu0 0.0
    %2795 = vmatprep.subr.mxu0 0.0
    %2796 = vmatpush1.msra.mxu0 0.0
    %2797 = vmatprep.subr.mxu0 0.0
    %2798 = vmatpush1.msra.mxu0 0.0
    %2799 = vmatprep.subr.mxu0 0.0
    %2800 = vmatpush1.msra.mxu0 0.0
    %2801 = vmatprep.subr.mxu0 0.0
    %2802 = vmatpush1.msra.mxu0 0.0
    %2803 = vmatprep.subr.mxu0 0.0
    %2804 = vmatpush1.msra.mxu0 0.0
    %2805 = vmatprep.subr.mxu0 0.0
    %2806 = vmatpush1.msra.mxu0 0.0
    %2807 = vmatprep.subr.mxu0 0.0
    %2808 = vmatpush1.msra.mxu0 0.0
    %2809 = vmatprep.subr.mxu0 0.0
    %2810 = vmatpush1.msra.mxu0 0.0
    %2811 = vmatprep.subr.mxu0 0.0
    %2812 = vmatpush1.msra.mxu0 0.0
    %2813 = vmatprep.subr.mxu0 0.0
    %2814 = vmatpush1.msra.mxu0 0.0
    %2815 = vmatprep.subr.mxu0 0.0
    %2816 = vmatpush1.msra.mxu0 0.0
    %2817 = vmatprep.subr.mxu0 0.0
    %2818 = vmatpush1.msra.mxu0 0.0
    %2819 = vmatprep.subr.mxu0 0.0
    %2820 = vmatpush1.msra.mxu0 0.0
    %2821 = vmatprep.subr.mxu0 0.0
    %2822 = vmatpush1.msra.mxu0 0.0
    %2823 = vmatprep.subr.mxu0 0.0
    %2824 = vmatpush1.msra.mxu0 0.0
    %2825 = vmatprep.subr.mxu0 0.0
    %2826 = vmatpush1.msra.mxu0 0.0
    %2827 = vmatprep.subr.mxu0 0.0
    %2828 = vmatpush1.msra.mxu0 0.0
    %2829 = vmatprep.subr.mxu0 0.0
    %2830 = vmatpush1.msra.mxu0 0.0
    %2831 = vmatprep.subr.mxu0 0.0
    %2832 = vmatpush1.msra.mxu0 0.0
    %2833 = vmatprep.subr.mxu0 0.0
    %2834 = vmatpush1.msra.mxu0 0.0
    %2835 = vmatprep.mubr.f32.mxu0 0.0
    %2836 = vmatmul.mubr.f32.gmra.mrb[0].mxu0 %v2769
    %v2837 = vpop.f32.mrb[0].mxu0
    %v2838 = vadd.f32 0.0, %v2837
    %v2839 = vpop.f32.mrb[0].mxu0
    %2840 = vdwg.mxu0
    %2841 = vrot.lane.b32.xlu0 %v1910, 96
    %v2842 = vpop.permute.xlu0 %2841
    %v2845 = vsel %vm197, %v2604, 0
    %2847 = vmatprep.subr.mxu0 0.0
    %2848 = vmatpush1.msra.mxu0 %v2842
    %2849 = vmatprep.subr.mxu0 0.0
    %2850 = vmatpush1.msra.mxu0 0.0
    %2851 = vmatprep.subr.mxu0 0.0
    %2852 = vmatpush1.msra.mxu0 0.0
    %2853 = vmatprep.subr.mxu0 0.0
    %2854 = vmatpush1.msra.mxu0 0.0
    %2855 = vmatprep.subr.mxu0 0.0
    %2856 = vmatpush1.msra.mxu0 0.0
    %2857 = vmatprep.subr.mxu0 0.0
    %2858 = vmatpush1.msra.mxu0 0.0
    %2859 = vmatprep.subr.mxu0 0.0
    %2860 = vmatpush1.msra.mxu0 0.0
    %2861 = vmatprep.subr.mxu0 0.0
    %2862 = vmatpush1.msra.mxu0 0.0
    %2863 = vmatprep.subr.mxu0 0.0
    %2864 = vmatpush1.msra.mxu0 0.0
    %2865 = vmatprep.subr.mxu0 0.0
    %2866 = vmatpush1.msra.mxu0 0.0
    %2867 = vmatprep.subr.mxu0 0.0
    %2868 = vmatpush1.msra.mxu0 0.0
    %2869 = vmatprep.subr.mxu0 0.0
    %2870 = vmatpush1.msra.mxu0 0.0
    %2871 = vmatprep.subr.mxu0 0.0
    %2872 = vmatpush1.msra.mxu0 0.0
    %2873 = vmatprep.subr.mxu0 0.0
    %2874 = vmatpush1.msra.mxu0 0.0
    %2875 = vmatprep.subr.mxu0 0.0
    %2876 = vmatpush1.msra.mxu0 0.0
    %2877 = vmatprep.subr.mxu0 0.0
    %2878 = vmatpush1.msra.mxu0 0.0
    %2879 = vmatprep.subr.mxu0 0.0
    %2880 = vmatpush1.msra.mxu0 0.0
    %2881 = vmatprep.subr.mxu0 0.0
    %2882 = vmatpush1.msra.mxu0 0.0
    %2883 = vmatprep.subr.mxu0 0.0
    %2884 = vmatpush1.msra.mxu0 0.0
    %2885 = vmatprep.subr.mxu0 0.0
    %2886 = vmatpush1.msra.mxu0 0.0
    %2887 = vmatprep.subr.mxu0 0.0
    %2888 = vmatpush1.msra.mxu0 0.0
    %2889 = vmatprep.subr.mxu0 0.0
    %2890 = vmatpush1.msra.mxu0 0.0
    %2891 = vmatprep.subr.mxu0 0.0
    %2892 = vmatpush1.msra.mxu0 0.0
    %2893 = vmatprep.subr.mxu0 0.0
    %2894 = vmatpush1.msra.mxu0 0.0
    %2895 = vmatprep.subr.mxu0 0.0
    %2896 = vmatpush1.msra.mxu0 0.0
    %2897 = vmatprep.subr.mxu0 0.0
    %2898 = vmatpush1.msra.mxu0 0.0
    %2899 = vmatprep.subr.mxu0 0.0
    %2900 = vmatpush1.msra.mxu0 0.0
    %2901 = vmatprep.subr.mxu0 0.0
    %2902 = vmatpush1.msra.mxu0 0.0
    %2903 = vmatprep.subr.mxu0 0.0
    %2904 = vmatpush1.msra.mxu0 0.0
    %2905 = vmatprep.subr.mxu0 0.0
    %2906 = vmatpush1.msra.mxu0 0.0
    %2907 = vmatprep.subr.mxu0 0.0
    %2908 = vmatpush1.msra.mxu0 0.0
    %2909 = vmatprep.subr.mxu0 0.0
    %2910 = vmatpush1.msra.mxu0 0.0
    %2911 = vmatprep.mubr.f32.mxu0 0.0
    %2912 = vmatmul.mubr.f32.gmra.mrb[0].mxu0 %v2845
    %v2913 = vpop.f32.mrb[0].mxu0
    %v2914 = vadd.f32 0.0, %v2913
    %v2915 = vpop.f32.mrb[0].mxu0
    %2916 = vdwg.mxu0
    %2917 = vrot.lane.b32.xlu0 %v1912, 96
    %v2918 = vpop.permute.xlu0 %2917
    %v2921 = vsel %vm197, %v2606, 0
    %2923 = vmatprep.subr.mxu0 0.0
    %2924 = vmatpush1.msra.mxu0 %v2918
    %2925 = vmatprep.subr.mxu0 0.0
    %2926 = vmatpush1.msra.mxu0 0.0
    %2927 = vmatprep.subr.mxu0 0.0
    %2928 = vmatpush1.msra.mxu0 0.0
    %2929 = vmatprep.subr.mxu0 0.0
    %2930 = vmatpush1.msra.mxu0 0.0
    %2931 = vmatprep.subr.mxu0 0.0
    %2932 = vmatpush1.msra.mxu0 0.0
    %2933 = vmatprep.subr.mxu0 0.0
    %2934 = vmatpush1.msra.mxu0 0.0
    %2935 = vmatprep.subr.mxu0 0.0
    %2936 = vmatpush1.msra.mxu0 0.0
    %2937 = vmatprep.subr.mxu0 0.0
    %2938 = vmatpush1.msra.mxu0 0.0
    %2939 = vmatprep.subr.mxu0 0.0
    %2940 = vmatpush1.msra.mxu0 0.0
    %2941 = vmatprep.subr.mxu0 0.0
    %2942 = vmatpush1.msra.mxu0 0.0
    %2943 = vmatprep.subr.mxu0 0.0
    %2944 = vmatpush1.msra.mxu0 0.0
    %2945 = vmatprep.subr.mxu0 0.0
    %2946 = vmatpush1.msra.mxu0 0.0
    %2947 = vmatprep.subr.mxu0 0.0
    %2948 = vmatpush1.msra.mxu0 0.0
    %2949 = vmatprep.subr.mxu0 0.0
    %2950 = vmatpush1.msra.mxu0 0.0
    %2951 = vmatprep.subr.mxu0 0.0
    %2952 = vmatpush1.msra.mxu0 0.0
    %2953 = vmatprep.subr.mxu0 0.0
    %2954 = vmatpush1.msra.mxu0 0.0
    %2955 = vmatprep.subr.mxu0 0.0
    %2956 = vmatpush1.msra.mxu0 0.0
    %2957 = vmatprep.subr.mxu0 0.0
    %2958 = vmatpush1.msra.mxu0 0.0
    %2959 = vmatprep.subr.mxu0 0.0
    %2960 = vmatpush1.msra.mxu0 0.0
    %2961 = vmatprep.subr.mxu0 0.0
    %2962 = vmatpush1.msra.mxu0 0.0
    %2963 = vmatprep.subr.mxu0 0.0
    %2964 = vmatpush1.msra.mxu0 0.0
    %2965 = vmatprep.subr.mxu0 0.0
    %2966 = vmatpush1.msra.mxu0 0.0
    %2967 = vmatprep.subr.mxu0 0.0
    %2968 = vmatpush1.msra.mxu0 0.0
    %2969 = vmatprep.subr.mxu0 0.0
    %2970 = vmatpush1.msra.mxu0 0.0
    %2971 = vmatprep.subr.mxu0 0.0
    %2972 = vmatpush1.msra.mxu0 0.0
    %2973 = vmatprep.subr.mxu0 0.0
    %2974 = vmatpush1.msra.mxu0 0.0
    %2975 = vmatprep.subr.mxu0 0.0
    %2976 = vmatpush1.msra.mxu0 0.0
    %2977 = vmatprep.subr.mxu0 0.0
    %2978 = vmatpush1.msra.mxu0 0.0
    %2979 = vmatprep.subr.mxu0 0.0
    %2980 = vmatpush1.msra.mxu0 0.0
    %2981 = vmatprep.subr.mxu0 0.0
    %2982 = vmatpush1.msra.mxu0 0.0
    %2983 = vmatprep.subr.mxu0 0.0
    %2984 = vmatpush1.msra.mxu0 0.0
    %2985 = vmatprep.subr.mxu0 0.0
    %2986 = vmatpush1.msra.mxu0 0.0
    %2987 = vmatprep.mubr.f32.mxu0 0.0
    %2988 = vmatmul.mubr.f32.gmra.mrb[0].mxu0 %v2921
    %v2989 = vpop.f32.mrb[0].mxu0
    %v2990 = vadd.f32 0.0, %v2989
    %v2991 = vpop.f32.mrb[0].mxu0
    %2992 = vdwg.mxu0
    %2993 = vrot.lane.b32.xlu0 %v1914, 96
    %v2994 = vpop.permute.xlu0 %2993
    %v2997 = vsel %vm197, %v2608, 0
    %2999 = vmatprep.subr.mxu0 0.0
    %3000 = vmatpush1.msra.mxu0 %v2994
    %3001 = vmatprep.subr.mxu0 0.0
    %3002 = vmatpush1.msra.mxu0 0.0
    %3003 = vmatprep.subr.mxu0 0.0
    %3004 = vmatpush1.msra.mxu0 0.0
    %3005 = vmatprep.subr.mxu0 0.0
    %3006 = vmatpush1.msra.mxu0 0.0
    %3007 = vmatprep.subr.mxu0 0.0
    %3008 = vmatpush1.msra.mxu0 0.0
    %3009 = vmatprep.subr.mxu0 0.0
    %3010 = vmatpush1.msra.mxu0 0.0
    %3011 = vmatprep.subr.mxu0 0.0
    %3012 = vmatpush1.msra.mxu0 0.0
    %3013 = vmatprep.subr.mxu0 0.0
    %3014 = vmatpush1.msra.mxu0 0.0
    %3015 = vmatprep.subr.mxu0 0.0
    %3016 = vmatpush1.msra.mxu0 0.0
    %3017 = vmatprep.subr.mxu0 0.0
    %3018 = vmatpush1.msra.mxu0 0.0
    %3019 = vmatprep.subr.mxu0 0.0
    %3020 = vmatpush1.msra.mxu0 0.0
    %3021 = vmatprep.subr.mxu0 0.0
    %3022 = vmatpush1.msra.mxu0 0.0
    %3023 = vmatprep.subr.mxu0 0.0
    %3024 = vmatpush1.msra.mxu0 0.0
    %3025 = vmatprep.subr.mxu0 0.0
    %3026 = vmatpush1.msra.mxu0 0.0
    %3027 = vmatprep.subr.mxu0 0.0
    %3028 = vmatpush1.msra.mxu0 0.0
    %3029 = vmatprep.subr.mxu0 0.0
    %3030 = vmatpush1.msra.mxu0 0.0
    %3031 = vmatprep.subr.mxu0 0.0
    %3032 = vmatpush1.msra.mxu0 0.0
    %3033 = vmatprep.subr.mxu0 0.0
    %3034 = vmatpush1.msra.mxu0 0.0
    %3035 = vmatprep.subr.mxu0 0.0
    %3036 = vmatpush1.msra.mxu0 0.0
    %3037 = vmatprep.subr.mxu0 0.0
    %3038 = vmatpush1.msra.mxu0 0.0
    %3039 = vmatprep.subr.mxu0 0.0
    %3040 = vmatpush1.msra.mxu0 0.0
    %3041 = vmatprep.subr.mxu0 0.0
    %3042 = vmatpush1.msra.mxu0 0.0
    %3043 = vmatprep.subr.mxu0 0.0
    %3044 = vmatpush1.msra.mxu0 0.0
    %3045 = vmatprep.subr.mxu0 0.0
    %3046 = vmatpush1.msra.mxu0 0.0
    %3047 = vmatprep.subr.mxu0 0.0
    %3048 = vmatpush1.msra.mxu0 0.0
    %3049 = vmatprep.subr.mxu0 0.0
    %3050 = vmatpush1.msra.mxu0 0.0
    %3051 = vmatprep.subr.mxu0 0.0
    %3052 = vmatpush1.msra.mxu0 0.0
    %3053 = vmatprep.subr.mxu0 0.0
    %3054 = vmatpush1.msra.mxu0 0.0
    %3055 = vmatprep.subr.mxu0 0.0
    %3056 = vmatpush1.msra.mxu0 0.0
    %3057 = vmatprep.subr.mxu0 0.0
    %3058 = vmatpush1.msra.mxu0 0.0
    %3059 = vmatprep.subr.mxu0 0.0
    %3060 = vmatpush1.msra.mxu0 0.0
    %3061 = vmatprep.subr.mxu0 0.0
    %3062 = vmatpush1.msra.mxu0 0.0
    %3063 = vmatprep.mubr.f32.mxu0 0.0
    %3064 = vmatmul.mubr.f32.gmra.mrb[0].mxu0 %v2997
    %v3065 = vpop.f32.mrb[0].mxu0
    %v3066 = vadd.f32 0.0, %v3065
    %v3067 = vpop.f32.mrb[0].mxu0
    %3068 = vdwg.mxu0
    %3069 = vrot.lane.b32.xlu0 %v1916, 96
    %v3070 = vpop.permute.xlu0 %3069
    %v3073 = vsel %vm197, %v2610, 0
    %3075 = vmatprep.subr.mxu0 0.0
    %3076 = vmatpush1.msra.mxu0 %v3070
    %3077 = vmatprep.subr.mxu0 0.0
    %3078 = vmatpush1.msra.mxu0 0.0
    %3079 = vmatprep.subr.mxu0 0.0
    %3080 = vmatpush1.msra.mxu0 0.0
    %3081 = vmatprep.subr.mxu0 0.0
    %3082 = vmatpush1.msra.mxu0 0.0
    %3083 = vmatprep.subr.mxu0 0.0
    %3084 = vmatpush1.msra.mxu0 0.0
    %3085 = vmatprep.subr.mxu0 0.0
    %3086 = vmatpush1.msra.mxu0 0.0
    %3087 = vmatprep.subr.mxu0 0.0
    %3088 = vmatpush1.msra.mxu0 0.0
    %3089 = vmatprep.subr.mxu0 0.0
    %3090 = vmatpush1.msra.mxu0 0.0
    %3091 = vmatprep.subr.mxu0 0.0
    %3092 = vmatpush1.msra.mxu0 0.0
    %3093 = vmatprep.subr.mxu0 0.0
    %3094 = vmatpush1.msra.mxu0 0.0
    %3095 = vmatprep.subr.mxu0 0.0
    %3096 = vmatpush1.msra.mxu0 0.0
    %3097 = vmatprep.subr.mxu0 0.0
    %3098 = vmatpush1.msra.mxu0 0.0
    %3099 = vmatprep.subr.mxu0 0.0
    %3100 = vmatpush1.msra.mxu0 0.0
    %3101 = vmatprep.subr.mxu0 0.0
    %3102 = vmatpush1.msra.mxu0 0.0
    %3103 = vmatprep.subr.mxu0 0.0
    %3104 = vmatpush1.msra.mxu0 0.0
    %3105 = vmatprep.subr.mxu0 0.0
    %3106 = vmatpush1.msra.mxu0 0.0
    %3107 = vmatprep.subr.mxu0 0.0
    %3108 = vmatpush1.msra.mxu0 0.0
    %3109 = vmatprep.subr.mxu0 0.0
    %3110 = vmatpush1.msra.mxu0 0.0
    %3111 = vmatprep.subr.mxu0 0.0
    %3112 = vmatpush1.msra.mxu0 0.0
    %3113 = vmatprep.subr.mxu0 0.0
    %3114 = vmatpush1.msra.mxu0 0.0
    %3115 = vmatprep.subr.mxu0 0.0
    %3116 = vmatpush1.msra.mxu0 0.0
    %3117 = vmatprep.subr.mxu0 0.0
    %3118 = vmatpush1.msra.mxu0 0.0
    %3119 = vmatprep.subr.mxu0 0.0
    %3120 = vmatpush1.msra.mxu0 0.0
    %3121 = vmatprep.subr.mxu0 0.0
    %3122 = vmatpush1.msra.mxu0 0.0
    %3123 = vmatprep.subr.mxu0 0.0
    %3124 = vmatpush1.msra.mxu0 0.0
    %3125 = vmatprep.subr.mxu0 0.0
    %3126 = vmatpush1.msra.mxu0 0.0
    %3127 = vmatprep.subr.mxu0 0.0
    %3128 = vmatpush1.msra.mxu0 0.0
    %3129 = vmatprep.subr.mxu0 0.0
    %3130 = vmatpush1.msra.mxu0 0.0
    %3131 = vmatprep.subr.mxu0 0.0
    %3132 = vmatpush1.msra.mxu0 0.0
    %3133 = vmatprep.subr.mxu0 0.0
    %3134 = vmatpush1.msra.mxu0 0.0
    %3135 = vmatprep.subr.mxu0 0.0
    %3136 = vmatpush1.msra.mxu0 0.0
    %3137 = vmatprep.subr.mxu0 0.0
    %3138 = vmatpush1.msra.mxu0 0.0
    %3139 = vmatprep.mubr.f32.mxu0 0.0
    %3140 = vmatmul.mubr.f32.gmra.mrb[0].mxu0 %v3073
    %v3141 = vpop.f32.mrb[0].mxu0
    %v3142 = vadd.f32 0.0, %v3141
    %v3143 = vpop.f32.mrb[0].mxu0
    %3144 = vdwg.mxu0
    %3145 = vrot.lane.b32.xlu0 %v1918, 96
    %v3146 = vpop.permute.xlu0 %3145
    %v3149 = vsel %vm197, %v2612, 0
    %3151 = vmatprep.subr.mxu0 0.0
    %3152 = vmatpush1.msra.mxu0 %v3146
    %3153 = vmatprep.subr.mxu0 0.0
    %3154 = vmatpush1.msra.mxu0 0.0
    %3155 = vmatprep.subr.mxu0 0.0
    %3156 = vmatpush1.msra.mxu0 0.0
    %3157 = vmatprep.subr.mxu0 0.0
    %3158 = vmatpush1.msra.mxu0 0.0
    %3159 = vmatprep.subr.mxu0 0.0
    %3160 = vmatpush1.msra.mxu0 0.0
    %3161 = vmatprep.subr.mxu0 0.0
    %3162 = vmatpush1.msra.mxu0 0.0
    %3163 = vmatprep.subr.mxu0 0.0
    %3164 = vmatpush1.msra.mxu0 0.0
    %3165 = vmatprep.subr.mxu0 0.0
    %3166 = vmatpush1.msra.mxu0 0.0
    %3167 = vmatprep.subr.mxu0 0.0
    %3168 = vmatpush1.msra.mxu0 0.0
    %3169 = vmatprep.subr.mxu0 0.0
    %3170 = vmatpush1.msra.mxu0 0.0
    %3171 = vmatprep.subr.mxu0 0.0
    %3172 = vmatpush1.msra.mxu0 0.0
    %3173 = vmatprep.subr.mxu0 0.0
    %3174 = vmatpush1.msra.mxu0 0.0
    %3175 = vmatprep.subr.mxu0 0.0
    %3176 = vmatpush1.msra.mxu0 0.0
    %3177 = vmatprep.subr.mxu0 0.0
    %3178 = vmatpush1.msra.mxu0 0.0
    %3179 = vmatprep.subr.mxu0 0.0
    %3180 = vmatpush1.msra.mxu0 0.0
    %3181 = vmatprep.subr.mxu0 0.0
    %3182 = vmatpush1.msra.mxu0 0.0
    %3183 = vmatprep.subr.mxu0 0.0
    %3184 = vmatpush1.msra.mxu0 0.0
    %3185 = vmatprep.subr.mxu0 0.0
    %3186 = vmatpush1.msra.mxu0 0.0
    %3187 = vmatprep.subr.mxu0 0.0
    %3188 = vmatpush1.msra.mxu0 0.0
    %3189 = vmatprep.subr.mxu0 0.0
    %3190 = vmatpush1.msra.mxu0 0.0
    %3191 = vmatprep.subr.mxu0 0.0
    %3192 = vmatpush1.msra.mxu0 0.0
    %3193 = vmatprep.subr.mxu0 0.0
    %3194 = vmatpush1.msra.mxu0 0.0
    %3195 = vmatprep.subr.mxu0 0.0
    %3196 = vmatpush1.msra.mxu0 0.0
    %3197 = vmatprep.subr.mxu0 0.0
    %3198 = vmatpush1.msra.mxu0 0.0
    %3199 = vmatprep.subr.mxu0 0.0
    %3200 = vmatpush1.msra.mxu0 0.0
    %3201 = vmatprep.subr.mxu0 0.0
    %3202 = vmatpush1.msra.mxu0 0.0
    %3203 = vmatprep.subr.mxu0 0.0
    %3204 = vmatpush1.msra.mxu0 0.0
    %3205 = vmatprep.subr.mxu0 0.0
    %3206 = vmatpush1.msra.mxu0 0.0
    %3207 = vmatprep.subr.mxu0 0.0
    %3208 = vmatpush1.msra.mxu0 0.0
    %3209 = vmatprep.subr.mxu0 0.0
    %3210 = vmatpush1.msra.mxu0 0.0
    %3211 = vmatprep.subr.mxu0 0.0
    %3212 = vmatpush1.msra.mxu0 0.0
    %3213 = vmatprep.subr.mxu0 0.0
    %3214 = vmatpush1.msra.mxu0 0.0
    %3215 = vmatprep.mubr.f32.mxu0 0.0
    %3216 = vmatmul.mubr.f32.gmra.mrb[0].mxu0 %v3149
    %v3217 = vpop.f32.mrb[0].mxu0
    %v3218 = vadd.f32 0.0, %v3217
    %v3219 = vpop.f32.mrb[0].mxu0
    %3220 = vdwg.mxu0
    %3223 = vrot.lane.b32.xlu0 %v2838, 8
    %v3224 = vpop.permute.xlu0 %3223
    %3225 = vrot.lane.b32.xlu0 %v2914, 8
    %v3226 = vpop.permute.xlu0 %3225
    %3231 = vrot.lane.b32.xlu0 %v2990, 16
    %v3232 = vpop.permute.xlu0 %3231
    %3233 = vrot.lane.b32.xlu0 %v3066, 16
    %v3234 = vpop.permute.xlu0 %3233
    %3239 = vrot.lane.b32.xlu0 %v3142, 24
    %v3240 = vpop.permute.xlu0 %3239
    %3241 = vrot.lane.b32.xlu0 %v3218, 24
    %v3242 = vpop.permute.xlu0 %3241
    %v3245 = vsel %vm197, %v2686, %v3224
    %v3246 = vsel %vm197, %v2762, %v3226
    %v3247 = vsel %vm1540, %v3245, %v3232
    %v3248 = vsel %vm1540, %v3246, %v3234
    %v3249 = vsel %vm1543, %v3247, %v3240
    %v3250 = vsel %vm1543, %v3248, %v3242
    %v3251 = vlaneseq
    %v3252 = vshrl.u32 %v3251, 7
    %v3253 = vsub.s32 0, %v3252
    %v3254 = vrot.slane %v1876, %v3253
    %v3256 = vsel %vm35, %v3249, 0
    %v3259 = vsel %vm35, %v3250, 0
    %3261 = vmatprep.subr.mxu0 0.0
    %3262 = vmatpush1.msra.mxu0 %v1872
    %3263 = vmatprep.subr.mxu0 0.0
    %3264 = vmatpush1.msra.mxu0 %v1873
    %3265 = vmatprep.subr.mxu0 0.0
    %3266 = vmatpush1.msra.mxu0 %v1874
    %3267 = vmatprep.subr.mxu0 0.0
    %3268 = vmatpush1.msra.mxu0 %v1875
    %3269 = vmatprep.subr.mxu0 0.0
    %3270 = vmatpush1.msra.mxu0 0.0
    %3271 = vmatprep.subr.mxu0 0.0
    %3272 = vmatpush1.msra.mxu0 0.0
    %3273 = vmatprep.subr.mxu0 0.0
    %3274 = vmatpush1.msra.mxu0 0.0
    %3275 = vmatprep.subr.mxu0 0.0
    %3276 = vmatpush1.msra.mxu0 0.0
    %3277 = vmatprep.subr.mxu0 0.0
    %3278 = vmatpush1.msra.mxu0 0.0
    %3279 = vmatprep.subr.mxu0 0.0
    %3280 = vmatpush1.msra.mxu0 0.0
    %3281 = vmatprep.subr.mxu0 0.0
    %3282 = vmatpush1.msra.mxu0 0.0
    %3283 = vmatprep.subr.mxu0 0.0
    %3284 = vmatpush1.msra.mxu0 0.0
    %3285 = vmatprep.subr.mxu0 0.0
    %3286 = vmatpush1.msra.mxu0 0.0
    %3287 = vmatprep.subr.mxu0 0.0
    %3288 = vmatpush1.msra.mxu0 0.0
    %3289 = vmatprep.subr.mxu0 0.0
    %3290 = vmatpush1.msra.mxu0 0.0
    %3291 = vmatprep.subr.mxu0 0.0
    %3292 = vmatpush1.msra.mxu0 0.0
    %3293 = vmatprep.subr.mxu0 0.0
    %3294 = vmatpush1.msra.mxu0 0.0
    %3295 = vmatprep.subr.mxu0 0.0
    %3296 = vmatpush1.msra.mxu0 0.0
    %3297 = vmatprep.subr.mxu0 0.0
    %3298 = vmatpush1.msra.mxu0 0.0
    %3299 = vmatprep.subr.mxu0 0.0
    %3300 = vmatpush1.msra.mxu0 0.0
    %3301 = vmatprep.subr.mxu0 0.0
    %3302 = vmatpush1.msra.mxu0 0.0
    %3303 = vmatprep.subr.mxu0 0.0
    %3304 = vmatpush1.msra.mxu0 0.0
    %3305 = vmatprep.subr.mxu0 0.0
    %3306 = vmatpush1.msra.mxu0 0.0
    %3307 = vmatprep.subr.mxu0 0.0
    %3308 = vmatpush1.msra.mxu0 0.0
    %3309 = vmatprep.subr.mxu0 0.0
    %3310 = vmatpush1.msra.mxu0 0.0
    %3311 = vmatprep.subr.mxu0 0.0
    %3312 = vmatpush1.msra.mxu0 0.0
    %3313 = vmatprep.subr.mxu0 0.0
    %3314 = vmatpush1.msra.mxu0 0.0
    %3315 = vmatprep.subr.mxu0 0.0
    %3316 = vmatpush1.msra.mxu0 0.0
    %3317 = vmatprep.subr.mxu0 0.0
    %3318 = vmatpush1.msra.mxu0 0.0
    %3319 = vmatprep.subr.mxu0 0.0
    %3320 = vmatpush1.msra.mxu0 0.0
    %3321 = vmatprep.subr.mxu0 0.0
    %3322 = vmatpush1.msra.mxu0 0.0
    %3323 = vmatprep.subr.mxu0 0.0
    %3324 = vmatpush1.msra.mxu0 0.0
    %3325 = vmatprep.mubr.f32.mxu0 0.0
    %3326 = vmatmul.mubr.f32.gmra.mrb[0].mxu0 %v3256
    %v3327 = vpop.f32.mrb[0].mxu0
    %v3328 = vadd.f32 %v3254, %v3327
    %v3329 = vpop.f32.mrb[0].mxu0
    %3330 = vmatprep.mubr.f32.mxu0 0.0
    %3331 = vmatmul.mubr.f32.gmra.mrb[0].mxu0 %v3259
    %v3332 = vpop.f32.mrb[0].mxu0
    %v3333 = vadd.f32 %v3254, %v3332
    %v3334 = vpop.f32.mrb[0].mxu0
    %3335 = vdwg.mxu0
    %v3336 = vadd.f32 %v1672, %v3328
    %v3337 = vadd.f32 %v1673, %v3333
    %v3338 = vsel %vm35, %v3336, 0.0
    %3339 = vadd.xlane.f32.xlu0 %v3338
    %v3340 = vpop.xlane.xlu0 %3339
    %v3341 = vsel %vm35, %v3337, 0.0
    %3342 = vadd.xlane.f32.xlu0 %v3341
    %v3343 = vpop.xlane.xlu0 %3342
    %v3344 = vmul.f32 %v3340, %v1639
    %v3345 = vmul.f32 %v3343, %v1639
    %v3346 = vsub.f32 %v3336, %v3344
    %v3347 = vsub.f32 %v3337, %v3345
    %v3348 = vmul.f32 %v3346, %v3346
    %v3349 = vmul.f32 %v3347, %v3347
    %v3350 = vsel %vm35, %v3348, 0.0
    %3351 = vadd.xlane.f32.xlu0 %v3350
    %v3352 = vpop.xlane.xlu0 %3351
    %v3353 = vsel %vm35, %v3349, 0.0
    %3354 = vadd.xlane.f32.xlu0 %v3353
    %v3355 = vpop.xlane.xlu0 %3354
    %v3356 = vmul.f32 %v3352, %v1639
    %v3357 = vmul.f32 %v3355, %v1639
    %v3358 = vadd.f32 %v3356, 1e-05
    %v3359 = vadd.f32 %v3357, 1e-05
    %v3360 = vrsqrt.pop %v3358
    %v3361 = vrsqrt.pop %v3359
    %v3362 = vmul.f32 %v3346, %v3360
    %v3363 = vmul.f32 %v3347, %v3361
    %v3364 = vld [vmem:[%s6 + $0xa] sm:$0x1]
    %v3365 = vlaneseq
    %v3366 = vshrl.u32 %v3365, 7
    %v3367 = vsub.s32 0, %v3366
    %v3368 = vrot.slane %v3364, %v3367
    %v3369 = vmul.f32 %v3362, %v3368
    %v3370 = vmul.f32 %v3363, %v3368
    %v3371 = vld [vmem:[%s6 + $0xb] sm:$0x1]
    %v3372 = vlaneseq
    %v3373 = vshrl.u32 %v3372, 7
    %v3374 = vsub.s32 0, %v3373
    %v3375 = vrot.slane %v3371, %v3374
    %v3376 = vadd.f32 %v3369, %v3375
    %v3377 = vadd.f32 %v3370, %v3375
    %s3378 = scalar_lea.vmem %s4, 32
    %v3379 = vld [vmem:[%s3378] sm:$0xff]
    %v3380 = vld [vmem:[%s3378 + $0x8] sm:$0xff]
    %v3381 = vld [vmem:[%s3378 + $0x10] sm:$0xff]
    %v3382 = vld [vmem:[%s3378 + $0x18] sm:$0xff]
    %v3383 = vld [vmem:[%s6 + $0xf] sm:$0x1]
    %v3384 = vlaneseq
    %v3385 = vshrl.u32 %v3384, 7
    %v3386 = vsub.s32 0, %v3385
    %v3387 = vrot.slane %v3383, %v3386
    %v3389 = vsel %vm35, %v3376, 0
    %v3392 = vsel %vm35, %v3377, 0
    %3394 = vmatprep.subr.mxu0 0.0
    %3395 = vmatpush1.msra.mxu0 %v3379
    %3396 = vmatprep.subr.mxu0 0.0
    %3397 = vmatpush1.msra.mxu0 %v3380
    %3398 = vmatprep.subr.mxu0 0.0
    %3399 = vmatpush1.msra.mxu0 %v3381
    %3400 = vmatprep.subr.mxu0 0.0
    %3401 = vmatpush1.msra.mxu0 %v3382
    %3402 = vmatprep.subr.mxu0 0.0
    %3403 = vmatpush1.msra.mxu0 0.0
    %3404 = vmatprep.subr.mxu0 0.0
    %3405 = vmatpush1.msra.mxu0 0.0
    %3406 = vmatprep.subr.mxu0 0.0
    %3407 = vmatpush1.msra.mxu0 0.0
    %3408 = vmatprep.subr.mxu0 0.0
    %3409 = vmatpush1.msra.mxu0 0.0
    %3410 = vmatprep.subr.mxu0 0.0
    %3411 = vmatpush1.msra.mxu0 0.0
    %3412 = vmatprep.subr.mxu0 0.0
    %3413 = vmatpush1.msra.mxu0 0.0
    %3414 = vmatprep.subr.mxu0 0.0
    %3415 = vmatpush1.msra.mxu0 0.0
    %3416 = vmatprep.subr.mxu0 0.0
    %3417 = vmatpush1.msra.mxu0 0.0
    %3418 = vmatprep.subr.mxu0 0.0
    %3419 = vmatpush1.msra.mxu0 0.0
    %3420 = vmatprep.subr.mxu0 0.0
    %3421 = vmatpush1.msra.mxu0 0.0
    %3422 = vmatprep.subr.mxu0 0.0
    %3423 = vmatpush1.msra.mxu0 0.0
    %3424 = vmatprep.subr.mxu0 0.0
    %3425 = vmatpush1.msra.mxu0 0.0
    %3426 = vmatprep.subr.mxu0 0.0
    %3427 = vmatpush1.msra.mxu0 0.0
    %3428 = vmatprep.subr.mxu0 0.0
    %3429 = vmatpush1.msra.mxu0 0.0
    %3430 = vmatprep.subr.mxu0 0.0
    %3431 = vmatpush1.msra.mxu0 0.0
    %3432 = vmatprep.subr.mxu0 0.0
    %3433 = vmatpush1.msra.mxu0 0.0
    %3434 = vmatprep.subr.mxu0 0.0
    %3435 = vmatpush1.msra.mxu0 0.0
    %3436 = vmatprep.subr.mxu0 0.0
    %3437 = vmatpush1.msra.mxu0 0.0
    %3438 = vmatprep.subr.mxu0 0.0
    %3439 = vmatpush1.msra.mxu0 0.0
    %3440 = vmatprep.subr.mxu0 0.0
    %3441 = vmatpush1.msra.mxu0 0.0
    %3442 = vmatprep.subr.mxu0 0.0
    %3443 = vmatpush1.msra.mxu0 0.0
    %3444 = vmatprep.subr.mxu0 0.0
    %3445 = vmatpush1.msra.mxu0 0.0
    %3446 = vmatprep.subr.mxu0 0.0
    %3447 = vmatpush1.msra.mxu0 0.0
    %3448 = vmatprep.subr.mxu0 0.0
    %3449 = vmatpush1.msra.mxu0 0.0
    %3450 = vmatprep.subr.mxu0 0.0
    %3451 = vmatpush1.msra.mxu0 0.0
    %3452 = vmatprep.subr.mxu0 0.0
    %3453 = vmatpush1.msra.mxu0 0.0
    %3454 = vmatprep.subr.mxu0 0.0
    %3455 = vmatpush1.msra.mxu0 0.0
    %3456 = vmatprep.subr.mxu0 0.0
    %3457 = vmatpush1.msra.mxu0 0.0
    %3458 = vmatprep.mubr.f32.mxu0 0.0
    %3459 = vmatmul.mubr.f32.gmra.mrb[0].mxu0 %v3389
    %v3460 = vpop.f32.mrb[0].mxu0
    %v3461 = vadd.f32 %v3387, %v3460
    %v3462 = vpop.f32.mrb[0].mxu0
    %3463 = vmatprep.mubr.f32.mxu0 0.0
    %3464 = vmatmul.mubr.f32.gmra.mrb[0].mxu0 %v3392
    %v3465 = vpop.f32.mrb[0].mxu0
    %v3466 = vadd.f32 %v3387, %v3465
    %v3467 = vpop.f32.mrb[0].mxu0
    %3468 = vdwg.mxu0
    %v3469 = vmul.f32 %v3461, 0.01
    %v3470 = vmul.f32 %v3466, 0.01
    %v3471 = vmax.f32 %v3461, %v3469
    %v3472 = vmax.f32 %v3466, %v3470
    %v3473 = vld [vmem:[%s5] sm:$0xff]
    %v3474 = vld [vmem:[%s5 + $0x8] sm:$0xff]
    %v3475 = vld [vmem:[%s5 + $0x10] sm:$0xff]
    %v3476 = vld [vmem:[%s5 + $0x18] sm:$0xff]
    %v3477 = vld [vmem:[%s5 + $0x20] sm:$0xff]
    %v3478 = vld [vmem:[%s5 + $0x28] sm:$0xff]
    %v3479 = vld [vmem:[%s5 + $0x30] sm:$0xff]
    %v3480 = vld [vmem:[%s5 + $0x38] sm:$0xff]
    %v3481 = vld [vmem:[%s6 + $0xe] sm:$0x1]
    %v3482 = vlaneseq
    %v3483 = vshrl.u32 %v3482, 7
    %v3484 = vsub.s32 0, %v3483
    %v3485 = vrot.slane %v3481, %v3484
    %vm3486 = vcmask 523264
    %v3488 = vsel %vm3486, %v3471, 0
    %v3491 = vsel %vm3486, %v3472, 0
    %3493 = vmatprep.subr.mxu0 0.0
    %3494 = vmatpush1.msra.mxu0 %v3473
    %3495 = vmatprep.subr.mxu0 0.0
    %3496 = vmatpush1.msra.mxu0 %v3474
    %3497 = vmatprep.subr.mxu0 0.0
    %3498 = vmatpush1.msra.mxu0 %v3475
    %3499 = vmatprep.subr.mxu0 0.0
    %3500 = vmatpush1.msra.mxu0 %v3476
    %3501 = vmatprep.subr.mxu0 0.0
    %3502 = vmatpush1.msra.mxu0 %v3477
    %3503 = vmatprep.subr.mxu0 0.0
    %3504 = vmatpush1.msra.mxu0 %v3478
    %3505 = vmatprep.subr.mxu0 0.0
    %3506 = vmatpush1.msra.mxu0 %v3479
    %3507 = vmatprep.subr.mxu0 0.0
    %3508 = vmatpush1.msra.mxu0 %v3480
    %3509 = vmatprep.subr.mxu0 0.0
    %3510 = vmatpush1.msra.mxu0 0.0
    %3511 = vmatprep.subr.mxu0 0.0
    %3512 = vmatpush1.msra.mxu0 0.0
    %3513 = vmatprep.subr.mxu0 0.0
    %3514 = vmatpush1.msra.mxu0 0.0
    %3515 = vmatprep.subr.mxu0 0.0
    %3516 = vmatpush1.msra.mxu0 0.0
    %3517 = vmatprep.subr.mxu0 0.0
    %3518 = vmatpush1.msra.mxu0 0.0
    %3519 = vmatprep.subr.mxu0 0.0
    %3520 = vmatpush1.msra.mxu0 0.0
    %3521 = vmatprep.subr.mxu0 0.0
    %3522 = vmatpush1.msra.mxu0 0.0
    %3523 = vmatprep.subr.mxu0 0.0
    %3524 = vmatpush1.msra.mxu0 0.0
    %3525 = vmatprep.subr.mxu0 0.0
    %3526 = vmatpush1.msra.mxu0 0.0
    %3527 = vmatprep.subr.mxu0 0.0
    %3528 = vmatpush1.msra.mxu0 0.0
    %3529 = vmatprep.subr.mxu0 0.0
    %3530 = vmatpush1.msra.mxu0 0.0
    %3531 = vmatprep.subr.mxu0 0.0
    %3532 = vmatpush1.msra.mxu0 0.0
    %3533 = vmatprep.subr.mxu0 0.0
    %3534 = vmatpush1.msra.mxu0 0.0
    %3535 = vmatprep.subr.mxu0 0.0
    %3536 = vmatpush1.msra.mxu0 0.0
    %3537 = vmatprep.subr.mxu0 0.0
    %3538 = vmatpush1.msra.mxu0 0.0
    %3539 = vmatprep.subr.mxu0 0.0
    %3540 = vmatpush1.msra.mxu0 0.0
    %3541 = vmatprep.subr.mxu0 0.0
    %3542 = vmatpush1.msra.mxu0 0.0
    %3543 = vmatprep.subr.mxu0 0.0
    %3544 = vmatpush1.msra.mxu0 0.0
    %3545 = vmatprep.subr.mxu0 0.0
    %3546 = vmatpush1.msra.mxu0 0.0
    %3547 = vmatprep.subr.mxu0 0.0
    %3548 = vmatpush1.msra.mxu0 0.0
    %3549 = vmatprep.subr.mxu0 0.0
    %3550 = vmatpush1.msra.mxu0 0.0
    %3551 = vmatprep.subr.mxu0 0.0
    %3552 = vmatpush1.msra.mxu0 0.0
    %3553 = vmatprep.subr.mxu0 0.0
    %3554 = vmatpush1.msra.mxu0 0.0
    %3555 = vmatprep.subr.mxu0 0.0
    %3556 = vmatpush1.msra.mxu0 0.0
    %3557 = vmatprep.mubr.f32.mxu0 0.0
    %3558 = vmatmul.mubr.f32.gmra.mrb[0].mxu0 %v3488
    %v3559 = vpop.f32.mrb[0].mxu0
    %v3560 = vadd.f32 %v3485, %v3559
    %v3561 = vpop.f32.mrb[0].mxu0
    %3562 = vmatprep.mubr.f32.mxu0 0.0
    %3563 = vmatmul.mubr.f32.gmra.mrb[0].mxu0 %v3491
    %v3564 = vpop.f32.mrb[0].mxu0
    %v3565 = vadd.f32 %v3485, %v3564
    %v3566 = vpop.f32.mrb[0].mxu0
    %3567 = vdwg.mxu0
    %v3568 = vadd.f32 %v3376, %v3560
    %v3569 = vadd.f32 %v3377, %v3565
    %v3570 = vsel %vm35, %v3568, 0.0
    %3571 = vadd.xlane.f32.xlu0 %v3570
    %v3572 = vpop.xlane.xlu0 %3571
    %v3573 = vsel %vm35, %v3569, 0.0
    %3574 = vadd.xlane.f32.xlu0 %v3573
    %v3575 = vpop.xlane.xlu0 %3574
    %v3576 = vmul.f32 %v3572, %v1639
    %v3577 = vmul.f32 %v3575, %v1639
    %v3578 = vsub.f32 %v3568, %v3576
    %v3579 = vsub.f32 %v3569, %v3577
    %v3580 = vmul.f32 %v3578, %v3578
    %v3581 = vmul.f32 %v3579, %v3579
    %v3582 = vsel %vm35, %v3580, 0.0
    %3583 = vadd.xlane.f32.xlu0 %v3582
    %v3584 = vpop.xlane.xlu0 %3583
    %v3585 = vsel %vm35, %v3581, 0.0
    %3586 = vadd.xlane.f32.xlu0 %v3585
    %v3587 = vpop.xlane.xlu0 %3586
    %v3588 = vmul.f32 %v3584, %v1639
    %v3589 = vmul.f32 %v3587, %v1639
    %v3590 = vadd.f32 %v3588, 1e-05
    %v3591 = vadd.f32 %v3589, 1e-05
    %v3592 = vrsqrt.pop %v3590
    %v3593 = vrsqrt.pop %v3591
    %v3594 = vmul.f32 %v3578, %v3592
    %v3595 = vmul.f32 %v3579, %v3593
    %v3596 = vld [vmem:[%s6 + $0xc] sm:$0x1]
    %v3597 = vlaneseq
    %v3598 = vshrl.u32 %v3597, 7
    %v3599 = vsub.s32 0, %v3598
    %v3600 = vrot.slane %v3596, %v3599
    %v3601 = vmul.f32 %v3594, %v3600
    %v3602 = vmul.f32 %v3595, %v3600
    %v3603 = vld [vmem:[%s6 + $0xd] sm:$0x1]
    %v3604 = vlaneseq
    %v3605 = vshrl.u32 %v3604, 7
    %v3606 = vsub.s32 0, %v3605
    %v3607 = vrot.slane %v3603, %v3606
    %v3608 = vadd.f32 %v3601, %v3607
    %v3609 = vadd.f32 %v3602, %v3607
    %3610 = vst.msk [vmem:[#allocation2] sm:$0xff] %vm35, %v3608
    %3611 = vst.msk [vmem:[#allocation2 + $0x8] sm:$0xff] %vm35, %v3609
    // Predicated region
    $region30: #{decoder_layer.1} parent=1 // pred_check
      _
    $region31: #{decoder_layer.1} parent=1 // pred_check_branch
      %3613 = sbr.rel (0) target = $region33
    $region32: #{decoder_layer.1} parent=1 // pred_region
      %s3615 = ssub.s32 256, 256
      %3616 = vsyncadd [#allocation3], %s3615
      %s3617 = sshll.u32 [#allocation2], 4
      %s3618 = int_to_ptr.vmem [resolvable:$true] %s3617
      %3623 = dma.vmem_to_hbm [thread:$0]  %s3618, 256, %s7, [#allocation3], 128, 128, 8
    $region33: #{decoder_layer.1} parent=1 // pred_fallthru
      _
    // Predicated region
    $region34: #{decoder_layer.1} parent=1 // pred_check
      _
    $region35: #{decoder_layer.1} parent=1 // pred_check_branch
      %3625 = sbr.rel (0) target = $region37
    $region36: #{decoder_layer.1} parent=1 // pred_region
      %3626 = dma.done [#allocation3], 256
    $region37: #{decoder_layer.1} parent=1 // pred_fallthru
      _
    %3627 = vsyncpa [#allocation3], 1

</llo_original>
